<compile_context>
chip_gen: v7x
topology: tpu7x:2x2x1
jax: 0.10.0
libtpu: 0.0.40
codegen_flags: <defaults>
</compile_context>

<pallas_src>
from functools import partial

import jax
import jax.numpy as jnp
from jax.experimental import pallas as pl
from jax.experimental.pallas import tpu as pltpu


# ---------------------------------------------------------------------------
# tiling helpers
# ---------------------------------------------------------------------------
def _largest_div_tile(n, max_tile, min_steps=1):
    """Largest multiple of 128 dividing `n` that is <= max_tile; if possible,
    shrink so that n // tile >= min_steps (keeps both v7x TensorCores busy)."""
    assert n % 128 == 0
    best = 128
    for c in range(128, min(n, max_tile) + 1, 128):
        if n % c == 0:
            best = c
    while n // best < min_steps:
        nxt = None
        for c in range(best - 128, 127, -128):
            if n % c == 0:
                nxt = c
                break
        if nxt is None:
            break
        best = nxt
    return best


# ---------------------------------------------------------------------------
# Pallas kernel 1: MXU GEMM for the shared capsule convolution (im2col matmul)
# ---------------------------------------------------------------------------
def _gemm_kernel(w_ref, p_ref, o_ref):
    # w_ref: (Co*Ao, K) bf16   p_ref: (K, tn) bf16   o_ref: (Co*Ao, tn) f32.
    # tn is a multiple of 128 -> lane-dense unmasked stores; accumulation in
    # f32 on the MXU.
    o_ref[...] = jnp.dot(w_ref[...], p_ref[...],
                         preferred_element_type=jnp.float32)


def _pallas_gemm(w, p, *, max_tile=1024):
    """(Co*Ao, K) @ (K, N) -> (Co*Ao, N) f32, tiled over N (the large dim)."""
    coao, K = w.shape
    K2, N = p.shape
    assert K == K2
    n_pad = pl.cdiv(N, 128) * 128
    if n_pad != N:                      # generic fallback; not hit below
        p = jnp.pad(p, ((0, 0), (0, n_pad - N)))
    tn = _largest_div_tile(n_pad, max_tile, min_steps=2)
    out = pl.pallas_call(
        _gemm_kernel,
        out_shape=jax.ShapeDtypeStruct((coao, n_pad), jnp.float32),
        grid_spec=pltpu.PrefetchScalarGridSpec(
            num_scalar_prefetch=0,
            grid=(n_pad // tn,),
            in_specs=[
                pl.BlockSpec((coao, K), lambda j: (0, 0)),
                pl.BlockSpec((K, tn), lambda j: (0, j)),
            ],
            out_specs=pl.BlockSpec((coao, tn), lambda j: (0, j)),
        ),
        compiler_params=pltpu.CompilerParams(
            dimension_semantics=("parallel",)),
    )(w, p)
    return out if n_pad == N else out[:, :N]


# ---------------------------------------------------------------------------
# Pallas kernel 2: fused dynamic routing + squash
# ---------------------------------------------------------------------------
def _routing_kernel(votes_ref, bias_ref, out_ref, *,
                    routings, sigmoid_routing, final_squash, eps):
    votes = votes_ref[...]                       # (Co, Ao, Ci, ts)  f32
    bias = bias_ref[...]                         # (Co, Ao, 1)       f32
    co, ao, ci, ts = votes.shape

    def squash(pre):
        n2 = jnp.sum(pre * pre, axis=1, keepdims=True)           # (Co, 1, ts)
        # approx reciprocal -> EUP slot, frees the saturated VALU slot.
        inv = pl.reciprocal((1.0 + n2) * (jnp.sqrt(n2) + eps), approx=True)
        return pre * (n2 * inv)

    # Iteration 0 specialization: logits == 0, so the routing weights are a
    # compile-time constant (sigmoid(0)=0.5, softmax(0)=1/Co) -> a scaled sum
    # over the input capsules.  With routings == 1 (the EncoderCaps default)
    # the whole routing collapses to scaled-sum + bias + squash.
    r0 = 0.5 if sigmoid_routing else 1.0 / co
    preact = r0 * jnp.sum(votes, axis=2) + bias                  # (Co, Ao, ts)
    act = squash(preact) if (final_squash or routings > 1) else preact

    if routings > 1:
        bias_b = jnp.broadcast_to(bias, (co, ao, ts))            # hoisted
        logits = jnp.zeros((co, 1, ci, ts), jnp.float32)
        for it in range(1, routings):                            # static unroll
            dist = jnp.sum(votes * act[:, :, None, :], axis=1, keepdims=True)
            logits = logits + dist                               # (Co,1,Ci,ts)
            if sigmoid_routing:
                route = jax.nn.sigmoid(logits)
            else:
                route = jax.nn.softmax(logits, axis=0)           # over Co
            preact = jnp.sum(route * votes, axis=2) + bias_b
            act = (squash(preact) if (final_squash or it < routings - 1)
                   else preact)

    out_ref[...] = act.astype(out_ref.dtype)


def _pick_spatial_tile(s, rows, batch):
    """Lane-dense spatial tile (multiple of 128 dividing s): ~2 MiB of f32
    votes per block, and >= 2 grid steps when the batch alone can't provide
    them (so v7x's second TensorCore gets work)."""
    if s % 128 != 0:
        return s                              # single full-S block
    budget_elems = 512 * 1024                 # ~2 MiB f32 per votes block
    max_tile = max(128, min(s, (budget_elems // max(rows, 1)) // 128 * 128))
    min_steps = 2 if batch < 2 else 1
    return _largest_div_tile(s, max_tile, min_steps)


def _pallas_routing(votes, bias, *, routings, sigmoid_routing, final_squash,
                    eps=1e-7):
    """votes: (Co, Ao, B, Ci, S) f32, bias: (Co, Ao) -> act (B, Co, Ao, S)."""
    Co, Ao, B, Ci, S = votes.shape
    rows = Co * Ao * Ci
    s_run = S
    if S % 128 != 0 and rows * S > 1024 * 1024:
        # S not tileable at 128 granularity and a full-S block would be too
        # big: pad S (padded tail is sliced off below).
        s_run = pl.cdiv(S, 128) * 128
        votes = jnp.pad(votes, ((0, 0),) * 4 + ((0, s_run - S),))

    bias_r = bias.reshape(Co, Ao, 1).astype(jnp.float32)
    ts = _pick_spatial_tile(s_run, rows, B)
    kernel = partial(_routing_kernel, routings=routings,
                     sigmoid_routing=sigmoid_routing,
                     final_squash=final_squash, eps=eps)
    out = pl.pallas_call(
        kernel,
        out_shape=jax.ShapeDtypeStruct((B, Co, Ao, s_run), jnp.float32),
        grid_spec=pltpu.PrefetchScalarGridSpec(
            num_scalar_prefetch=0,
            grid=(B, s_run // ts),
            in_specs=[
                pl.BlockSpec((Co, Ao, None, Ci, ts),
                             lambda b, s: (0, 0, b, 0, s)),
                pl.BlockSpec((Co, Ao, 1), lambda b, s: (0, 0, 0)),
            ],
            out_specs=pl.BlockSpec((None, Co, Ao, ts),
                                   lambda b, s: (b, 0, 0, s)),
        ),
        compiler_params=pltpu.CompilerParams(
            dimension_semantics=("parallel", "parallel"),
            vmem_limit_bytes=32 * 1024 * 1024),
    )(votes, bias_r)
    return out if s_run == S else out[..., :S]


# ---------------------------------------------------------------------------
# ConvCapsuleLayer3D / DoubleCaps / EncoderCaps forward (wrapper plumbing)
# ---------------------------------------------------------------------------
def _im2col_3d_kmajor(x, kernel, stride, padding):
    """x: (N, C, D, H, W) -> K-major patch matrix (C*k^3, N*Do*Ho*Wo) in bf16,
    plus (Do, Ho, Wo).

    Only the (small, pre-expansion) activation is transposed channel-major;
    the k^3-expanded matrix is produced directly in the layout the GEMM wants,
    so no transpose of the big intermediate is needed.
    """
    N, C, D, H, W = x.shape
    k, s, p = kernel, stride, padding
    xt = jnp.transpose(x.astype(jnp.bfloat16), (1, 0, 2, 3, 4))  # (C,N,D,H,W)
    xp = jnp.pad(xt, ((0, 0), (0, 0), (p, p), (p, p), (p, p)))
    do = (D + 2 * p - k) // s + 1
    ho = (H + 2 * p - k) // s + 1
    wo = (W + 2 * p - k) // s + 1
    cols = []
    for kz in range(k):
        for ky in range(k):
            for kx in range(k):
                cols.append(xp[:, :, kz:kz + s * do:s,
                               ky:ky + s * ho:s,
                               kx:kx + s * wo:s])
    patches = jnp.stack(cols, axis=1)             # (C, k^3, N, do, ho, wo)
    # TODO(synk): for the stride-1 layer the 27x im2col expansion could be
    # eliminated by folding the k^3 taps into the GEMM grid as an 'arbitrary'
    # reduction axis reading shifted windows of the padded activation.
    return patches.reshape(C * k ** 3, N * do * ho * wo), (do, ho, wo)


def conv_capsule_layer_3d(x, conv_w, routing_b, *, kernel, stride, padding,
                          routings, sigmoid_routing=True, final_squash=True,
                          constrained=True, transposed=False):
    """Pallas ConvCapsuleLayer3D.

    x:         (B, Ci, Ai, D, H, W)
    conv_w:    (Co*Ao, Ai, k, k, k)   shared (constrained) conv weight
    routing_b: (Co, Ao)               routing bias (init 0.1 in the original)
    returns    (B, Co, Ao, Do, Ho, Wo)
    """
    # TODO(synk): transposed (ConvTranspose3d), constrained=False (per-input-
    # capsule weights) and use_switchnorm variants are not implemented.
    assert constrained and not transposed
    B, Ci, Ai, D, H, W = x.shape
    Co, Ao = routing_b.shape
    assert conv_w.shape[0] == Co * Ao

    # 1) metadata-only fold of input capsules into the batch + K-major im2col.
    xb = x.reshape(B * Ci, Ai, D, H, W)
    patches, (do, ho, wo) = _im2col_3d_kmajor(xb, kernel, stride, padding)
    S = do * ho * wo

    # 2) shared conv as one MXU GEMM; output is already in the routing layout.
    wmat = conv_w.reshape(Co * Ao, Ai * kernel ** 3).astype(jnp.bfloat16)
    votes2d = _pallas_gemm(wmat, patches)             # (Co*Ao, B*Ci*S)  f32
    votes = votes2d.reshape(Co, Ao, B, Ci, S)         # free reshape, no copy

    # 3) fused dynamic routing + squash -> (B, Co, Ao, S).
    act = _pallas_routing(votes, routing_b, routings=routings,
                          sigmoid_routing=sigmoid_routing,
                          final_squash=final_squash)
    return act.reshape(B, Co, Ao, do, ho, wo)


def encoder_caps_forward(x, params, *, kernel_size, strides=(2, 1),
                         routings=1, sigmoid_routing=True):
    """EncoderCaps.forward == DoubleCaps: two ConvCapsuleLayer3D layers,
    first (optionally) stride 2, second stride 1."""
    pad = (kernel_size - 1) // 2      # calc_same_padding, non-transposed
    for i, stride in enumerate(strides):
        x = conv_capsule_layer_3d(
            x, params[f"conv_w{i}"], params[f"routing_b{i}"],
            kernel=kernel_size, stride=stride, padding=pad,
            routings=routings, sigmoid_routing=sigmoid_routing)
    return x


# ---------------------------------------------------------------------------
# Pure-JAX reference (lax.conv + explicit routing) for the correctness check
# ---------------------------------------------------------------------------
def _reference_encoder_caps(x, params, *, kernel_size, strides=(2, 1),
                            routings=1, sigmoid_routing=True, eps=1e-7):
    pad = (kernel_size - 1) // 2
    for i, stride in enumerate(strides):
        conv_w = params[f"conv_w{i}"]
        b = params[f"routing_b{i}"]
        Co, Ao = b.shape
        B, Ci, Ai, D, H, W = x.shape
        xb = x.reshape(B * Ci, Ai, D, H, W)
        conv = jax.lax.conv_general_dilated(
            xb, conv_w, window_strides=(stride,) * 3,
            padding=[(pad, pad)] * 3,
            dimension_numbers=("NCDHW", "OIDHW", "NCDHW"),
            precision=jax.lax.Precision.HIGHEST)
        _, _, do, ho, wo = conv.shape
        votes = conv.reshape(B, Ci, Co, Ao, do, ho, wo)
        logits = jnp.zeros((B, Ci, Co, 1, do, ho, wo), jnp.float32)
        bias = b.reshape(1, Co, Ao, 1, 1, 1)
        act = None
        for it in range(routings):
            route = (jax.nn.sigmoid(logits) if sigmoid_routing
                     else jax.nn.softmax(logits, axis=2))
            preact = jnp.sum(route * votes, axis=1) + bias
            n2 = jnp.sum(preact * preact, axis=2, keepdims=True)
            nrm = jnp.sqrt(n2)
            act = preact * (n2 / ((1.0 + n2) * (nrm + eps)))
            if it < routings - 1:
                dist = jnp.sum(votes * act[:, None], axis=3, keepdims=True)
                logits = logits + dist
        x = act
    return x


if __name__ == "__main__":
    # Small, module-consistent shapes:
    #   kernel_size=3, input_num_capsule=1, input_num_atoms=8,
    #   num_capsule=4,  num_atoms=8, strides=[2, 1], routings=1,
    #   input volume 16^3 -> output volume 8^3.
    B, Ci, Ai = 1, 1, 8
    Co, Ao = 4, 8
    D = H = W = 16
    kernel_size = 3

    key = jax.random.PRNGKey(0)
    kx, kw0, kw1 = jax.random.split(key, 3)
    x = jax.random.normal(kx, (B, Ci, Ai, D, H, W), dtype=jnp.float32)
    params = {
        "conv_w0": 0.1 * jax.random.normal(
            kw0, (Co * Ao, Ai) + (kernel_size,) * 3, dtype=jnp.float32),
        "routing_b0": jnp.full((Co, Ao), 0.1, dtype=jnp.float32),
        "conv_w1": 0.1 * jax.random.normal(
            kw1, (Co * Ao, Ao) + (kernel_size,) * 3, dtype=jnp.float32),
        "routing_b1": jnp.full((Co, Ao), 0.1, dtype=jnp.float32),
    }

    fwd = jax.jit(partial(encoder_caps_forward, kernel_size=kernel_size,
                          strides=(2, 1), routings=1, sigmoid_routing=True))
    out = jax.block_until_ready(fwd(x, params))

    assert out.shape == (B, Co, Ao, D // 2, H // 2, W // 2), out.shape
    assert out.dtype == jnp.float32
    assert bool(jnp.all(jnp.isfinite(out)))

    ref = _reference_encoder_caps(x, params, kernel_size=kernel_size,
                                  strides=(2, 1), routings=1,
                                  sigmoid_routing=True)
    assert bool(jnp.allclose(out, ref, rtol=2e-2, atol=2e-2)), (
        float(jnp.max(jnp.abs(out - ref))))

    print("KERNEL_OK")
</pallas_src>

<mosaic_0001>
module attributes {stable_mosaic.version = 11 : i64} {
  func.func @_gemm_kernel(%arg0: i32, %arg1: memref<32x216xbf16, #tpu.memory_space<vmem>>, %arg2: memref<216x256xbf16, #tpu.memory_space<vmem>>, %arg3: memref<32x256xf32, #tpu.memory_space<vmem>>) attributes {dimension_semantics = [#tpu.dimension_semantics<parallel>], iteration_bounds = array<i64: 2>, scalar_prefetch = 0 : i64, scratch_operands = 0 : i64, tpu.core_type = #tpu.core_type<tc>, window_params = [{pipeline_mode = #tpu.pipeline_mode<synchronous>, transform_indices = @transform_0, window_bounds = array<i64: 32, 216>}, {transform_indices = @transform_1, window_bounds = array<i64: 216, 256>}, {transform_indices = @transform_2, window_bounds = array<i64: 32, 256>}]} {
    %c0 = arith.constant 0 : index
    %c0_0 = arith.constant 0 : index
    %0 = vector.load %arg1[%c0, %c0_0] : memref<32x216xbf16, #tpu.memory_space<vmem>>, vector<32x216xbf16>
    %c0_1 = arith.constant 0 : index
    %c0_2 = arith.constant 0 : index
    %1 = vector.load %arg2[%c0_1, %c0_2] : memref<216x256xbf16, #tpu.memory_space<vmem>>, vector<216x256xbf16>
    %cst = arith.constant dense<0.000000e+00> : vector<32x256xf32>
    %2 = tpu.matmul %0, %1, %cst {dimension_numbers = #tpu.dot_dimension_numbers<[1], [0], [0], [1], [0, 0, 1, 1], [], []>} : vector<32x216xbf16>, vector<216x256xbf16>, vector<32x256xf32> -> vector<32x256xf32>
    %c0_3 = arith.constant 0 : index
    %c0_4 = arith.constant 0 : index
    %3 = vector.load %arg3[%c0_3, %c0_4] : memref<32x256xf32, #tpu.memory_space<vmem>>, vector<32x256xf32>
    tpu.vector_store %arg3[%c0_3, %c0_4], %2 {strides = array<i32>} : memref<32x256xf32, #tpu.memory_space<vmem>>, vector<32x256xf32>,
    return
  }
  func.func @transform_0(%arg0: i32) -> (i32, i32) {
    %c0_i32 = arith.constant 0 : i32
    %c0_i32_0 = arith.constant 0 : i32
    %c0_i32_1 = arith.constant 0 : i32
    return %c0_i32, %c0_i32_0 : i32, i32
  }
  func.func @transform_1(%arg0: i32) -> (i32, i32) {
    %c0_i32 = arith.constant 0 : i32
    %c0_i32_0 = arith.constant 0 : i32
    return %c0_i32, %arg0 : i32, i32
  }
  func.func @transform_2(%arg0: i32) -> (i32, i32) {
    %c0_i32 = arith.constant 0 : i32
    %c0_i32_0 = arith.constant 0 : i32
    return %c0_i32, %arg0 : i32, i32
  }
}

module attributes {stable_mosaic.version = 11 : i64} {
  func.func @_routing_kernel(%arg0: i32, %arg1: i32, %arg2: memref<4x8x1x1x256xf32, #tpu.memory_space<vmem>>, %arg3: memref<4x8x1xf32, #tpu.memory_space<vmem>>, %arg4: memref<1x4x8x256xf32, #tpu.memory_space<vmem>>) attributes {dimension_semantics = [#tpu.dimension_semantics<parallel>, #tpu.dimension_semantics<parallel>], iteration_bounds = array<i64: 1, 2>, scalar_prefetch = 0 : i64, scratch_operands = 0 : i64, tpu.core_type = #tpu.core_type<tc>, window_params = [{transform_indices = @transform_0, window_bounds = array<i64: 4, 8, 1, 1, 256>}, {pipeline_mode = #tpu.pipeline_mode<synchronous>, transform_indices = @transform_1, window_bounds = array<i64: 4, 8, 1>}, {transform_indices = @transform_2, window_bounds = array<i64: 1, 4, 8, 256>}]} {
    %c0 = arith.constant 0 : index
    %c0_0 = arith.constant 0 : index
    %c0_1 = arith.constant 0 : index
    %c0_2 = arith.constant 0 : index
    %c0_3 = arith.constant 0 : index
    %0 = vector.load %arg2[%c0, %c0_0, %c0_1, %c0_2, %c0_3] : memref<4x8x1x1x256xf32, #tpu.memory_space<vmem>>, vector<4x8x1x1x256xf32>
    %1 = vector.shape_cast %0 : vector<4x8x1x1x256xf32> to vector<4x8x1x256xf32>
    %c0_4 = arith.constant 0 : index
    %c0_5 = arith.constant 0 : index
    %c0_6 = arith.constant 0 : index
    %2 = vector.load %arg3[%c0_4, %c0_5, %c0_6] : memref<4x8x1xf32, #tpu.memory_space<vmem>>, vector<4x8x1xf32>
    %cst = arith.constant dense<0.000000e+00> : vector<4x8x256xf32>
    %3 = vector.multi_reduction <add>, %1, %cst [2] : vector<4x8x1x256xf32> to vector<4x8x256xf32>
    %cst_7 = arith.constant 5.000000e-01 : f32
    %4 = vector.broadcast %cst_7 : f32 to vector<4x8x256xf32>
    %5 = arith.mulf %4, %3 : vector<4x8x256xf32>
    %6 = vector.broadcast %2 : vector<4x8x1xf32> to vector<4x8x256xf32>
    %7 = arith.addf %5, %6 : vector<4x8x256xf32>
    %8 = arith.mulf %7, %7 : vector<4x8x256xf32>
    %cst_8 = arith.constant dense<0.000000e+00> : vector<4x256xf32>
    %9 = vector.multi_reduction <add>, %8, %cst_8 [1] : vector<4x8x256xf32> to vector<4x256xf32>
    %10 = vector.shape_cast %9 : vector<4x256xf32> to vector<4x1x256xf32>
    %cst_9 = arith.constant 1.000000e+00 : f32
    %11 = vector.broadcast %cst_9 : f32 to vector<4x1x256xf32>
    %12 = arith.addf %11, %10 : vector<4x1x256xf32>
    %13 = math.sqrt %10 : vector<4x1x256xf32>
    %cst_10 = arith.constant 1.000000e-07 : f32
    %14 = vector.broadcast %cst_10 : f32 to vector<4x1x256xf32>
    %15 = arith.addf %13, %14 : vector<4x1x256xf32>
    %16 = arith.mulf %12, %15 : vector<4x1x256xf32>
    %17 = tpu.reciprocal %16 {approx = true} : vector<4x1x256xf32> -> vector<4x1x256xf32>
    %18 = arith.mulf %10, %17 : vector<4x1x256xf32>
    %19 = vector.broadcast %18 : vector<4x1x256xf32> to vector<4x8x256xf32>
    %20 = arith.mulf %7, %19 : vector<4x8x256xf32>
    %c0_11 = arith.constant 0 : index
    %c0_12 = arith.constant 0 : index
    %c0_13 = arith.constant 0 : index
    %c0_14 = arith.constant 0 : index
    %21 = vector.load %arg4[%c0_11, %c0_12, %c0_13, %c0_14] : memref<1x4x8x256xf32, #tpu.memory_space<vmem>>, vector<1x4x8x256xf32>
    %22 = vector.shape_cast %21 : vector<1x4x8x256xf32> to vector<4x8x256xf32>
    %23 = vector.shape_cast %20 : vector<4x8x256xf32> to vector<1x4x8x256xf32>
    tpu.vector_store %arg4[%c0_11, %c0_12, %c0_13, %c0_14], %23 {strides = array<i32>} : memref<1x4x8x256xf32, #tpu.memory_space<vmem>>, vector<1x4x8x256xf32>,
    return
  }
  func.func @transform_0(%arg0: i32, %arg1: i32) -> (i32, i32, i32, i32, i32) {
    %c0_i32 = arith.constant 0 : i32
    %c0_i32_0 = arith.constant 0 : i32
    %c0_i32_1 = arith.constant 0 : i32
    %c0_i32_2 = arith.constant 0 : i32
    return %c0_i32, %c0_i32_0, %arg0, %c0_i32_1, %arg1 : i32, i32, i32, i32, i32
  }
  func.func @transform_1(%arg0: i32, %arg1: i32) -> (i32, i32, i32) {
    %c0_i32 = arith.constant 0 : i32
    %c0_i32_0 = arith.constant 0 : i32
    %c0_i32_1 = arith.constant 0 : i32
    %c0_i32_2 = arith.constant 0 : i32
    return %c0_i32, %c0_i32_0, %c0_i32_1 : i32, i32, i32
  }
  func.func @transform_2(%arg0: i32, %arg1: i32) -> (i32, i32, i32, i32) {
    %c0_i32 = arith.constant 0 : i32
    %c0_i32_0 = arith.constant 0 : i32
    %c0_i32_1 = arith.constant 0 : i32
    return %arg0, %c0_i32, %c0_i32_0, %arg1 : i32, i32, i32, i32
  }
}

module attributes {stable_mosaic.version = 11 : i64} {
  func.func @_gemm_kernel(%arg0: i32, %arg1: memref<32x216xbf16, #tpu.memory_space<vmem>>, %arg2: memref<216x1024xbf16, #tpu.memory_space<vmem>>, %arg3: memref<32x1024xf32, #tpu.memory_space<vmem>>) attributes {dimension_semantics = [#tpu.dimension_semantics<parallel>], iteration_bounds = array<i64: 2>, scalar_prefetch = 0 : i64, scratch_operands = 0 : i64, tpu.core_type = #tpu.core_type<tc>, window_params = [{pipeline_mode = #tpu.pipeline_mode<synchronous>, transform_indices = @transform_0, window_bounds = array<i64: 32, 216>}, {transform_indices = @transform_1, window_bounds = array<i64: 216, 1024>}, {transform_indices = @transform_2, window_bounds = array<i64: 32, 1024>}]} {
    %c0 = arith.constant 0 : index
    %c0_0 = arith.constant 0 : index
    %0 = vector.load %arg1[%c0, %c0_0] : memref<32x216xbf16, #tpu.memory_space<vmem>>, vector<32x216xbf16>
    %c0_1 = arith.constant 0 : index
    %c0_2 = arith.constant 0 : index
    %1 = vector.load %arg2[%c0_1, %c0_2] : memref<216x1024xbf16, #tpu.memory_space<vmem>>, vector<216x1024xbf16>
    %cst = arith.constant dense<0.000000e+00> : vector<32x1024xf32>
    %2 = tpu.matmul %0, %1, %cst {dimension_numbers = #tpu.dot_dimension_numbers<[1], [0], [0], [1], [0, 0, 1, 1], [], []>} : vector<32x216xbf16>, vector<216x1024xbf16>, vector<32x1024xf32> -> vector<32x1024xf32>
    %c0_3 = arith.constant 0 : index
    %c0_4 = arith.constant 0 : index
    %3 = vector.load %arg3[%c0_3, %c0_4] : memref<32x1024xf32, #tpu.memory_space<vmem>>, vector<32x1024xf32>
    tpu.vector_store %arg3[%c0_3, %c0_4], %2 {strides = array<i32>} : memref<32x1024xf32, #tpu.memory_space<vmem>>, vector<32x1024xf32>,
    return
  }
  func.func @transform_0(%arg0: i32) -> (i32, i32) {
    %c0_i32 = arith.constant 0 : i32
    %c0_i32_0 = arith.constant 0 : i32
    %c0_i32_1 = arith.constant 0 : i32
    return %c0_i32, %c0_i32_0 : i32, i32
  }
  func.func @transform_1(%arg0: i32) -> (i32, i32) {
    %c0_i32 = arith.constant 0 : i32
    %c0_i32_0 = arith.constant 0 : i32
    return %c0_i32, %arg0 : i32, i32
  }
  func.func @transform_2(%arg0: i32) -> (i32, i32) {
    %c0_i32 = arith.constant 0 : i32
    %c0_i32_0 = arith.constant 0 : i32
    return %c0_i32, %arg0 : i32, i32
  }
}

module attributes {stable_mosaic.version = 11 : i64} {
  func.func @_routing_kernel(%arg0: i32, %arg1: i32, %arg2: memref<4x8x1x4x256xf32, #tpu.memory_space<vmem>>, %arg3: memref<4x8x1xf32, #tpu.memory_space<vmem>>, %arg4: memref<1x4x8x256xf32, #tpu.memory_space<vmem>>) attributes {dimension_semantics = [#tpu.dimension_semantics<parallel>, #tpu.dimension_semantics<parallel>], iteration_bounds = array<i64: 1, 2>, scalar_prefetch = 0 : i64, scratch_operands = 0 : i64, tpu.core_type = #tpu.core_type<tc>, window_params = [{transform_indices = @transform_0, window_bounds = array<i64: 4, 8, 1, 4, 256>}, {pipeline_mode = #tpu.pipeline_mode<synchronous>, transform_indices = @transform_1, window_bounds = array<i64: 4, 8, 1>}, {transform_indices = @transform_2, window_bounds = array<i64: 1, 4, 8, 256>}]} {
    %c0 = arith.constant 0 : index
    %c0_0 = arith.constant 0 : index
    %c0_1 = arith.constant 0 : index
    %c0_2 = arith.constant 0 : index
    %c0_3 = arith.constant 0 : index
    %0 = vector.load %arg2[%c0, %c0_0, %c0_1, %c0_2, %c0_3] : memref<4x8x1x4x256xf32, #tpu.memory_space<vmem>>, vector<4x8x1x4x256xf32>
    %1 = vector.shape_cast %0 : vector<4x8x1x4x256xf32> to vector<4x8x4x256xf32>
    %c0_4 = arith.constant 0 : index
    %c0_5 = arith.constant 0 : index
    %c0_6 = arith.constant 0 : index
    %2 = vector.load %arg3[%c0_4, %c0_5, %c0_6] : memref<4x8x1xf32, #tpu.memory_space<vmem>>, vector<4x8x1xf32>
    %cst = arith.constant dense<0.000000e+00> : vector<4x8x256xf32>
    %3 = vector.multi_reduction <add>, %1, %cst [2] : vector<4x8x4x256xf32> to vector<4x8x256xf32>
    %cst_7 = arith.constant 5.000000e-01 : f32
    %4 = vector.broadcast %cst_7 : f32 to vector<4x8x256xf32>
    %5 = arith.mulf %4, %3 : vector<4x8x256xf32>
    %6 = vector.broadcast %2 : vector<4x8x1xf32> to vector<4x8x256xf32>
    %7 = arith.addf %5, %6 : vector<4x8x256xf32>
    %8 = arith.mulf %7, %7 : vector<4x8x256xf32>
    %cst_8 = arith.constant dense<0.000000e+00> : vector<4x256xf32>
    %9 = vector.multi_reduction <add>, %8, %cst_8 [1] : vector<4x8x256xf32> to vector<4x256xf32>
    %10 = vector.shape_cast %9 : vector<4x256xf32> to vector<4x1x256xf32>
    %cst_9 = arith.constant 1.000000e+00 : f32
    %11 = vector.broadcast %cst_9 : f32 to vector<4x1x256xf32>
    %12 = arith.addf %11, %10 : vector<4x1x256xf32>
    %13 = math.sqrt %10 : vector<4x1x256xf32>
    %cst_10 = arith.constant 1.000000e-07 : f32
    %14 = vector.broadcast %cst_10 : f32 to vector<4x1x256xf32>
    %15 = arith.addf %13, %14 : vector<4x1x256xf32>
    %16 = arith.mulf %12, %15 : vector<4x1x256xf32>
    %17 = tpu.reciprocal %16 {approx = true} : vector<4x1x256xf32> -> vector<4x1x256xf32>
    %18 = arith.mulf %10, %17 : vector<4x1x256xf32>
    %19 = vector.broadcast %18 : vector<4x1x256xf32> to vector<4x8x256xf32>
    %20 = arith.mulf %7, %19 : vector<4x8x256xf32>
    %c0_11 = arith.constant 0 : index
    %c0_12 = arith.constant 0 : index
    %c0_13 = arith.constant 0 : index
    %c0_14 = arith.constant 0 : index
    %21 = vector.load %arg4[%c0_11, %c0_12, %c0_13, %c0_14] : memref<1x4x8x256xf32, #tpu.memory_space<vmem>>, vector<1x4x8x256xf32>
    %22 = vector.shape_cast %21 : vector<1x4x8x256xf32> to vector<4x8x256xf32>
    %23 = vector.shape_cast %20 : vector<4x8x256xf32> to vector<1x4x8x256xf32>
    tpu.vector_store %arg4[%c0_11, %c0_12, %c0_13, %c0_14], %23 {strides = array<i32>} : memref<1x4x8x256xf32, #tpu.memory_space<vmem>>, vector<1x4x8x256xf32>,
    return
  }
  func.func @transform_0(%arg0: i32, %arg1: i32) -> (i32, i32, i32, i32, i32) {
    %c0_i32 = arith.constant 0 : i32
    %c0_i32_0 = arith.constant 0 : i32
    %c0_i32_1 = arith.constant 0 : i32
    %c0_i32_2 = arith.constant 0 : i32
    return %c0_i32, %c0_i32_0, %arg0, %c0_i32_1, %arg1 : i32, i32, i32, i32, i32
  }
  func.func @transform_1(%arg0: i32, %arg1: i32) -> (i32, i32, i32) {
    %c0_i32 = arith.constant 0 : i32
    %c0_i32_0 = arith.constant 0 : i32
    %c0_i32_1 = arith.constant 0 : i32
    %c0_i32_2 = arith.constant 0 : i32
    return %c0_i32, %c0_i32_0, %c0_i32_1 : i32, i32, i32
  }
  func.func @transform_2(%arg0: i32, %arg1: i32) -> (i32, i32, i32, i32) {
    %c0_i32 = arith.constant 0 : i32
    %c0_i32_0 = arith.constant 0 : i32
    %c0_i32_1 = arith.constant 0 : i32
    return %arg0, %c0_i32, %c0_i32_0, %arg1 : i32, i32, i32, i32
  }
}

</mosaic_0001>

<llo_original>
// kernel: encoder_caps_forward.5
$region0: #{encoder_caps_forward.5}
  #allocation0 [shape = 'u32[]', space=smem, size = 0x4, offset = 0x4, fixed_abs, tag = 'smem constant byte address 0x4 - core index']
  #allocation1 [shape = 'u32[144,128]{1,0:T(1,128)}', space=vmem, size = 0x12000, scoped, tag = 'internal scratch']
  %s0 = inlined_call_operand.vmem [shape: f32[4,8,1,1,512], index: 0, kind: input, shape index: {}]
  %s1 = inlined_call_operand.vmem [shape: f32[4,8,1], index: 1, kind: input, shape index: {}]
  %s2 = inlined_call_operand.vmem [shape: f32[1,4,8,512], index: 2, kind: output, shape index: {}]
  %s3 = sld [smem:[#allocation0]]
  $region101: #{encoder_caps_forward.5} parent=0
    _
  %s5 = ssub.s32 1, %s3
  %s6 = scalar_select 0, %s5, %s3
  $region1: #{encoder_caps_forward.5} parent=0
    #allocation2 [shape = 'u8[65536]{0}', space=vmem, size = 0x10000, scoped, tag = 'input window, operand 0']
    #allocation3 [shape = 'u8[65536]{0}', space=vmem, size = 0x10000, scoped, tag = 'output window, operand 0']
    loop: start=0, step=1, limit=4
    $region2: #{encoder_caps_forward.5} parent=1 // loop_pre_header
      _
    $region3: #{encoder_caps_forward.5} parent=1 // loop_header
      %s8 = sphi 0, %s12
      %p9 = scmp.ge.s32.totalorder %s8, 4
      %s15 = sphi 0, %s27
      %s16 = sphi 0, %s23
      %s17 = sphi 0, %s15
      %s18 = sphi 0, %s16
      %s19 = sphi 0, %s17
      %s20 = sphi 0, %s18
      %s32 = sphi 0, %s34
      %s35 = sphi 0, %s32
      %s36 = sphi 0, %s35
      %s52 = sphi 0, %s36
      %s56 = sphi 0, %s56
      %s58 = sphi 0, %s56
      %s59 = sphi 0, %s58
      %s73 = sphi 0, %s59
      %s81 = sphi 0, %s83
      %s84 = sphi 0, %s81
      %s85 = sphi 0, %s84
      %s101 = sphi 0, %s85
    $region4: #{encoder_caps_forward.5} parent=1 // loop_header_branch
      %11 = sbr.rel (%p9) target = $region8
    $region5: #{encoder_caps_forward.5} parent=1 // loop_body
      %s13 = ssub.s32 %s8, 1
      %s14 = ssub.s32 %s8, 2
      %s21 = sadd.s32 1, %s16
      %p22 = scmp.ge.s32.totalorder %s21, 2
      %s23 = scalar_select %p22, 0, %s21
      %s24 = sadd.s32 1, %s15
      %s25 = scalar_select %p22, %s24, %s15
      %p26 = scmp.ge.s32.totalorder %s25, 1
      %s27 = scalar_select %p26, 0, %s25
      %s28 = ssub.s32 %s15, %s27
      %s29 = ssub.s32 %s16, %s23
      %s30 = sor.u32 %s28, %s29
      %p31 = scmp.eq.s32.totalorder %s30, 0
      %s33 = sadd.s32 %s32, 1
      %s34 = scalar_select %p31, %s32, %s33
      %p37 = pneg %p31
      %p38 = scmp.eq.s32.totalorder %s8, 1
      %p39 = por %p37, %p38
      %p40 = scmp.ne.s32.totalorder %s32, %s35
      %p41 = scmp.eq.s32.totalorder %s8, 0
      %p42 = por %p40, %p41
      %p43 = scmp.ne.s32.totalorder %s32, %s35
      %p44 = scmp.eq.s32.totalorder %s13, 1
      %p45 = por %p43, %p44
      %p46 = scmp.ne.s32.totalorder %s35, %s36
      %p47 = scmp.eq.s32.totalorder %s13, 0
      %p48 = por %p46, %p47
      %p49 = scmp.ne.s32.totalorder %s35, %s36
      %p50 = scmp.eq.s32.totalorder %s14, 1
      %p51 = por %p49, %p50
      %p53 = scmp.ne.s32.totalorder %s36, %s52
      %p54 = scmp.eq.s32.totalorder %s14, 0
      %p55 = por %p53, %p54
      %s57 = sadd.s32 %s56, 1
      %p60 = scmp.eq.s32.totalorder %s8, 1
      %p61 = scmp.ne.s32.totalorder %s56, %s58
      %p62 = scmp.eq.s32.totalorder %s8, 0
      %p63 = por %p61, %p62
      %p64 = scmp.ne.s32.totalorder %s56, %s58
      %p65 = scmp.eq.s32.totalorder %s13, 1
      %p66 = por %p64, %p65
      %p67 = scmp.ne.s32.totalorder %s58, %s59
      %p68 = scmp.eq.s32.totalorder %s13, 0
      %p69 = por %p67, %p68
      %p70 = scmp.ne.s32.totalorder %s58, %s59
      %p71 = scmp.eq.s32.totalorder %s14, 1
      %p72 = por %p70, %p71
      %p74 = scmp.ne.s32.totalorder %s59, %s73
      %p75 = scmp.eq.s32.totalorder %s14, 0
      %p76 = por %p74, %p75
      %s77 = ssub.s32 %s15, %s27
      %s78 = ssub.s32 %s16, %s23
      %s79 = sor.u32 %s77, %s78
      %p80 = scmp.eq.s32.totalorder %s79, 0
      %s82 = sadd.s32 %s81, 1
      %s83 = scalar_select %p80, %s81, %s82
      %p86 = pneg %p80
      %p87 = scmp.eq.s32.totalorder %s8, 1
      %p88 = por %p86, %p87
      %p89 = scmp.ne.s32.totalorder %s81, %s84
      %p90 = scmp.eq.s32.totalorder %s8, 0
      %p91 = por %p89, %p90
      %p92 = scmp.ne.s32.totalorder %s81, %s84
      %p93 = scmp.eq.s32.totalorder %s13, 1
      %p94 = por %p92, %p93
      %p95 = scmp.ne.s32.totalorder %s84, %s85
      %p96 = scmp.eq.s32.totalorder %s13, 0
      %p97 = por %p95, %p96
      %p98 = scmp.ne.s32.totalorder %s84, %s85
      %p99 = scmp.eq.s32.totalorder %s14, 1
      %p100 = por %p98, %p99
      %p102 = scmp.ne.s32.totalorder %s85, %s101
      %p103 = scmp.eq.s32.totalorder %s14, 0
      %p104 = por %p102, %p103
      %p105 = scmp.le.s32.totalorder 1, %s8
      %p106 = scmp.lt.s32.totalorder %s8, 3
      %p107 = pnand %p105, %p106
      %p108 = pneg %p107
      // Predicated region
      $region9: #{encoder_caps_forward.5} parent=5 // pred_check
        _
      $region10: #{encoder_caps_forward.5} parent=5 // pred_check_branch
        %110 = sbr.rel (%p107) target = $region12
      $region11: #{encoder_caps_forward.5} parent=5 // pred_region
        %s111 = ssub.s32 %s8, 1
        // Predicated region
        $region13: #{encoder_caps_forward.5} parent=11 // pred_check
          %p112 = pneg %p69
        $region14: #{encoder_caps_forward.5} parent=11 // pred_check_branch
          %114 = sbr.rel (%p112) target = $region16
        $region15: #{encoder_caps_forward.5} parent=11 // pred_region
          _
        $region16: #{encoder_caps_forward.5} parent=11 // pred_fallthru
          _
      $region12: #{encoder_caps_forward.5} parent=5 // pred_fallthru
        _
      %p115 = scmp.lt.s32.totalorder %s8, 2
      // Predicated region
      $region17: #{encoder_caps_forward.5} parent=5 // pred_check
        %p116 = pneg %p115
      $region18: #{encoder_caps_forward.5} parent=5 // pred_check_branch
        %118 = sbr.rel (%p116) target = $region20
      $region19: #{encoder_caps_forward.5} parent=5 // pred_region
        // Predicated region
        $region21: #{encoder_caps_forward.5} parent=19 // pred_check
          %p119 = pneg %p42
        $region22: #{encoder_caps_forward.5} parent=19 // pred_check_branch
          %121 = sbr.rel (%p119) target = $region24
        $region23: #{encoder_caps_forward.5} parent=19 // pred_region
          %s122 = sand.u32 %s32, 1
          %s123 = sand.u32 %s32, 1
          %s124 = smul.addr %s123, 64
          %s125 = scalar_lea.vmem [#allocation2], %s124
          %s126 = smul.u32 2, %s16
          %s127 = smul.addr %s15, 4
          %s128 = sadd.s32 %s126, %s127
          %s129 = scalar_lea.vmem %s0, %s128
          // Predicated region
          $region25: #{encoder_caps_forward.5} parent=23 // pred_check
            _
          $region26: #{encoder_caps_forward.5} parent=23 // pred_check_branch
            %131 = sbr.rel (0) target = $region28
          $region27: #{encoder_caps_forward.5} parent=23 // pred_region
            // Predicated region
            $region29: #{encoder_caps_forward.5} parent=27 // pred_check
              _
            $region30: #{encoder_caps_forward.5} parent=27 // pred_check_branch
              %133 = sbr.rel target = $region32
            $region31: #{encoder_caps_forward.5} parent=27 // pred_region
              // Predicated region
              $region44: #{encoder_caps_forward.5} parent=31 // pred_check
                _
              $region45: #{encoder_caps_forward.5} parent=31 // pred_check_branch
                %210 = sbr.rel (0) target = $region47
              $region46: #{encoder_caps_forward.5} parent=31 // pred_region
                loop: start=0, step=1, limit=1
                $region48: #{encoder_caps_forward.5} parent=46 // loop_pre_header
                  _
                $region49: #{encoder_caps_forward.5} parent=46 // loop_header
                  %s212 = sphi 0, %s216
                  %p213 = scmp.ge.s32.totalorder %s212, 1
                  %s217 = sphi %s129, %s129
                  %s218 = sphi %s125, %s125
                $region50: #{encoder_caps_forward.5} parent=46 // loop_header_branch
                  %215 = sbr.rel (%p213) target = $region54
                $region51: #{encoder_caps_forward.5} parent=46 // loop_body
                  _
                $region52: #{encoder_caps_forward.5} parent=46 // loop_footer
                  %s216 = sadd.s32 1, %s212
                $region53: #{encoder_caps_forward.5} parent=46 // loop_footer_branch
                  %211 = sbr.rel target = $region49
                $region54: #{encoder_caps_forward.5} parent=46 // loop_exit
                  _
                loop: start=0, step=1, limit=1
                $region55: #{encoder_caps_forward.5} parent=46 // loop_pre_header
                  _
                $region56: #{encoder_caps_forward.5} parent=46 // loop_header
                  %s221 = sphi 0, %s225
                  %p222 = scmp.ge.s32.totalorder %s221, 1
                  %s226 = sphi %s129, %s129
                  %s227 = sphi %s125, %s125
                $region57: #{encoder_caps_forward.5} parent=46 // loop_header_branch
                  %224 = sbr.rel (%p222) target = $region61
                $region58: #{encoder_caps_forward.5} parent=46 // loop_body
                  %v228 = vld [vmem:[%s226] sm:$0x3]
                  %229 = vst [vmem:[%s227] sm:$0x3] %v228
                  %v230 = vld [vmem:[%s226 + $0x4] sm:$0x3]
                  %231 = vst [vmem:[%s227 + $0x2] sm:$0x3] %v230
                  %v232 = vld [vmem:[%s226 + $0x8] sm:$0x3]
                  %233 = vst [vmem:[%s227 + $0x4] sm:$0x3] %v232
                  %v234 = vld [vmem:[%s226 + $0xc] sm:$0x3]
                  %235 = vst [vmem:[%s227 + $0x6] sm:$0x3] %v234
                  %v236 = vld [vmem:[%s226 + $0x10] sm:$0x3]
                  %237 = vst [vmem:[%s227 + $0x8] sm:$0x3] %v236
                  %v238 = vld [vmem:[%s226 + $0x14] sm:$0x3]
                  %239 = vst [vmem:[%s227 + $0xa] sm:$0x3] %v238
                  %v240 = vld [vmem:[%s226 + $0x18] sm:$0x3]
                  %241 = vst [vmem:[%s227 + $0xc] sm:$0x3] %v240
                  %v242 = vld [vmem:[%s226 + $0x1c] sm:$0x3]
                  %243 = vst [vmem:[%s227 + $0xe] sm:$0x3] %v242
                  %v244 = vld [vmem:[%s226 + $0x20] sm:$0x3]
                  %245 = vst [vmem:[%s227 + $0x10] sm:$0x3] %v244
                  %v246 = vld [vmem:[%s226 + $0x24] sm:$0x3]
                  %247 = vst [vmem:[%s227 + $0x12] sm:$0x3] %v246
                  %v248 = vld [vmem:[%s226 + $0x28] sm:$0x3]
                  %249 = vst [vmem:[%s227 + $0x14] sm:$0x3] %v248
                  %v250 = vld [vmem:[%s226 + $0x2c] sm:$0x3]
                  %251 = vst [vmem:[%s227 + $0x16] sm:$0x3] %v250
                  %v252 = vld [vmem:[%s226 + $0x30] sm:$0x3]
                  %253 = vst [vmem:[%s227 + $0x18] sm:$0x3] %v252
                  %v254 = vld [vmem:[%s226 + $0x34] sm:$0x3]
                  %255 = vst [vmem:[%s227 + $0x1a] sm:$0x3] %v254
                  %v256 = vld [vmem:[%s226 + $0x38] sm:$0x3]
                  %257 = vst [vmem:[%s227 + $0x1c] sm:$0x3] %v256
                  %v258 = vld [vmem:[%s226 + $0x3c] sm:$0x3]
                  %259 = vst [vmem:[%s227 + $0x1e] sm:$0x3] %v258
                  %v260 = vld [vmem:[%s226 + $0x40] sm:$0x3]
                  %261 = vst [vmem:[%s227 + $0x20] sm:$0x3] %v260
                  %v262 = vld [vmem:[%s226 + $0x44] sm:$0x3]
                  %263 = vst [vmem:[%s227 + $0x22] sm:$0x3] %v262
                  %v264 = vld [vmem:[%s226 + $0x48] sm:$0x3]
                  %265 = vst [vmem:[%s227 + $0x24] sm:$0x3] %v264
                  %v266 = vld [vmem:[%s226 + $0x4c] sm:$0x3]
                  %267 = vst [vmem:[%s227 + $0x26] sm:$0x3] %v266
                  %v268 = vld [vmem:[%s226 + $0x50] sm:$0x3]
                  %269 = vst [vmem:[%s227 + $0x28] sm:$0x3] %v268
                  %v270 = vld [vmem:[%s226 + $0x54] sm:$0x3]
                  %271 = vst [vmem:[%s227 + $0x2a] sm:$0x3] %v270
                  %v272 = vld [vmem:[%s226 + $0x58] sm:$0x3]
                  %273 = vst [vmem:[%s227 + $0x2c] sm:$0x3] %v272
                  %v274 = vld [vmem:[%s226 + $0x5c] sm:$0x3]
                  %275 = vst [vmem:[%s227 + $0x2e] sm:$0x3] %v274
                  %v276 = vld [vmem:[%s226 + $0x60] sm:$0x3]
                  %277 = vst [vmem:[%s227 + $0x30] sm:$0x3] %v276
                  %v278 = vld [vmem:[%s226 + $0x64] sm:$0x3]
                  %279 = vst [vmem:[%s227 + $0x32] sm:$0x3] %v278
                  %v280 = vld [vmem:[%s226 + $0x68] sm:$0x3]
                  %281 = vst [vmem:[%s227 + $0x34] sm:$0x3] %v280
                  %v282 = vld [vmem:[%s226 + $0x6c] sm:$0x3]
                  %283 = vst [vmem:[%s227 + $0x36] sm:$0x3] %v282
                  %v284 = vld [vmem:[%s226 + $0x70] sm:$0x3]
                  %285 = vst [vmem:[%s227 + $0x38] sm:$0x3] %v284
                  %v286 = vld [vmem:[%s226 + $0x74] sm:$0x3]
                  %287 = vst [vmem:[%s227 + $0x3a] sm:$0x3] %v286
                  %v288 = vld [vmem:[%s226 + $0x78] sm:$0x3]
                  %289 = vst [vmem:[%s227 + $0x3c] sm:$0x3] %v288
                  %v290 = vld [vmem:[%s226 + $0x7c] sm:$0x3]
                  %291 = vst [vmem:[%s227 + $0x3e] sm:$0x3] %v290
                $region59: #{encoder_caps_forward.5} parent=46 // loop_footer
                  %s225 = sadd.s32 1, %s221
                $region60: #{encoder_caps_forward.5} parent=46 // loop_footer_branch
                  %220 = sbr.rel target = $region56
                $region61: #{encoder_caps_forward.5} parent=46 // loop_exit
                  _
              $region47: #{encoder_caps_forward.5} parent=31 // pred_fallthru
                _
            $region32: #{encoder_caps_forward.5} parent=27 // pred_fallthru
              _
            // Predicated region
            $region33: #{encoder_caps_forward.5} parent=27 // pred_check
              _
            $region34: #{encoder_caps_forward.5} parent=27 // pred_check_branch
              %135 = sbr.rel (0) target = $region36
            $region35: #{encoder_caps_forward.5} parent=27 // pred_region
              loop: start=0, step=1, limit=1
              $region37: #{encoder_caps_forward.5} parent=35 // loop_pre_header
                _
              $region38: #{encoder_caps_forward.5} parent=35 // loop_header
                %s138 = sphi 0, %s142
                %p139 = scmp.ge.s32.totalorder %s138, 1
                %s143 = sphi %s129, %s129
                %s144 = sphi %s125, %s125
              $region39: #{encoder_caps_forward.5} parent=35 // loop_header_branch
                %141 = sbr.rel (%p139) target = $region43
              $region40: #{encoder_caps_forward.5} parent=35 // loop_body
                %v145 = vld [vmem:[%s143] sm:$0x3]
                %146 = vst [vmem:[%s144] sm:$0x3] %v145
                %v147 = vld [vmem:[%s143 + $0x4] sm:$0x3]
                %148 = vst [vmem:[%s144 + $0x2] sm:$0x3] %v147
                %v149 = vld [vmem:[%s143 + $0x8] sm:$0x3]
                %150 = vst [vmem:[%s144 + $0x4] sm:$0x3] %v149
                %v151 = vld [vmem:[%s143 + $0xc] sm:$0x3]
                %152 = vst [vmem:[%s144 + $0x6] sm:$0x3] %v151
                %v153 = vld [vmem:[%s143 + $0x10] sm:$0x3]
                %154 = vst [vmem:[%s144 + $0x8] sm:$0x3] %v153
                %v155 = vld [vmem:[%s143 + $0x14] sm:$0x3]
                %156 = vst [vmem:[%s144 + $0xa] sm:$0x3] %v155
                %v157 = vld [vmem:[%s143 + $0x18] sm:$0x3]
                %158 = vst [vmem:[%s144 + $0xc] sm:$0x3] %v157
                %v159 = vld [vmem:[%s143 + $0x1c] sm:$0x3]
                %160 = vst [vmem:[%s144 + $0xe] sm:$0x3] %v159
                %v161 = vld [vmem:[%s143 + $0x20] sm:$0x3]
                %162 = vst [vmem:[%s144 + $0x10] sm:$0x3] %v161
                %v163 = vld [vmem:[%s143 + $0x24] sm:$0x3]
                %164 = vst [vmem:[%s144 + $0x12] sm:$0x3] %v163
                %v165 = vld [vmem:[%s143 + $0x28] sm:$0x3]
                %166 = vst [vmem:[%s144 + $0x14] sm:$0x3] %v165
                %v167 = vld [vmem:[%s143 + $0x2c] sm:$0x3]
                %168 = vst [vmem:[%s144 + $0x16] sm:$0x3] %v167
                %v169 = vld [vmem:[%s143 + $0x30] sm:$0x3]
                %170 = vst [vmem:[%s144 + $0x18] sm:$0x3] %v169
                %v171 = vld [vmem:[%s143 + $0x34] sm:$0x3]
                %172 = vst [vmem:[%s144 + $0x1a] sm:$0x3] %v171
                %v173 = vld [vmem:[%s143 + $0x38] sm:$0x3]
                %174 = vst [vmem:[%s144 + $0x1c] sm:$0x3] %v173
                %v175 = vld [vmem:[%s143 + $0x3c] sm:$0x3]
                %176 = vst [vmem:[%s144 + $0x1e] sm:$0x3] %v175
                %v177 = vld [vmem:[%s143 + $0x40] sm:$0x3]
                %178 = vst [vmem:[%s144 + $0x20] sm:$0x3] %v177
                %v179 = vld [vmem:[%s143 + $0x44] sm:$0x3]
                %180 = vst [vmem:[%s144 + $0x22] sm:$0x3] %v179
                %v181 = vld [vmem:[%s143 + $0x48] sm:$0x3]
                %182 = vst [vmem:[%s144 + $0x24] sm:$0x3] %v181
                %v183 = vld [vmem:[%s143 + $0x4c] sm:$0x3]
                %184 = vst [vmem:[%s144 + $0x26] sm:$0x3] %v183
                %v185 = vld [vmem:[%s143 + $0x50] sm:$0x3]
                %186 = vst [vmem:[%s144 + $0x28] sm:$0x3] %v185
                %v187 = vld [vmem:[%s143 + $0x54] sm:$0x3]
                %188 = vst [vmem:[%s144 + $0x2a] sm:$0x3] %v187
                %v189 = vld [vmem:[%s143 + $0x58] sm:$0x3]
                %190 = vst [vmem:[%s144 + $0x2c] sm:$0x3] %v189
                %v191 = vld [vmem:[%s143 + $0x5c] sm:$0x3]
                %192 = vst [vmem:[%s144 + $0x2e] sm:$0x3] %v191
                %v193 = vld [vmem:[%s143 + $0x60] sm:$0x3]
                %194 = vst [vmem:[%s144 + $0x30] sm:$0x3] %v193
                %v195 = vld [vmem:[%s143 + $0x64] sm:$0x3]
                %196 = vst [vmem:[%s144 + $0x32] sm:$0x3] %v195
                %v197 = vld [vmem:[%s143 + $0x68] sm:$0x3]
                %198 = vst [vmem:[%s144 + $0x34] sm:$0x3] %v197
                %v199 = vld [vmem:[%s143 + $0x6c] sm:$0x3]
                %200 = vst [vmem:[%s144 + $0x36] sm:$0x3] %v199
                %v201 = vld [vmem:[%s143 + $0x70] sm:$0x3]
                %202 = vst [vmem:[%s144 + $0x38] sm:$0x3] %v201
                %v203 = vld [vmem:[%s143 + $0x74] sm:$0x3]
                %204 = vst [vmem:[%s144 + $0x3a] sm:$0x3] %v203
                %v205 = vld [vmem:[%s143 + $0x78] sm:$0x3]
                %206 = vst [vmem:[%s144 + $0x3c] sm:$0x3] %v205
                %v207 = vld [vmem:[%s143 + $0x7c] sm:$0x3]
                %208 = vst [vmem:[%s144 + $0x3e] sm:$0x3] %v207
              $region41: #{encoder_caps_forward.5} parent=35 // loop_footer
                %s142 = sadd.s32 1, %s138
              $region42: #{encoder_caps_forward.5} parent=35 // loop_footer_branch
                %137 = sbr.rel target = $region38
              $region43: #{encoder_caps_forward.5} parent=35 // loop_exit
                _
            $region36: #{encoder_caps_forward.5} parent=27 // pred_fallthru
              _
          $region28: #{encoder_caps_forward.5} parent=23 // pred_fallthru
            _
          %292 = vnop
        $region24: #{encoder_caps_forward.5} parent=19 // pred_fallthru
          _
      $region20: #{encoder_caps_forward.5} parent=5 // pred_fallthru
        _
      %p293 = scmp.le.s32.totalorder 1, %s8
      %p294 = scmp.lt.s32.totalorder %s8, 3
      %p295 = pnand %p293, %p294
      %p296 = pneg %p295
      // Predicated region
      $region62: #{encoder_caps_forward.5} parent=5 // pred_check
        _
      $region63: #{encoder_caps_forward.5} parent=5 // pred_check_branch
        %298 = sbr.rel (%p295) target = $region65
      $region64: #{encoder_caps_forward.5} parent=5 // pred_region
        %s299 = ssub.s32 %s8, 1
        %s300 = sand.u32 %s35, 1
        %s301 = sand.u32 %s35, 1
        %s302 = smul.addr %s301, 64
        %s303 = scalar_lea.vmem [#allocation2], %s302
        // Predicated region
        $region66: #{encoder_caps_forward.5} parent=64 // pred_check
          %p304 = pneg %p48
        $region67: #{encoder_caps_forward.5} parent=64 // pred_check_branch
          %306 = sbr.rel (%p304) target = $region69
        $region68: #{encoder_caps_forward.5} parent=64 // pred_region
          _
        $region69: #{encoder_caps_forward.5} parent=64 // pred_fallthru
          _
        %s307 = sand.u32 %s35, 1
        %s308 = sand.u32 %s35, 1
        %s309 = smul.addr %s308, 64
        %s310 = scalar_lea.vmem [#allocation2], %s309
        %p311 = pneg %p48
        %p312 = pneg %p45
        %p313 = pneg %p69
        %p314 = pneg %p66
        %p315 = pneg %p97
        %p316 = pneg %p94
        %s317 = sand.u32 %s84, 1
        %s318 = sand.u32 %s84, 1
        %s319 = smul.addr %s318, 64
        %s320 = scalar_lea.vmem [#allocation3], %s319
        %s321 = smul.u32 2, %s18
        %s322 = smul.u32 2, %s18
        %v323 = vld [vmem:[%s303] sm:$0x3]
        %v324 = vld [vmem:[%s303 + $0x2] sm:$0x3]
        %v325 = vld [vmem:[%s303 + $0x4] sm:$0x3]
        %v326 = vld [vmem:[%s303 + $0x6] sm:$0x3]
        %v327 = vld [vmem:[%s303 + $0x8] sm:$0x3]
        %v328 = vld [vmem:[%s303 + $0xa] sm:$0x3]
        %v329 = vld [vmem:[%s303 + $0xc] sm:$0x3]
        %v330 = vld [vmem:[%s303 + $0xe] sm:$0x3]
        %v331 = vld [vmem:[%s303 + $0x10] sm:$0x3]
        %v332 = vld [vmem:[%s303 + $0x12] sm:$0x3]
        %v333 = vld [vmem:[%s303 + $0x14] sm:$0x3]
        %v334 = vld [vmem:[%s303 + $0x16] sm:$0x3]
        %v335 = vld [vmem:[%s303 + $0x18] sm:$0x3]
        %v336 = vld [vmem:[%s303 + $0x1a] sm:$0x3]
        %v337 = vld [vmem:[%s303 + $0x1c] sm:$0x3]
        %v338 = vld [vmem:[%s303 + $0x1e] sm:$0x3]
        %v339 = vld [vmem:[%s303 + $0x20] sm:$0x3]
        %v340 = vld [vmem:[%s303 + $0x22] sm:$0x3]
        %v341 = vld [vmem:[%s303 + $0x24] sm:$0x3]
        %v342 = vld [vmem:[%s303 + $0x26] sm:$0x3]
        %v343 = vld [vmem:[%s303 + $0x28] sm:$0x3]
        %v344 = vld [vmem:[%s303 + $0x2a] sm:$0x3]
        %v345 = vld [vmem:[%s303 + $0x2c] sm:$0x3]
        %v346 = vld [vmem:[%s303 + $0x2e] sm:$0x3]
        %v347 = vld [vmem:[%s303 + $0x30] sm:$0x3]
        %v348 = vld [vmem:[%s303 + $0x32] sm:$0x3]
        %v349 = vld [vmem:[%s303 + $0x34] sm:$0x3]
        %v350 = vld [vmem:[%s303 + $0x36] sm:$0x3]
        %v351 = vld [vmem:[%s303 + $0x38] sm:$0x3]
        %v352 = vld [vmem:[%s303 + $0x3a] sm:$0x3]
        %v353 = vld [vmem:[%s303 + $0x3c] sm:$0x3]
        %v354 = vld [vmem:[%s303 + $0x3e] sm:$0x3]
        %v355 = vld [vmem:[%s1] sm:$0xff]
        %v356 = vld [vmem:[%s1 + $0x8] sm:$0xff]
        %v357 = vld [vmem:[%s1 + $0x10] sm:$0xff]
        %v358 = vld [vmem:[%s1 + $0x18] sm:$0xff]
        %v359 = vadd.f32 %v323, 0.0
        %v360 = vadd.f32 %v324, 0.0
        %v361 = vadd.f32 %v325, 0.0
        %v362 = vadd.f32 %v326, 0.0
        %v363 = vadd.f32 %v327, 0.0
        %v364 = vadd.f32 %v328, 0.0
        %v365 = vadd.f32 %v329, 0.0
        %v366 = vadd.f32 %v330, 0.0
        %v367 = vadd.f32 %v331, 0.0
        %v368 = vadd.f32 %v332, 0.0
        %v369 = vadd.f32 %v333, 0.0
        %v370 = vadd.f32 %v334, 0.0
        %v371 = vadd.f32 %v335, 0.0
        %v372 = vadd.f32 %v336, 0.0
        %v373 = vadd.f32 %v337, 0.0
        %v374 = vadd.f32 %v338, 0.0
        %v375 = vadd.f32 %v339, 0.0
        %v376 = vadd.f32 %v340, 0.0
        %v377 = vadd.f32 %v341, 0.0
        %v378 = vadd.f32 %v342, 0.0
        %v379 = vadd.f32 %v343, 0.0
        %v380 = vadd.f32 %v344, 0.0
        %v381 = vadd.f32 %v345, 0.0
        %v382 = vadd.f32 %v346, 0.0
        %v383 = vadd.f32 %v347, 0.0
        %v384 = vadd.f32 %v348, 0.0
        %v385 = vadd.f32 %v349, 0.0
        %v386 = vadd.f32 %v350, 0.0
        %v387 = vadd.f32 %v351, 0.0
        %v388 = vadd.f32 %v352, 0.0
        %v389 = vadd.f32 %v353, 0.0
        %v390 = vadd.f32 %v354, 0.0
        %v391 = vmul.f32 %v359, 0.5
        %v392 = vmul.f32 %v360, 0.5
        %v393 = vmul.f32 %v361, 0.5
        %v394 = vmul.f32 %v362, 0.5
        %v395 = vmul.f32 %v363, 0.5
        %v396 = vmul.f32 %v364, 0.5
        %v397 = vmul.f32 %v365, 0.5
        %v398 = vmul.f32 %v366, 0.5
        %v399 = vmul.f32 %v367, 0.5
        %v400 = vmul.f32 %v368, 0.5
        %v401 = vmul.f32 %v369, 0.5
        %v402 = vmul.f32 %v370, 0.5
        %v403 = vmul.f32 %v371, 0.5
        %v404 = vmul.f32 %v372, 0.5
        %v405 = vmul.f32 %v373, 0.5
        %v406 = vmul.f32 %v374, 0.5
        %v407 = vmul.f32 %v375, 0.5
        %v408 = vmul.f32 %v376, 0.5
        %v409 = vmul.f32 %v377, 0.5
        %v410 = vmul.f32 %v378, 0.5
        %v411 = vmul.f32 %v379, 0.5
        %v412 = vmul.f32 %v380, 0.5
        %v413 = vmul.f32 %v381, 0.5
        %v414 = vmul.f32 %v382, 0.5
        %v415 = vmul.f32 %v383, 0.5
        %v416 = vmul.f32 %v384, 0.5
        %v417 = vmul.f32 %v385, 0.5
        %v418 = vmul.f32 %v386, 0.5
        %v419 = vmul.f32 %v387, 0.5
        %v420 = vmul.f32 %v388, 0.5
        %v421 = vmul.f32 %v389, 0.5
        %v422 = vmul.f32 %v390, 0.5
        %424 = vset.pattern.permute.xlu0 0
        %425 = vperm.xlu0 %424, %v355
        %v426 = vpop.permute.xlu0 %425
        %428 = vset.pattern.permute.xlu0 0
        %429 = vperm.xlu0 %428, %v356
        %v430 = vpop.permute.xlu0 %429
        %432 = vset.pattern.permute.xlu0 0
        %433 = vperm.xlu0 %432, %v357
        %v434 = vpop.permute.xlu0 %433
        %436 = vset.pattern.permute.xlu0 0
        %437 = vperm.xlu0 %436, %v358
        %v438 = vpop.permute.xlu0 %437
        %v439 = vlaneseq
        %v440 = vshrl.u32 %v439, 7
        %v441 = vsub.s32 0, %v440
        %v442 = vrot.slane %v426, %v441
        %v443 = vlaneseq
        %v444 = vshrl.u32 %v443, 7
        %v445 = vsub.s32 1, %v444
        %v446 = vrot.slane %v426, %v445
        %v447 = vlaneseq
        %v448 = vshrl.u32 %v447, 7
        %v449 = vsub.s32 2, %v448
        %v450 = vrot.slane %v426, %v449
        %v451 = vlaneseq
        %v452 = vshrl.u32 %v451, 7
        %v453 = vsub.s32 3, %v452
        %v454 = vrot.slane %v426, %v453
        %v455 = vlaneseq
        %v456 = vshrl.u32 %v455, 7
        %v457 = vsub.s32 4, %v456
        %v458 = vrot.slane %v426, %v457
        %v459 = vlaneseq
        %v460 = vshrl.u32 %v459, 7
        %v461 = vsub.s32 5, %v460
        %v462 = vrot.slane %v426, %v461
        %v463 = vlaneseq
        %v464 = vshrl.u32 %v463, 7
        %v465 = vsub.s32 6, %v464
        %v466 = vrot.slane %v426, %v465
        %v467 = vlaneseq
        %v468 = vshrl.u32 %v467, 7
        %v469 = vsub.s32 7, %v468
        %v470 = vrot.slane %v426, %v469
        %v471 = vlaneseq
        %v472 = vshrl.u32 %v471, 7
        %v473 = vsub.s32 0, %v472
        %v474 = vrot.slane %v430, %v473
        %v475 = vlaneseq
        %v476 = vshrl.u32 %v475, 7
        %v477 = vsub.s32 1, %v476
        %v478 = vrot.slane %v430, %v477
        %v479 = vlaneseq
        %v480 = vshrl.u32 %v479, 7
        %v481 = vsub.s32 2, %v480
        %v482 = vrot.slane %v430, %v481
        %v483 = vlaneseq
        %v484 = vshrl.u32 %v483, 7
        %v485 = vsub.s32 3, %v484
        %v486 = vrot.slane %v430, %v485
        %v487 = vlaneseq
        %v488 = vshrl.u32 %v487, 7
        %v489 = vsub.s32 4, %v488
        %v490 = vrot.slane %v430, %v489
        %v491 = vlaneseq
        %v492 = vshrl.u32 %v491, 7
        %v493 = vsub.s32 5, %v492
        %v494 = vrot.slane %v430, %v493
        %v495 = vlaneseq
        %v496 = vshrl.u32 %v495, 7
        %v497 = vsub.s32 6, %v496
        %v498 = vrot.slane %v430, %v497
        %v499 = vlaneseq
        %v500 = vshrl.u32 %v499, 7
        %v501 = vsub.s32 7, %v500
        %v502 = vrot.slane %v430, %v501
        %v503 = vlaneseq
        %v504 = vshrl.u32 %v503, 7
        %v505 = vsub.s32 0, %v504
        %v506 = vrot.slane %v434, %v505
        %v507 = vlaneseq
        %v508 = vshrl.u32 %v507, 7
        %v509 = vsub.s32 1, %v508
        %v510 = vrot.slane %v434, %v509
        %v511 = vlaneseq
        %v512 = vshrl.u32 %v511, 7
        %v513 = vsub.s32 2, %v512
        %v514 = vrot.slane %v434, %v513
        %v515 = vlaneseq
        %v516 = vshrl.u32 %v515, 7
        %v517 = vsub.s32 3, %v516
        %v518 = vrot.slane %v434, %v517
        %v519 = vlaneseq
        %v520 = vshrl.u32 %v519, 7
        %v521 = vsub.s32 4, %v520
        %v522 = vrot.slane %v434, %v521
        %v523 = vlaneseq
        %v524 = vshrl.u32 %v523, 7
        %v525 = vsub.s32 5, %v524
        %v526 = vrot.slane %v434, %v525
        %v527 = vlaneseq
        %v528 = vshrl.u32 %v527, 7
        %v529 = vsub.s32 6, %v528
        %v530 = vrot.slane %v434, %v529
        %v531 = vlaneseq
        %v532 = vshrl.u32 %v531, 7
        %v533 = vsub.s32 7, %v532
        %v534 = vrot.slane %v434, %v533
        %v535 = vlaneseq
        %v536 = vshrl.u32 %v535, 7
        %v537 = vsub.s32 0, %v536
        %v538 = vrot.slane %v438, %v537
        %v539 = vlaneseq
        %v540 = vshrl.u32 %v539, 7
        %v541 = vsub.s32 1, %v540
        %v542 = vrot.slane %v438, %v541
        %v543 = vlaneseq
        %v544 = vshrl.u32 %v543, 7
        %v545 = vsub.s32 2, %v544
        %v546 = vrot.slane %v438, %v545
        %v547 = vlaneseq
        %v548 = vshrl.u32 %v547, 7
        %v549 = vsub.s32 3, %v548
        %v550 = vrot.slane %v438, %v549
        %v551 = vlaneseq
        %v552 = vshrl.u32 %v551, 7
        %v553 = vsub.s32 4, %v552
        %v554 = vrot.slane %v438, %v553
        %v555 = vlaneseq
        %v556 = vshrl.u32 %v555, 7
        %v557 = vsub.s32 5, %v556
        %v558 = vrot.slane %v438, %v557
        %v559 = vlaneseq
        %v560 = vshrl.u32 %v559, 7
        %v561 = vsub.s32 6, %v560
        %v562 = vrot.slane %v438, %v561
        %v563 = vlaneseq
        %v564 = vshrl.u32 %v563, 7
        %v565 = vsub.s32 7, %v564
        %v566 = vrot.slane %v438, %v565
        %v599 = vadd.f32 %v391, %v442
        %v600 = vadd.f32 %v392, %v446
        %v601 = vadd.f32 %v393, %v450
        %v602 = vadd.f32 %v394, %v454
        %v603 = vadd.f32 %v395, %v458
        %v604 = vadd.f32 %v396, %v462
        %v605 = vadd.f32 %v397, %v466
        %v606 = vadd.f32 %v398, %v470
        %v607 = vadd.f32 %v399, %v474
        %v608 = vadd.f32 %v400, %v478
        %v609 = vadd.f32 %v401, %v482
        %v610 = vadd.f32 %v402, %v486
        %v611 = vadd.f32 %v403, %v490
        %v612 = vadd.f32 %v404, %v494
        %v613 = vadd.f32 %v405, %v498
        %v614 = vadd.f32 %v406, %v502
        %v615 = vadd.f32 %v407, %v506
        %v616 = vadd.f32 %v408, %v510
        %v617 = vadd.f32 %v409, %v514
        %v618 = vadd.f32 %v410, %v518
        %v619 = vadd.f32 %v411, %v522
        %v620 = vadd.f32 %v412, %v526
        %v621 = vadd.f32 %v413, %v530
        %v622 = vadd.f32 %v414, %v534
        %v623 = vadd.f32 %v415, %v538
        %v624 = vadd.f32 %v416, %v542
        %v625 = vadd.f32 %v417, %v546
        %v626 = vadd.f32 %v418, %v550
        %v627 = vadd.f32 %v419, %v554
        %v628 = vadd.f32 %v420, %v558
        %v629 = vadd.f32 %v421, %v562
        %v630 = vadd.f32 %v422, %v566
        %v631 = vmul.f32 %v599, %v599
        %v632 = vmul.f32 %v600, %v600
        %v633 = vmul.f32 %v601, %v601
        %v634 = vmul.f32 %v602, %v602
        %v635 = vmul.f32 %v603, %v603
        %v636 = vmul.f32 %v604, %v604
        %v637 = vmul.f32 %v605, %v605
        %v638 = vmul.f32 %v606, %v606
        %v639 = vmul.f32 %v607, %v607
        %v640 = vmul.f32 %v608, %v608
        %v641 = vmul.f32 %v609, %v609
        %v642 = vmul.f32 %v610, %v610
        %v643 = vmul.f32 %v611, %v611
        %v644 = vmul.f32 %v612, %v612
        %v645 = vmul.f32 %v613, %v613
        %v646 = vmul.f32 %v614, %v614
        %v647 = vmul.f32 %v615, %v615
        %v648 = vmul.f32 %v616, %v616
        %v649 = vmul.f32 %v617, %v617
        %v650 = vmul.f32 %v618, %v618
        %v651 = vmul.f32 %v619, %v619
        %v652 = vmul.f32 %v620, %v620
        %v653 = vmul.f32 %v621, %v621
        %v654 = vmul.f32 %v622, %v622
        %v655 = vmul.f32 %v623, %v623
        %v656 = vmul.f32 %v624, %v624
        %v657 = vmul.f32 %v625, %v625
        %v658 = vmul.f32 %v626, %v626
        %v659 = vmul.f32 %v627, %v627
        %v660 = vmul.f32 %v628, %v628
        %v661 = vmul.f32 %v629, %v629
        %v662 = vmul.f32 %v630, %v630
        %v695 = vcombine.low %v631, %v632
        %v696 = vcombine.low %v633, %v634
        %v697 = vcombine.low %v635, %v636
        %v698 = vcombine.low %v637, %v638
        %v700 = vunpack.c.l.s4 1966171168
        %v701 = vunpack.c.0.s8 %v700
        %v702 = vlaneseq
        %v703 = vshrl.u32 %v702, 7
        %v704 = vsub.s32 %v701, %v703
        %v705 = vrot.slane %v695, %v704
        %v707 = vunpack.c.l.s4 1966171168
        %v708 = vunpack.c.0.s8 %v707
        %v709 = vlaneseq
        %v710 = vshrl.u32 %v709, 7
        %v711 = vsub.s32 %v708, %v710
        %v712 = vrot.slane %v696, %v711
        %v714 = vunpack.c.l.s4 1966171168
        %v715 = vunpack.c.0.s8 %v714
        %v716 = vlaneseq
        %v717 = vshrl.u32 %v716, 7
        %v718 = vsub.s32 %v715, %v717
        %v719 = vrot.slane %v697, %v718
        %v721 = vunpack.c.l.s4 1966171168
        %v722 = vunpack.c.0.s8 %v721
        %v723 = vlaneseq
        %v724 = vshrl.u32 %v723, 7
        %v725 = vsub.s32 %v722, %v724
        %v726 = vrot.slane %v698, %v725
        %v727 = vcombine.low %v705, %v712
        %v728 = vcombine.high %v705, %v712
        %v729 = vcombine.low %v719, %v726
        %v730 = vcombine.high %v719, %v726
        %v732 = vunpack.c.l.s4 1966171168
        %v733 = vunpack.c.0.s8 %v732
        %v734 = vlaneseq
        %v735 = vshrl.u32 %v734, 7
        %v736 = vsub.s32 %v733, %v735
        %v737 = vrot.slane %v727, %v736
        %v739 = vunpack.c.l.s4 1966171168
        %v740 = vunpack.c.0.s8 %v739
        %v741 = vlaneseq
        %v742 = vshrl.u32 %v741, 7
        %v743 = vsub.s32 %v740, %v742
        %v744 = vrot.slane %v728, %v743
        %v746 = vunpack.c.l.s4 1966171168
        %v747 = vunpack.c.0.s8 %v746
        %v748 = vlaneseq
        %v749 = vshrl.u32 %v748, 7
        %v750 = vsub.s32 %v747, %v749
        %v751 = vrot.slane %v729, %v750
        %v753 = vunpack.c.l.s4 1966171168
        %v754 = vunpack.c.0.s8 %v753
        %v755 = vlaneseq
        %v756 = vshrl.u32 %v755, 7
        %v757 = vsub.s32 %v754, %v756
        %v758 = vrot.slane %v730, %v757
        %v759 = vcombine.low %v737, %v751
        %v760 = vcombine.low %v744, %v758
        %v761 = vcombine.low %v639, %v640
        %v762 = vcombine.low %v641, %v642
        %v763 = vcombine.low %v643, %v644
        %v764 = vcombine.low %v645, %v646
        %v766 = vunpack.c.l.s4 1966171168
        %v767 = vunpack.c.0.s8 %v766
        %v768 = vlaneseq
        %v769 = vshrl.u32 %v768, 7
        %v770 = vsub.s32 %v767, %v769
        %v771 = vrot.slane %v761, %v770
        %v773 = vunpack.c.l.s4 1966171168
        %v774 = vunpack.c.0.s8 %v773
        %v775 = vlaneseq
        %v776 = vshrl.u32 %v775, 7
        %v777 = vsub.s32 %v774, %v776
        %v778 = vrot.slane %v762, %v777
        %v780 = vunpack.c.l.s4 1966171168
        %v781 = vunpack.c.0.s8 %v780
        %v782 = vlaneseq
        %v783 = vshrl.u32 %v782, 7
        %v784 = vsub.s32 %v781, %v783
        %v785 = vrot.slane %v763, %v784
        %v787 = vunpack.c.l.s4 1966171168
        %v788 = vunpack.c.0.s8 %v787
        %v789 = vlaneseq
        %v790 = vshrl.u32 %v789, 7
        %v791 = vsub.s32 %v788, %v790
        %v792 = vrot.slane %v764, %v791
        %v793 = vcombine.low %v771, %v778
        %v794 = vcombine.high %v771, %v778
        %v795 = vcombine.low %v785, %v792
        %v796 = vcombine.high %v785, %v792
        %v798 = vunpack.c.l.s4 1966171168
        %v799 = vunpack.c.0.s8 %v798
        %v800 = vlaneseq
        %v801 = vshrl.u32 %v800, 7
        %v802 = vsub.s32 %v799, %v801
        %v803 = vrot.slane %v793, %v802
        %v805 = vunpack.c.l.s4 1966171168
        %v806 = vunpack.c.0.s8 %v805
        %v807 = vlaneseq
        %v808 = vshrl.u32 %v807, 7
        %v809 = vsub.s32 %v806, %v808
        %v810 = vrot.slane %v794, %v809
        %v812 = vunpack.c.l.s4 1966171168
        %v813 = vunpack.c.0.s8 %v812
        %v814 = vlaneseq
        %v815 = vshrl.u32 %v814, 7
        %v816 = vsub.s32 %v813, %v815
        %v817 = vrot.slane %v795, %v816
        %v819 = vunpack.c.l.s4 1966171168
        %v820 = vunpack.c.0.s8 %v819
        %v821 = vlaneseq
        %v822 = vshrl.u32 %v821, 7
        %v823 = vsub.s32 %v820, %v822
        %v824 = vrot.slane %v796, %v823
        %v825 = vcombine.low %v803, %v817
        %v826 = vcombine.low %v810, %v824
        %v827 = vcombine.low %v647, %v648
        %v828 = vcombine.low %v649, %v650
        %v829 = vcombine.low %v651, %v652
        %v830 = vcombine.low %v653, %v654
        %v832 = vunpack.c.l.s4 1966171168
        %v833 = vunpack.c.0.s8 %v832
        %v834 = vlaneseq
        %v835 = vshrl.u32 %v834, 7
        %v836 = vsub.s32 %v833, %v835
        %v837 = vrot.slane %v827, %v836
        %v839 = vunpack.c.l.s4 1966171168
        %v840 = vunpack.c.0.s8 %v839
        %v841 = vlaneseq
        %v842 = vshrl.u32 %v841, 7
        %v843 = vsub.s32 %v840, %v842
        %v844 = vrot.slane %v828, %v843
        %v846 = vunpack.c.l.s4 1966171168
        %v847 = vunpack.c.0.s8 %v846
        %v848 = vlaneseq
        %v849 = vshrl.u32 %v848, 7
        %v850 = vsub.s32 %v847, %v849
        %v851 = vrot.slane %v829, %v850
        %v853 = vunpack.c.l.s4 1966171168
        %v854 = vunpack.c.0.s8 %v853
        %v855 = vlaneseq
        %v856 = vshrl.u32 %v855, 7
        %v857 = vsub.s32 %v854, %v856
        %v858 = vrot.slane %v830, %v857
        %v859 = vcombine.low %v837, %v844
        %v860 = vcombine.high %v837, %v844
        %v861 = vcombine.low %v851, %v858
        %v862 = vcombine.high %v851, %v858
        %v864 = vunpack.c.l.s4 1966171168
        %v865 = vunpack.c.0.s8 %v864
        %v866 = vlaneseq
        %v867 = vshrl.u32 %v866, 7
        %v868 = vsub.s32 %v865, %v867
        %v869 = vrot.slane %v859, %v868
        %v871 = vunpack.c.l.s4 1966171168
        %v872 = vunpack.c.0.s8 %v871
        %v873 = vlaneseq
        %v874 = vshrl.u32 %v873, 7
        %v875 = vsub.s32 %v872, %v874
        %v876 = vrot.slane %v860, %v875
        %v878 = vunpack.c.l.s4 1966171168
        %v879 = vunpack.c.0.s8 %v878
        %v880 = vlaneseq
        %v881 = vshrl.u32 %v880, 7
        %v882 = vsub.s32 %v879, %v881
        %v883 = vrot.slane %v861, %v882
        %v885 = vunpack.c.l.s4 1966171168
        %v886 = vunpack.c.0.s8 %v885
        %v887 = vlaneseq
        %v888 = vshrl.u32 %v887, 7
        %v889 = vsub.s32 %v886, %v888
        %v890 = vrot.slane %v862, %v889
        %v891 = vcombine.low %v869, %v883
        %v892 = vcombine.low %v876, %v890
        %v893 = vcombine.low %v655, %v656
        %v894 = vcombine.low %v657, %v658
        %v895 = vcombine.low %v659, %v660
        %v896 = vcombine.low %v661, %v662
        %v898 = vunpack.c.l.s4 1966171168
        %v899 = vunpack.c.0.s8 %v898
        %v900 = vlaneseq
        %v901 = vshrl.u32 %v900, 7
        %v902 = vsub.s32 %v899, %v901
        %v903 = vrot.slane %v893, %v902
        %v905 = vunpack.c.l.s4 1966171168
        %v906 = vunpack.c.0.s8 %v905
        %v907 = vlaneseq
        %v908 = vshrl.u32 %v907, 7
        %v909 = vsub.s32 %v906, %v908
        %v910 = vrot.slane %v894, %v909
        %v912 = vunpack.c.l.s4 1966171168
        %v913 = vunpack.c.0.s8 %v912
        %v914 = vlaneseq
        %v915 = vshrl.u32 %v914, 7
        %v916 = vsub.s32 %v913, %v915
        %v917 = vrot.slane %v895, %v916
        %v919 = vunpack.c.l.s4 1966171168
        %v920 = vunpack.c.0.s8 %v919
        %v921 = vlaneseq
        %v922 = vshrl.u32 %v921, 7
        %v923 = vsub.s32 %v920, %v922
        %v924 = vrot.slane %v896, %v923
        %v925 = vcombine.low %v903, %v910
        %v926 = vcombine.high %v903, %v910
        %v927 = vcombine.low %v917, %v924
        %v928 = vcombine.high %v917, %v924
        %v930 = vunpack.c.l.s4 1966171168
        %v931 = vunpack.c.0.s8 %v930
        %v932 = vlaneseq
        %v933 = vshrl.u32 %v932, 7
        %v934 = vsub.s32 %v931, %v933
        %v935 = vrot.slane %v925, %v934
        %v937 = vunpack.c.l.s4 1966171168
        %v938 = vunpack.c.0.s8 %v937
        %v939 = vlaneseq
        %v940 = vshrl.u32 %v939, 7
        %v941 = vsub.s32 %v938, %v940
        %v942 = vrot.slane %v926, %v941
        %v944 = vunpack.c.l.s4 1966171168
        %v945 = vunpack.c.0.s8 %v944
        %v946 = vlaneseq
        %v947 = vshrl.u32 %v946, 7
        %v948 = vsub.s32 %v945, %v947
        %v949 = vrot.slane %v927, %v948
        %v951 = vunpack.c.l.s4 1966171168
        %v952 = vunpack.c.0.s8 %v951
        %v953 = vlaneseq
        %v954 = vshrl.u32 %v953, 7
        %v955 = vsub.s32 %v952, %v954
        %v956 = vrot.slane %v928, %v955
        %v957 = vcombine.low %v935, %v949
        %v958 = vcombine.low %v942, %v956
        %v967 = vrot.slane %v759, 4
        %v968 = vadd.f32 %v759, %v967
        %v969 = vrot.slane %v968, 2
        %v970 = vadd.f32 %v968, %v969
        %v971 = vrot.slane %v970, 1
        %v972 = vadd.f32 %v970, %v971
        %v973 = vrot.slane %v760, 4
        %v974 = vadd.f32 %v760, %v973
        %v975 = vrot.slane %v974, 2
        %v976 = vadd.f32 %v974, %v975
        %v977 = vrot.slane %v976, 1
        %v978 = vadd.f32 %v976, %v977
        %v979 = vrot.slane %v825, 4
        %v980 = vadd.f32 %v825, %v979
        %v981 = vrot.slane %v980, 2
        %v982 = vadd.f32 %v980, %v981
        %v983 = vrot.slane %v982, 1
        %v984 = vadd.f32 %v982, %v983
        %v985 = vrot.slane %v826, 4
        %v986 = vadd.f32 %v826, %v985
        %v987 = vrot.slane %v986, 2
        %v988 = vadd.f32 %v986, %v987
        %v989 = vrot.slane %v988, 1
        %v990 = vadd.f32 %v988, %v989
        %v991 = vrot.slane %v891, 4
        %v992 = vadd.f32 %v891, %v991
        %v993 = vrot.slane %v992, 2
        %v994 = vadd.f32 %v992, %v993
        %v995 = vrot.slane %v994, 1
        %v996 = vadd.f32 %v994, %v995
        %v997 = vrot.slane %v892, 4
        %v998 = vadd.f32 %v892, %v997
        %v999 = vrot.slane %v998, 2
        %v1000 = vadd.f32 %v998, %v999
        %v1001 = vrot.slane %v1000, 1
        %v1002 = vadd.f32 %v1000, %v1001
        %v1003 = vrot.slane %v957, 4
        %v1004 = vadd.f32 %v957, %v1003
        %v1005 = vrot.slane %v1004, 2
        %v1006 = vadd.f32 %v1004, %v1005
        %v1007 = vrot.slane %v1006, 1
        %v1008 = vadd.f32 %v1006, %v1007
        %v1009 = vrot.slane %v958, 4
        %v1010 = vadd.f32 %v958, %v1009
        %v1011 = vrot.slane %v1010, 2
        %v1012 = vadd.f32 %v1010, %v1011
        %v1013 = vrot.slane %v1012, 1
        %v1014 = vadd.f32 %v1012, %v1013
        %v1015 = vadd.f32 %v972, 1.0
        %v1016 = vadd.f32 %v978, 1.0
        %v1017 = vadd.f32 %v984, 1.0
        %v1018 = vadd.f32 %v990, 1.0
        %v1019 = vadd.f32 %v996, 1.0
        %v1020 = vadd.f32 %v1002, 1.0
        %v1021 = vadd.f32 %v1008, 1.0
        %v1022 = vadd.f32 %v1014, 1.0
        %v1023 = vrsqrt.pop %v972
        %v1024 = vmul.f32 %v972, %v1023
        %vm1025 = vcmp.eq.f32.partialorder %v972, inf
        %v1026 = vsel %vm1025, %v972, %v1024
        %vm1027 = vcmp.eq.f32.partialorder %v972, 0.0
        %v1028 = vand.u32 %v972, 2147483648
        %v1029 = vsel %vm1027, %v1028, %v1026
        %v1030 = vrsqrt.pop %v978
        %v1031 = vmul.f32 %v978, %v1030
        %vm1032 = vcmp.eq.f32.partialorder %v978, inf
        %v1033 = vsel %vm1032, %v978, %v1031
        %vm1034 = vcmp.eq.f32.partialorder %v978, 0.0
        %v1035 = vand.u32 %v978, 2147483648
        %v1036 = vsel %vm1034, %v1035, %v1033
        %v1037 = vrsqrt.pop %v984
        %v1038 = vmul.f32 %v984, %v1037
        %vm1039 = vcmp.eq.f32.partialorder %v984, inf
        %v1040 = vsel %vm1039, %v984, %v1038
        %vm1041 = vcmp.eq.f32.partialorder %v984, 0.0
        %v1042 = vand.u32 %v984, 2147483648
        %v1043 = vsel %vm1041, %v1042, %v1040
        %v1044 = vrsqrt.pop %v990
        %v1045 = vmul.f32 %v990, %v1044
        %vm1046 = vcmp.eq.f32.partialorder %v990, inf
        %v1047 = vsel %vm1046, %v990, %v1045
        %vm1048 = vcmp.eq.f32.partialorder %v990, 0.0
        %v1049 = vand.u32 %v990, 2147483648
        %v1050 = vsel %vm1048, %v1049, %v1047
        %v1051 = vrsqrt.pop %v996
        %v1052 = vmul.f32 %v996, %v1051
        %vm1053 = vcmp.eq.f32.partialorder %v996, inf
        %v1054 = vsel %vm1053, %v996, %v1052
        %vm1055 = vcmp.eq.f32.partialorder %v996, 0.0
        %v1056 = vand.u32 %v996, 2147483648
        %v1057 = vsel %vm1055, %v1056, %v1054
        %v1058 = vrsqrt.pop %v1002
        %v1059 = vmul.f32 %v1002, %v1058
        %vm1060 = vcmp.eq.f32.partialorder %v1002, inf
        %v1061 = vsel %vm1060, %v1002, %v1059
        %vm1062 = vcmp.eq.f32.partialorder %v1002, 0.0
        %v1063 = vand.u32 %v1002, 2147483648
        %v1064 = vsel %vm1062, %v1063, %v1061
        %v1065 = vrsqrt.pop %v1008
        %v1066 = vmul.f32 %v1008, %v1065
        %vm1067 = vcmp.eq.f32.partialorder %v1008, inf
        %v1068 = vsel %vm1067, %v1008, %v1066
        %vm1069 = vcmp.eq.f32.partialorder %v1008, 0.0
        %v1070 = vand.u32 %v1008, 2147483648
        %v1071 = vsel %vm1069, %v1070, %v1068
        %v1072 = vrsqrt.pop %v1014
        %v1073 = vmul.f32 %v1014, %v1072
        %vm1074 = vcmp.eq.f32.partialorder %v1014, inf
        %v1075 = vsel %vm1074, %v1014, %v1073
        %vm1076 = vcmp.eq.f32.partialorder %v1014, 0.0
        %v1077 = vand.u32 %v1014, 2147483648
        %v1078 = vsel %vm1076, %v1077, %v1075
        %v1079 = vadd.f32 %v1029, 1e-07
        %v1080 = vadd.f32 %v1036, 1e-07
        %v1081 = vadd.f32 %v1043, 1e-07
        %v1082 = vadd.f32 %v1050, 1e-07
        %v1083 = vadd.f32 %v1057, 1e-07
        %v1084 = vadd.f32 %v1064, 1e-07
        %v1085 = vadd.f32 %v1071, 1e-07
        %v1086 = vadd.f32 %v1078, 1e-07
        %v1087 = vmul.f32 %v1015, %v1079
        %v1088 = vmul.f32 %v1016, %v1080
        %v1089 = vmul.f32 %v1017, %v1081
        %v1090 = vmul.f32 %v1018, %v1082
        %v1091 = vmul.f32 %v1019, %v1083
        %v1092 = vmul.f32 %v1020, %v1084
        %v1093 = vmul.f32 %v1021, %v1085
        %v1094 = vmul.f32 %v1022, %v1086
        %v1095 = vrcp.pop %v1087
        %v1096 = vrcp.pop %v1088
        %v1097 = vrcp.pop %v1089
        %v1098 = vrcp.pop %v1090
        %v1099 = vrcp.pop %v1091
        %v1100 = vrcp.pop %v1092
        %v1101 = vrcp.pop %v1093
        %v1102 = vrcp.pop %v1094
        %v1103 = vmul.f32 %v972, %v1095
        %v1104 = vmul.f32 %v978, %v1096
        %v1105 = vmul.f32 %v984, %v1097
        %v1106 = vmul.f32 %v990, %v1098
        %v1107 = vmul.f32 %v996, %v1099
        %v1108 = vmul.f32 %v1002, %v1100
        %v1109 = vmul.f32 %v1008, %v1101
        %v1110 = vmul.f32 %v1014, %v1102
        %v1111 = vlaneseq
        %v1112 = vshrl.u32 %v1111, 7
        %v1113 = vsub.s32 0, %v1112
        %v1114 = vrot.slane %v1103, %v1113
        %v1115 = vlaneseq
        %v1116 = vshrl.u32 %v1115, 7
        %v1117 = vsub.s32 0, %v1116
        %v1118 = vrot.slane %v1104, %v1117
        %v1119 = vlaneseq
        %v1120 = vshrl.u32 %v1119, 7
        %v1121 = vsub.s32 0, %v1120
        %v1122 = vrot.slane %v1105, %v1121
        %v1123 = vlaneseq
        %v1124 = vshrl.u32 %v1123, 7
        %v1125 = vsub.s32 0, %v1124
        %v1126 = vrot.slane %v1106, %v1125
        %v1127 = vlaneseq
        %v1128 = vshrl.u32 %v1127, 7
        %v1129 = vsub.s32 0, %v1128
        %v1130 = vrot.slane %v1107, %v1129
        %v1131 = vlaneseq
        %v1132 = vshrl.u32 %v1131, 7
        %v1133 = vsub.s32 0, %v1132
        %v1134 = vrot.slane %v1108, %v1133
        %v1135 = vlaneseq
        %v1136 = vshrl.u32 %v1135, 7
        %v1137 = vsub.s32 0, %v1136
        %v1138 = vrot.slane %v1109, %v1137
        %v1139 = vlaneseq
        %v1140 = vshrl.u32 %v1139, 7
        %v1141 = vsub.s32 0, %v1140
        %v1142 = vrot.slane %v1110, %v1141
        %v1151 = vcombine.low %v1114, %v1118
        %v1152 = vcombine.high %v1114, %v1118
        %v1154 = vunpack.c.l.s4 1966171168
        %v1155 = vunpack.c.0.s8 %v1154
        %v1156 = vlaneseq
        %v1157 = vshrl.u32 %v1156, 7
        %v1158 = vsub.s32 %v1155, %v1157
        %v1159 = vrot.slane %v1151, %v1158
        %v1161 = vunpack.c.l.s4 1966171168
        %v1162 = vunpack.c.0.s8 %v1161
        %v1163 = vlaneseq
        %v1164 = vshrl.u32 %v1163, 7
        %v1165 = vsub.s32 %v1162, %v1164
        %v1166 = vrot.slane %v1152, %v1165
        %v1167 = vcombine.high %v1159, %v1159
        %v1168 = vcombine.high %v1166, %v1166
        %v1170 = vunpack.c.l.s4 1966171168
        %v1171 = vunpack.c.0.s8 %v1170
        %v1172 = vlaneseq
        %v1173 = vshrl.u32 %v1172, 7
        %v1174 = vsub.s32 %v1171, %v1173
        %v1175 = vrot.slane %v1159, %v1174
        %v1177 = vunpack.c.l.s4 1966171168
        %v1178 = vunpack.c.0.s8 %v1177
        %v1179 = vlaneseq
        %v1180 = vshrl.u32 %v1179, 7
        %v1181 = vsub.s32 %v1178, %v1180
        %v1182 = vrot.slane %v1166, %v1181
        %v1184 = vunpack.c.l.s4 1966171168
        %v1185 = vunpack.c.0.s8 %v1184
        %v1186 = vlaneseq
        %v1187 = vshrl.u32 %v1186, 7
        %v1188 = vsub.s32 %v1185, %v1187
        %v1189 = vrot.slane %v1167, %v1188
        %v1191 = vunpack.c.l.s4 1966171168
        %v1192 = vunpack.c.0.s8 %v1191
        %v1193 = vlaneseq
        %v1194 = vshrl.u32 %v1193, 7
        %v1195 = vsub.s32 %v1192, %v1194
        %v1196 = vrot.slane %v1168, %v1195
        %v1197 = vcombine.high %v1175, %v1175
        %v1198 = vcombine.high %v1182, %v1182
        %v1199 = vcombine.high %v1189, %v1189
        %v1200 = vcombine.high %v1196, %v1196
        %v1201 = vcombine.low %v1122, %v1126
        %v1202 = vcombine.high %v1122, %v1126
        %v1204 = vunpack.c.l.s4 1966171168
        %v1205 = vunpack.c.0.s8 %v1204
        %v1206 = vlaneseq
        %v1207 = vshrl.u32 %v1206, 7
        %v1208 = vsub.s32 %v1205, %v1207
        %v1209 = vrot.slane %v1201, %v1208
        %v1211 = vunpack.c.l.s4 1966171168
        %v1212 = vunpack.c.0.s8 %v1211
        %v1213 = vlaneseq
        %v1214 = vshrl.u32 %v1213, 7
        %v1215 = vsub.s32 %v1212, %v1214
        %v1216 = vrot.slane %v1202, %v1215
        %v1217 = vcombine.high %v1209, %v1209
        %v1218 = vcombine.high %v1216, %v1216
        %v1220 = vunpack.c.l.s4 1966171168
        %v1221 = vunpack.c.0.s8 %v1220
        %v1222 = vlaneseq
        %v1223 = vshrl.u32 %v1222, 7
        %v1224 = vsub.s32 %v1221, %v1223
        %v1225 = vrot.slane %v1209, %v1224
        %v1227 = vunpack.c.l.s4 1966171168
        %v1228 = vunpack.c.0.s8 %v1227
        %v1229 = vlaneseq
        %v1230 = vshrl.u32 %v1229, 7
        %v1231 = vsub.s32 %v1228, %v1230
        %v1232 = vrot.slane %v1216, %v1231
        %v1234 = vunpack.c.l.s4 1966171168
        %v1235 = vunpack.c.0.s8 %v1234
        %v1236 = vlaneseq
        %v1237 = vshrl.u32 %v1236, 7
        %v1238 = vsub.s32 %v1235, %v1237
        %v1239 = vrot.slane %v1217, %v1238
        %v1241 = vunpack.c.l.s4 1966171168
        %v1242 = vunpack.c.0.s8 %v1241
        %v1243 = vlaneseq
        %v1244 = vshrl.u32 %v1243, 7
        %v1245 = vsub.s32 %v1242, %v1244
        %v1246 = vrot.slane %v1218, %v1245
        %v1247 = vcombine.high %v1225, %v1225
        %v1248 = vcombine.high %v1232, %v1232
        %v1249 = vcombine.high %v1239, %v1239
        %v1250 = vcombine.high %v1246, %v1246
        %v1251 = vcombine.low %v1130, %v1134
        %v1252 = vcombine.high %v1130, %v1134
        %v1254 = vunpack.c.l.s4 1966171168
        %v1255 = vunpack.c.0.s8 %v1254
        %v1256 = vlaneseq
        %v1257 = vshrl.u32 %v1256, 7
        %v1258 = vsub.s32 %v1255, %v1257
        %v1259 = vrot.slane %v1251, %v1258
        %v1261 = vunpack.c.l.s4 1966171168
        %v1262 = vunpack.c.0.s8 %v1261
        %v1263 = vlaneseq
        %v1264 = vshrl.u32 %v1263, 7
        %v1265 = vsub.s32 %v1262, %v1264
        %v1266 = vrot.slane %v1252, %v1265
        %v1267 = vcombine.high %v1259, %v1259
        %v1268 = vcombine.high %v1266, %v1266
        %v1270 = vunpack.c.l.s4 1966171168
        %v1271 = vunpack.c.0.s8 %v1270
        %v1272 = vlaneseq
        %v1273 = vshrl.u32 %v1272, 7
        %v1274 = vsub.s32 %v1271, %v1273
        %v1275 = vrot.slane %v1259, %v1274
        %v1277 = vunpack.c.l.s4 1966171168
        %v1278 = vunpack.c.0.s8 %v1277
        %v1279 = vlaneseq
        %v1280 = vshrl.u32 %v1279, 7
        %v1281 = vsub.s32 %v1278, %v1280
        %v1282 = vrot.slane %v1266, %v1281
        %v1284 = vunpack.c.l.s4 1966171168
        %v1285 = vunpack.c.0.s8 %v1284
        %v1286 = vlaneseq
        %v1287 = vshrl.u32 %v1286, 7
        %v1288 = vsub.s32 %v1285, %v1287
        %v1289 = vrot.slane %v1267, %v1288
        %v1291 = vunpack.c.l.s4 1966171168
        %v1292 = vunpack.c.0.s8 %v1291
        %v1293 = vlaneseq
        %v1294 = vshrl.u32 %v1293, 7
        %v1295 = vsub.s32 %v1292, %v1294
        %v1296 = vrot.slane %v1268, %v1295
        %v1297 = vcombine.high %v1275, %v1275
        %v1298 = vcombine.high %v1282, %v1282
        %v1299 = vcombine.high %v1289, %v1289
        %v1300 = vcombine.high %v1296, %v1296
        %v1301 = vcombine.low %v1138, %v1142
        %v1302 = vcombine.high %v1138, %v1142
        %v1304 = vunpack.c.l.s4 1966171168
        %v1305 = vunpack.c.0.s8 %v1304
        %v1306 = vlaneseq
        %v1307 = vshrl.u32 %v1306, 7
        %v1308 = vsub.s32 %v1305, %v1307
        %v1309 = vrot.slane %v1301, %v1308
        %v1311 = vunpack.c.l.s4 1966171168
        %v1312 = vunpack.c.0.s8 %v1311
        %v1313 = vlaneseq
        %v1314 = vshrl.u32 %v1313, 7
        %v1315 = vsub.s32 %v1312, %v1314
        %v1316 = vrot.slane %v1302, %v1315
        %v1317 = vcombine.high %v1309, %v1309
        %v1318 = vcombine.high %v1316, %v1316
        %v1320 = vunpack.c.l.s4 1966171168
        %v1321 = vunpack.c.0.s8 %v1320
        %v1322 = vlaneseq
        %v1323 = vshrl.u32 %v1322, 7
        %v1324 = vsub.s32 %v1321, %v1323
        %v1325 = vrot.slane %v1309, %v1324
        %v1327 = vunpack.c.l.s4 1966171168
        %v1328 = vunpack.c.0.s8 %v1327
        %v1329 = vlaneseq
        %v1330 = vshrl.u32 %v1329, 7
        %v1331 = vsub.s32 %v1328, %v1330
        %v1332 = vrot.slane %v1316, %v1331
        %v1334 = vunpack.c.l.s4 1966171168
        %v1335 = vunpack.c.0.s8 %v1334
        %v1336 = vlaneseq
        %v1337 = vshrl.u32 %v1336, 7
        %v1338 = vsub.s32 %v1335, %v1337
        %v1339 = vrot.slane %v1317, %v1338
        %v1341 = vunpack.c.l.s4 1966171168
        %v1342 = vunpack.c.0.s8 %v1341
        %v1343 = vlaneseq
        %v1344 = vshrl.u32 %v1343, 7
        %v1345 = vsub.s32 %v1342, %v1344
        %v1346 = vrot.slane %v1318, %v1345
        %v1347 = vcombine.high %v1325, %v1325
        %v1348 = vcombine.high %v1332, %v1332
        %v1349 = vcombine.high %v1339, %v1339
        %v1350 = vcombine.high %v1346, %v1346
        %v1383 = vmul.f32 %v599, %v1175
        %v1384 = vmul.f32 %v600, %v1189
        %v1385 = vmul.f32 %v601, %v1197
        %v1386 = vmul.f32 %v602, %v1199
        %v1387 = vmul.f32 %v603, %v1182
        %v1388 = vmul.f32 %v604, %v1196
        %v1389 = vmul.f32 %v605, %v1198
        %v1390 = vmul.f32 %v606, %v1200
        %v1391 = vmul.f32 %v607, %v1225
        %v1392 = vmul.f32 %v608, %v1239
        %v1393 = vmul.f32 %v609, %v1247
        %v1394 = vmul.f32 %v610, %v1249
        %v1395 = vmul.f32 %v611, %v1232
        %v1396 = vmul.f32 %v612, %v1246
        %v1397 = vmul.f32 %v613, %v1248
        %v1398 = vmul.f32 %v614, %v1250
        %v1399 = vmul.f32 %v615, %v1275
        %v1400 = vmul.f32 %v616, %v1289
        %v1401 = vmul.f32 %v617, %v1297
        %v1402 = vmul.f32 %v618, %v1299
        %v1403 = vmul.f32 %v619, %v1282
        %v1404 = vmul.f32 %v620, %v1296
        %v1405 = vmul.f32 %v621, %v1298
        %v1406 = vmul.f32 %v622, %v1300
        %v1407 = vmul.f32 %v623, %v1325
        %v1408 = vmul.f32 %v624, %v1339
        %v1409 = vmul.f32 %v625, %v1347
        %v1410 = vmul.f32 %v626, %v1349
        %v1411 = vmul.f32 %v627, %v1332
        %v1412 = vmul.f32 %v628, %v1346
        %v1413 = vmul.f32 %v629, %v1348
        %v1414 = vmul.f32 %v630, %v1350
        %v1447 = vcombine.low %v1383, %v1384
        %v1448 = vcombine.low %v1385, %v1386
        %v1449 = vcombine.low %v1387, %v1388
        %v1450 = vcombine.low %v1389, %v1390
        %v1452 = vunpack.c.l.s4 1966171168
        %v1453 = vunpack.c.0.s8 %v1452
        %v1454 = vlaneseq
        %v1455 = vshrl.u32 %v1454, 7
        %v1456 = vsub.s32 %v1453, %v1455
        %v1457 = vrot.slane %v1447, %v1456
        %v1459 = vunpack.c.l.s4 1966171168
        %v1460 = vunpack.c.0.s8 %v1459
        %v1461 = vlaneseq
        %v1462 = vshrl.u32 %v1461, 7
        %v1463 = vsub.s32 %v1460, %v1462
        %v1464 = vrot.slane %v1448, %v1463
        %v1466 = vunpack.c.l.s4 1966171168
        %v1467 = vunpack.c.0.s8 %v1466
        %v1468 = vlaneseq
        %v1469 = vshrl.u32 %v1468, 7
        %v1470 = vsub.s32 %v1467, %v1469
        %v1471 = vrot.slane %v1449, %v1470
        %v1473 = vunpack.c.l.s4 1966171168
        %v1474 = vunpack.c.0.s8 %v1473
        %v1475 = vlaneseq
        %v1476 = vshrl.u32 %v1475, 7
        %v1477 = vsub.s32 %v1474, %v1476
        %v1478 = vrot.slane %v1450, %v1477
        %v1479 = vcombine.low %v1457, %v1464
        %v1480 = vcombine.high %v1457, %v1464
        %v1481 = vcombine.low %v1471, %v1478
        %v1482 = vcombine.high %v1471, %v1478
        %v1484 = vunpack.c.l.s4 1966171168
        %v1485 = vunpack.c.0.s8 %v1484
        %v1486 = vlaneseq
        %v1487 = vshrl.u32 %v1486, 7
        %v1488 = vsub.s32 %v1485, %v1487
        %v1489 = vrot.slane %v1479, %v1488
        %v1491 = vunpack.c.l.s4 1966171168
        %v1492 = vunpack.c.0.s8 %v1491
        %v1493 = vlaneseq
        %v1494 = vshrl.u32 %v1493, 7
        %v1495 = vsub.s32 %v1492, %v1494
        %v1496 = vrot.slane %v1480, %v1495
        %v1498 = vunpack.c.l.s4 1966171168
        %v1499 = vunpack.c.0.s8 %v1498
        %v1500 = vlaneseq
        %v1501 = vshrl.u32 %v1500, 7
        %v1502 = vsub.s32 %v1499, %v1501
        %v1503 = vrot.slane %v1481, %v1502
        %v1505 = vunpack.c.l.s4 1966171168
        %v1506 = vunpack.c.0.s8 %v1505
        %v1507 = vlaneseq
        %v1508 = vshrl.u32 %v1507, 7
        %v1509 = vsub.s32 %v1506, %v1508
        %v1510 = vrot.slane %v1482, %v1509
        %v1511 = vcombine.low %v1489, %v1503
        %v1512 = vcombine.low %v1496, %v1510
        %v1513 = vcombine.low %v1391, %v1392
        %v1514 = vcombine.low %v1393, %v1394
        %v1515 = vcombine.low %v1395, %v1396
        %v1516 = vcombine.low %v1397, %v1398
        %v1518 = vunpack.c.l.s4 1966171168
        %v1519 = vunpack.c.0.s8 %v1518
        %v1520 = vlaneseq
        %v1521 = vshrl.u32 %v1520, 7
        %v1522 = vsub.s32 %v1519, %v1521
        %v1523 = vrot.slane %v1513, %v1522
        %v1525 = vunpack.c.l.s4 1966171168
        %v1526 = vunpack.c.0.s8 %v1525
        %v1527 = vlaneseq
        %v1528 = vshrl.u32 %v1527, 7
        %v1529 = vsub.s32 %v1526, %v1528
        %v1530 = vrot.slane %v1514, %v1529
        %v1532 = vunpack.c.l.s4 1966171168
        %v1533 = vunpack.c.0.s8 %v1532
        %v1534 = vlaneseq
        %v1535 = vshrl.u32 %v1534, 7
        %v1536 = vsub.s32 %v1533, %v1535
        %v1537 = vrot.slane %v1515, %v1536
        %v1539 = vunpack.c.l.s4 1966171168
        %v1540 = vunpack.c.0.s8 %v1539
        %v1541 = vlaneseq
        %v1542 = vshrl.u32 %v1541, 7
        %v1543 = vsub.s32 %v1540, %v1542
        %v1544 = vrot.slane %v1516, %v1543
        %v1545 = vcombine.low %v1523, %v1530
        %v1546 = vcombine.high %v1523, %v1530
        %v1547 = vcombine.low %v1537, %v1544
        %v1548 = vcombine.high %v1537, %v1544
        %v1550 = vunpack.c.l.s4 1966171168
        %v1551 = vunpack.c.0.s8 %v1550
        %v1552 = vlaneseq
        %v1553 = vshrl.u32 %v1552, 7
        %v1554 = vsub.s32 %v1551, %v1553
        %v1555 = vrot.slane %v1545, %v1554
        %v1557 = vunpack.c.l.s4 1966171168
        %v1558 = vunpack.c.0.s8 %v1557
        %v1559 = vlaneseq
        %v1560 = vshrl.u32 %v1559, 7
        %v1561 = vsub.s32 %v1558, %v1560
        %v1562 = vrot.slane %v1546, %v1561
        %v1564 = vunpack.c.l.s4 1966171168
        %v1565 = vunpack.c.0.s8 %v1564
        %v1566 = vlaneseq
        %v1567 = vshrl.u32 %v1566, 7
        %v1568 = vsub.s32 %v1565, %v1567
        %v1569 = vrot.slane %v1547, %v1568
        %v1571 = vunpack.c.l.s4 1966171168
        %v1572 = vunpack.c.0.s8 %v1571
        %v1573 = vlaneseq
        %v1574 = vshrl.u32 %v1573, 7
        %v1575 = vsub.s32 %v1572, %v1574
        %v1576 = vrot.slane %v1548, %v1575
        %v1577 = vcombine.low %v1555, %v1569
        %v1578 = vcombine.low %v1562, %v1576
        %v1579 = vcombine.low %v1399, %v1400
        %v1580 = vcombine.low %v1401, %v1402
        %v1581 = vcombine.low %v1403, %v1404
        %v1582 = vcombine.low %v1405, %v1406
        %v1584 = vunpack.c.l.s4 1966171168
        %v1585 = vunpack.c.0.s8 %v1584
        %v1586 = vlaneseq
        %v1587 = vshrl.u32 %v1586, 7
        %v1588 = vsub.s32 %v1585, %v1587
        %v1589 = vrot.slane %v1579, %v1588
        %v1591 = vunpack.c.l.s4 1966171168
        %v1592 = vunpack.c.0.s8 %v1591
        %v1593 = vlaneseq
        %v1594 = vshrl.u32 %v1593, 7
        %v1595 = vsub.s32 %v1592, %v1594
        %v1596 = vrot.slane %v1580, %v1595
        %v1598 = vunpack.c.l.s4 1966171168
        %v1599 = vunpack.c.0.s8 %v1598
        %v1600 = vlaneseq
        %v1601 = vshrl.u32 %v1600, 7
        %v1602 = vsub.s32 %v1599, %v1601
        %v1603 = vrot.slane %v1581, %v1602
        %v1605 = vunpack.c.l.s4 1966171168
        %v1606 = vunpack.c.0.s8 %v1605
        %v1607 = vlaneseq
        %v1608 = vshrl.u32 %v1607, 7
        %v1609 = vsub.s32 %v1606, %v1608
        %v1610 = vrot.slane %v1582, %v1609
        %v1611 = vcombine.low %v1589, %v1596
        %v1612 = vcombine.high %v1589, %v1596
        %v1613 = vcombine.low %v1603, %v1610
        %v1614 = vcombine.high %v1603, %v1610
        %v1616 = vunpack.c.l.s4 1966171168
        %v1617 = vunpack.c.0.s8 %v1616
        %v1618 = vlaneseq
        %v1619 = vshrl.u32 %v1618, 7
        %v1620 = vsub.s32 %v1617, %v1619
        %v1621 = vrot.slane %v1611, %v1620
        %v1623 = vunpack.c.l.s4 1966171168
        %v1624 = vunpack.c.0.s8 %v1623
        %v1625 = vlaneseq
        %v1626 = vshrl.u32 %v1625, 7
        %v1627 = vsub.s32 %v1624, %v1626
        %v1628 = vrot.slane %v1612, %v1627
        %v1630 = vunpack.c.l.s4 1966171168
        %v1631 = vunpack.c.0.s8 %v1630
        %v1632 = vlaneseq
        %v1633 = vshrl.u32 %v1632, 7
        %v1634 = vsub.s32 %v1631, %v1633
        %v1635 = vrot.slane %v1613, %v1634
        %v1637 = vunpack.c.l.s4 1966171168
        %v1638 = vunpack.c.0.s8 %v1637
        %v1639 = vlaneseq
        %v1640 = vshrl.u32 %v1639, 7
        %v1641 = vsub.s32 %v1638, %v1640
        %v1642 = vrot.slane %v1614, %v1641
        %v1643 = vcombine.low %v1621, %v1635
        %v1644 = vcombine.low %v1628, %v1642
        %v1645 = vcombine.low %v1407, %v1408
        %v1646 = vcombine.low %v1409, %v1410
        %v1647 = vcombine.low %v1411, %v1412
        %v1648 = vcombine.low %v1413, %v1414
        %v1650 = vunpack.c.l.s4 1966171168
        %v1651 = vunpack.c.0.s8 %v1650
        %v1652 = vlaneseq
        %v1653 = vshrl.u32 %v1652, 7
        %v1654 = vsub.s32 %v1651, %v1653
        %v1655 = vrot.slane %v1645, %v1654
        %v1657 = vunpack.c.l.s4 1966171168
        %v1658 = vunpack.c.0.s8 %v1657
        %v1659 = vlaneseq
        %v1660 = vshrl.u32 %v1659, 7
        %v1661 = vsub.s32 %v1658, %v1660
        %v1662 = vrot.slane %v1646, %v1661
        %v1664 = vunpack.c.l.s4 1966171168
        %v1665 = vunpack.c.0.s8 %v1664
        %v1666 = vlaneseq
        %v1667 = vshrl.u32 %v1666, 7
        %v1668 = vsub.s32 %v1665, %v1667
        %v1669 = vrot.slane %v1647, %v1668
        %v1671 = vunpack.c.l.s4 1966171168
        %v1672 = vunpack.c.0.s8 %v1671
        %v1673 = vlaneseq
        %v1674 = vshrl.u32 %v1673, 7
        %v1675 = vsub.s32 %v1672, %v1674
        %v1676 = vrot.slane %v1648, %v1675
        %v1677 = vcombine.low %v1655, %v1662
        %v1678 = vcombine.high %v1655, %v1662
        %v1679 = vcombine.low %v1669, %v1676
        %v1680 = vcombine.high %v1669, %v1676
        %v1682 = vunpack.c.l.s4 1966171168
        %v1683 = vunpack.c.0.s8 %v1682
        %v1684 = vlaneseq
        %v1685 = vshrl.u32 %v1684, 7
        %v1686 = vsub.s32 %v1683, %v1685
        %v1687 = vrot.slane %v1677, %v1686
        %v1689 = vunpack.c.l.s4 1966171168
        %v1690 = vunpack.c.0.s8 %v1689
        %v1691 = vlaneseq
        %v1692 = vshrl.u32 %v1691, 7
        %v1693 = vsub.s32 %v1690, %v1692
        %v1694 = vrot.slane %v1678, %v1693
        %v1696 = vunpack.c.l.s4 1966171168
        %v1697 = vunpack.c.0.s8 %v1696
        %v1698 = vlaneseq
        %v1699 = vshrl.u32 %v1698, 7
        %v1700 = vsub.s32 %v1697, %v1699
        %v1701 = vrot.slane %v1679, %v1700
        %v1703 = vunpack.c.l.s4 1966171168
        %v1704 = vunpack.c.0.s8 %v1703
        %v1705 = vlaneseq
        %v1706 = vshrl.u32 %v1705, 7
        %v1707 = vsub.s32 %v1704, %v1706
        %v1708 = vrot.slane %v1680, %v1707
        %v1709 = vcombine.low %v1687, %v1701
        %v1710 = vcombine.low %v1694, %v1708
        %1719 = vst [vmem:[%s320] sm:$0xff] %v1511
        %1720 = vst [vmem:[%s320 + $0x8] sm:$0xff] %v1512
        %1721 = vst [vmem:[%s320 + $0x10] sm:$0xff] %v1577
        %1722 = vst [vmem:[%s320 + $0x18] sm:$0xff] %v1578
        %1723 = vst [vmem:[%s320 + $0x20] sm:$0xff] %v1643
        %1724 = vst [vmem:[%s320 + $0x28] sm:$0xff] %v1644
        %1725 = vst [vmem:[%s320 + $0x30] sm:$0xff] %v1709
        %1726 = vst [vmem:[%s320 + $0x38] sm:$0xff] %v1710
        %s1727 = sand.u32 %s84, 1
        %s1728 = sand.u32 %s84, 1
        %s1729 = smul.addr %s1728, 64
        %s1730 = scalar_lea.vmem [#allocation3], %s1729
        // Predicated region
        $region70: #{encoder_caps_forward.5} parent=64 // pred_check
          %p1731 = pneg %p94
        $region71: #{encoder_caps_forward.5} parent=64 // pred_check_branch
          %1733 = sbr.rel (%p1731) target = $region73
        $region72: #{encoder_caps_forward.5} parent=64 // pred_region
          %s1734 = smul.u32 2, %s18
          %s1735 = smul.addr %s17, 16
          %s1736 = sadd.s32 %s1734, %s1735
          %s1737 = smul.addr %s1736, 8
          %s1738 = scalar_lea.vmem %s2, %s1737
          // Predicated region
          $region74: #{encoder_caps_forward.5} parent=72 // pred_check
            _
          $region75: #{encoder_caps_forward.5} parent=72 // pred_check_branch
            %1740 = sbr.rel (0) target = $region77
          $region76: #{encoder_caps_forward.5} parent=72 // pred_region
            // Predicated region
            $region78: #{encoder_caps_forward.5} parent=76 // pred_check
              _
            $region79: #{encoder_caps_forward.5} parent=76 // pred_check_branch
              %1742 = sbr.rel (0) target = $region81
            $region80: #{encoder_caps_forward.5} parent=76 // pred_region
              loop: start=0, step=1, limit=1
              $region82: #{encoder_caps_forward.5} parent=80 // loop_pre_header
                _
              $region83: #{encoder_caps_forward.5} parent=80 // loop_header
                %s1744 = sphi 0, %s1748
                %p1745 = scmp.ge.s32.totalorder %s1744, 1
                %s1749 = sphi %s1730, %s1730
                %s1750 = sphi %s1738, %s1738
              $region84: #{encoder_caps_forward.5} parent=80 // loop_header_branch
                %1747 = sbr.rel (%p1745) target = $region88
              $region85: #{encoder_caps_forward.5} parent=80 // loop_body
                %v1751 = vld [vmem:[%s1749] sm:$0xff]
                %1752 = vst [vmem:[%s1750] sm:$0xff] %v1751
                %v1753 = vld [vmem:[%s1749 + $0x8] sm:$0xff]
                %1754 = vst [vmem:[%s1750 + $0x8] sm:$0xff] %v1753
                %v1755 = vld [vmem:[%s1749 + $0x10] sm:$0xff]
                %1756 = vst [vmem:[%s1750 + $0x20] sm:$0xff] %v1755
                %v1757 = vld [vmem:[%s1749 + $0x18] sm:$0xff]
                %1758 = vst [vmem:[%s1750 + $0x28] sm:$0xff] %v1757
                %v1759 = vld [vmem:[%s1749 + $0x20] sm:$0xff]
                %1760 = vst [vmem:[%s1750 + $0x40] sm:$0xff] %v1759
                %v1761 = vld [vmem:[%s1749 + $0x28] sm:$0xff]
                %1762 = vst [vmem:[%s1750 + $0x48] sm:$0xff] %v1761
                %v1763 = vld [vmem:[%s1749 + $0x30] sm:$0xff]
                %1764 = vst [vmem:[%s1750 + $0x60] sm:$0xff] %v1763
                %v1765 = vld [vmem:[%s1749 + $0x38] sm:$0xff]
                %1766 = vst [vmem:[%s1750 + $0x68] sm:$0xff] %v1765
              $region86: #{encoder_caps_forward.5} parent=80 // loop_footer
                %s1748 = sadd.s32 1, %s1744
              $region87: #{encoder_caps_forward.5} parent=80 // loop_footer_branch
                %1743 = sbr.rel target = $region83
              $region88: #{encoder_caps_forward.5} parent=80 // loop_exit
                _
            $region81: #{encoder_caps_forward.5} parent=76 // pred_fallthru
              _
            // Predicated region
            $region89: #{encoder_caps_forward.5} parent=76 // pred_check
              _
            $region90: #{encoder_caps_forward.5} parent=76 // pred_check_branch
              %1768 = sbr.rel target = $region92
            $region91: #{encoder_caps_forward.5} parent=76 // pred_region
              _
            $region92: #{encoder_caps_forward.5} parent=76 // pred_fallthru
              _
          $region77: #{encoder_caps_forward.5} parent=72 // pred_fallthru
            _
          %1769 = vnop
        $region73: #{encoder_caps_forward.5} parent=64 // pred_fallthru
          _
      $region65: #{encoder_caps_forward.5} parent=5 // pred_fallthru
        _
      %p1770 = scmp.le.s32.totalorder 2, %s8
      // Predicated region
      $region93: #{encoder_caps_forward.5} parent=5 // pred_check
        %p1771 = pneg %p1770
      $region94: #{encoder_caps_forward.5} parent=5 // pred_check_branch
        %1773 = sbr.rel (%p1771) target = $region96
      $region95: #{encoder_caps_forward.5} parent=5 // pred_region
        %s1774 = ssub.s32 %s8, 2
        // Predicated region
        $region97: #{encoder_caps_forward.5} parent=95 // pred_check
          %p1775 = pneg %p100
        $region98: #{encoder_caps_forward.5} parent=95 // pred_check_branch
          %1777 = sbr.rel (%p1775) target = $region100
        $region99: #{encoder_caps_forward.5} parent=95 // pred_region
          %s1778 = sand.u32 %s85, 1
          %s1779 = sand.u32 %s85, 1
          %s1780 = smul.addr %s1779, 64
          %s1781 = scalar_lea.vmem [#allocation3], %s1780
        $region100: #{encoder_caps_forward.5} parent=95 // pred_fallthru
          _
      $region96: #{encoder_caps_forward.5} parent=5 // pred_fallthru
        _
    $region6: #{encoder_caps_forward.5} parent=1 // loop_footer
      %s12 = sadd.s32 1, %s8
    $region7: #{encoder_caps_forward.5} parent=1 // loop_footer_branch
      %7 = sbr.rel target = $region3
    $region8: #{encoder_caps_forward.5} parent=1 // loop_exit
      _

// kernel: encoder_caps_forward.4
$region0: #{encoder_caps_forward.4}
  #allocation0 [shape = 'u32[]', space=smem, size = 0x4, offset = 0x4, fixed_abs, tag = 'smem constant byte address 0x4 - core index']
  #allocation1 [shape = 'u32[144,128]{1,0:T(1,128)}', space=vmem, size = 0x12000, scoped, tag = 'internal scratch']
  %s0 = inlined_call_operand.vmem [shape: bf16[32,216], index: 0, kind: input, shape index: {}]
  %s1 = inlined_call_operand.vmem [shape: bf16[216,512], index: 1, kind: input, shape index: {}]
  %s2 = inlined_call_operand.vmem [shape: f32[32,512], index: 2, kind: output, shape index: {}]
  %s3 = sld [smem:[#allocation0]]
  $region98: #{encoder_caps_forward.4} parent=0
    _
  %s5 = ssub.s32 1, %s3
  %s6 = scalar_select 0, %s5, %s3
  $region1: #{encoder_caps_forward.4} parent=0
    #allocation2 [shape = 'u8[221184]{0}', space=vmem, size = 0x36000, scoped, tag = 'input window, operand 1']
    #allocation3 [shape = 'u8[65536]{0}', space=vmem, size = 0x10000, scoped, tag = 'output window, operand 0']
    loop: start=0, step=1, limit=4
    $region2: #{encoder_caps_forward.4} parent=1 // loop_pre_header
      _
    $region3: #{encoder_caps_forward.4} parent=1 // loop_header
      %s8 = sphi 0, %s12
      %p9 = scmp.ge.s32.totalorder %s8, 4
      %s16 = sphi 0, %s16
      %s18 = sphi 0, %s16
      %s19 = sphi 0, %s18
      %s33 = sphi 0, %s19
      %s39 = sphi 0, %s41
      %s42 = sphi 0, %s39
      %s43 = sphi 0, %s42
      %s59 = sphi 0, %s43
      %s65 = sphi 0, %s67
      %s68 = sphi 0, %s65
      %s69 = sphi 0, %s68
      %s85 = sphi 0, %s69
    $region4: #{encoder_caps_forward.4} parent=1 // loop_header_branch
      %11 = sbr.rel (%p9) target = $region8
    $region5: #{encoder_caps_forward.4} parent=1 // loop_body
      %s13 = ssub.s32 %s8, 1
      %s14 = ssub.s32 %s8, 2
      %s15 = sadd.s32 %s8, 1
      %s17 = sadd.s32 %s16, 1
      %p20 = scmp.eq.s32.totalorder %s8, 1
      %p21 = scmp.ne.s32.totalorder %s16, %s18
      %p22 = scmp.eq.s32.totalorder %s8, 0
      %p23 = por %p21, %p22
      %p24 = scmp.ne.s32.totalorder %s16, %s18
      %p25 = scmp.eq.s32.totalorder %s13, 1
      %p26 = por %p24, %p25
      %p27 = scmp.ne.s32.totalorder %s18, %s19
      %p28 = scmp.eq.s32.totalorder %s13, 0
      %p29 = por %p27, %p28
      %p30 = scmp.ne.s32.totalorder %s18, %s19
      %p31 = scmp.eq.s32.totalorder %s14, 1
      %p32 = por %p30, %p31
      %p34 = scmp.ne.s32.totalorder %s19, %s33
      %p35 = scmp.eq.s32.totalorder %s14, 0
      %p36 = por %p34, %p35
      %s37 = ssub.s32 %s8, %s15
      %p38 = scmp.eq.s32.totalorder %s37, 0
      %s40 = sadd.s32 %s39, 1
      %s41 = scalar_select %p38, %s39, %s40
      %p44 = pneg %p38
      %p45 = scmp.eq.s32.totalorder %s8, 1
      %p46 = por %p44, %p45
      %p47 = scmp.ne.s32.totalorder %s39, %s42
      %p48 = scmp.eq.s32.totalorder %s8, 0
      %p49 = por %p47, %p48
      %p50 = scmp.ne.s32.totalorder %s39, %s42
      %p51 = scmp.eq.s32.totalorder %s13, 1
      %p52 = por %p50, %p51
      %p53 = scmp.ne.s32.totalorder %s42, %s43
      %p54 = scmp.eq.s32.totalorder %s13, 0
      %p55 = por %p53, %p54
      %p56 = scmp.ne.s32.totalorder %s42, %s43
      %p57 = scmp.eq.s32.totalorder %s14, 1
      %p58 = por %p56, %p57
      %p60 = scmp.ne.s32.totalorder %s43, %s59
      %p61 = scmp.eq.s32.totalorder %s14, 0
      %p62 = por %p60, %p61
      %s63 = ssub.s32 %s8, %s15
      %p64 = scmp.eq.s32.totalorder %s63, 0
      %s66 = sadd.s32 %s65, 1
      %s67 = scalar_select %p64, %s65, %s66
      %p70 = pneg %p64
      %p71 = scmp.eq.s32.totalorder %s8, 1
      %p72 = por %p70, %p71
      %p73 = scmp.ne.s32.totalorder %s65, %s68
      %p74 = scmp.eq.s32.totalorder %s8, 0
      %p75 = por %p73, %p74
      %p76 = scmp.ne.s32.totalorder %s65, %s68
      %p77 = scmp.eq.s32.totalorder %s13, 1
      %p78 = por %p76, %p77
      %p79 = scmp.ne.s32.totalorder %s68, %s69
      %p80 = scmp.eq.s32.totalorder %s13, 0
      %p81 = por %p79, %p80
      %p82 = scmp.ne.s32.totalorder %s68, %s69
      %p83 = scmp.eq.s32.totalorder %s14, 1
      %p84 = por %p82, %p83
      %p86 = scmp.ne.s32.totalorder %s69, %s85
      %p87 = scmp.eq.s32.totalorder %s14, 0
      %p88 = por %p86, %p87
      %p89 = scmp.le.s32.totalorder 1, %s8
      %p90 = scmp.lt.s32.totalorder %s8, 3
      %p91 = pnand %p89, %p90
      %p92 = pneg %p91
      // Predicated region
      $region9: #{encoder_caps_forward.4} parent=5 // pred_check
        _
      $region10: #{encoder_caps_forward.4} parent=5 // pred_check_branch
        %94 = sbr.rel (%p91) target = $region12
      $region11: #{encoder_caps_forward.4} parent=5 // pred_region
        %s95 = ssub.s32 %s8, 1
        // Predicated region
        $region13: #{encoder_caps_forward.4} parent=11 // pred_check
          %p96 = pneg %p29
        $region14: #{encoder_caps_forward.4} parent=11 // pred_check_branch
          %98 = sbr.rel (%p96) target = $region16
        $region15: #{encoder_caps_forward.4} parent=11 // pred_region
          _
        $region16: #{encoder_caps_forward.4} parent=11 // pred_fallthru
          _
      $region12: #{encoder_caps_forward.4} parent=5 // pred_fallthru
        _
      %p99 = scmp.lt.s32.totalorder %s8, 2
      // Predicated region
      $region17: #{encoder_caps_forward.4} parent=5 // pred_check
        %p100 = pneg %p99
      $region18: #{encoder_caps_forward.4} parent=5 // pred_check_branch
        %102 = sbr.rel (%p100) target = $region20
      $region19: #{encoder_caps_forward.4} parent=5 // pred_region
        // Predicated region
        $region21: #{encoder_caps_forward.4} parent=19 // pred_check
          %p103 = pneg %p49
        $region22: #{encoder_caps_forward.4} parent=19 // pred_check_branch
          %105 = sbr.rel (%p103) target = $region24
        $region23: #{encoder_caps_forward.4} parent=19 // pred_region
          %s106 = sand.u32 %s39, 1
          %s107 = sand.u32 %s39, 1
          %s108 = smul.addr %s107, 216
          %s109 = scalar_lea.vmem [#allocation2], %s108
          %s110 = smul.u32 2, %s8
          %s111 = smul.addr %s110, 4
          %s112 = scalar_lea.vmem %s1, %s111
          // Predicated region
          $region25: #{encoder_caps_forward.4} parent=23 // pred_check
            _
          $region26: #{encoder_caps_forward.4} parent=23 // pred_check_branch
            %114 = sbr.rel (0) target = $region28
          $region27: #{encoder_caps_forward.4} parent=23 // pred_region
            // Predicated region
            $region29: #{encoder_caps_forward.4} parent=27 // pred_check
              _
            $region30: #{encoder_caps_forward.4} parent=27 // pred_check_branch
              %116 = sbr.rel (0) target = $region32
            $region31: #{encoder_caps_forward.4} parent=27 // pred_region
              // Predicated region
              $region44: #{encoder_caps_forward.4} parent=31 // pred_check
                _
              $region45: #{encoder_caps_forward.4} parent=31 // pred_check_branch
                %183 = sbr.rel (0) target = $region47
              $region46: #{encoder_caps_forward.4} parent=31 // pred_region
                loop: start=0, step=1, limit=1
                $region48: #{encoder_caps_forward.4} parent=46 // loop_pre_header
                  _
                $region49: #{encoder_caps_forward.4} parent=46 // loop_header
                  %s185 = sphi 0, %s189
                  %p186 = scmp.ge.s32.totalorder %s185, 1
                  %s190 = sphi %s112, %s112
                  %s191 = sphi %s109, %s109
                $region50: #{encoder_caps_forward.4} parent=46 // loop_header_branch
                  %188 = sbr.rel (%p186) target = $region54
                $region51: #{encoder_caps_forward.4} parent=46 // loop_body
                  %v192 = vld [vmem:[%s190] sm:$0xff]
                  %193 = vst [vmem:[%s191] sm:$0xff] %v192
                  %v194 = vld [vmem:[%s190 + $0x10] sm:$0xff]
                  %195 = vst [vmem:[%s191 + $0x8] sm:$0xff] %v194
                  %v196 = vld [vmem:[%s190 + $0x20] sm:$0xff]
                  %197 = vst [vmem:[%s191 + $0x10] sm:$0xff] %v196
                  %v198 = vld [vmem:[%s190 + $0x30] sm:$0xff]
                  %199 = vst [vmem:[%s191 + $0x18] sm:$0xff] %v198
                  %v200 = vld [vmem:[%s190 + $0x40] sm:$0xff]
                  %201 = vst [vmem:[%s191 + $0x20] sm:$0xff] %v200
                  %v202 = vld [vmem:[%s190 + $0x50] sm:$0xff]
                  %203 = vst [vmem:[%s191 + $0x28] sm:$0xff] %v202
                  %v204 = vld [vmem:[%s190 + $0x60] sm:$0xff]
                  %205 = vst [vmem:[%s191 + $0x30] sm:$0xff] %v204
                  %v206 = vld [vmem:[%s190 + $0x70] sm:$0xff]
                  %207 = vst [vmem:[%s191 + $0x38] sm:$0xff] %v206
                  %v208 = vld [vmem:[%s190 + $0x80] sm:$0xff]
                  %209 = vst [vmem:[%s191 + $0x40] sm:$0xff] %v208
                  %v210 = vld [vmem:[%s190 + $0x90] sm:$0xff]
                  %211 = vst [vmem:[%s191 + $0x48] sm:$0xff] %v210
                  %v212 = vld [vmem:[%s190 + $0xa0] sm:$0xff]
                  %213 = vst [vmem:[%s191 + $0x50] sm:$0xff] %v212
                  %v214 = vld [vmem:[%s190 + $0xb0] sm:$0xff]
                  %215 = vst [vmem:[%s191 + $0x58] sm:$0xff] %v214
                  %v216 = vld [vmem:[%s190 + $0xc0] sm:$0xff]
                  %217 = vst [vmem:[%s191 + $0x60] sm:$0xff] %v216
                  %v218 = vld [vmem:[%s190 + $0xd0] sm:$0xff]
                  %219 = vst [vmem:[%s191 + $0x68] sm:$0xff] %v218
                  %v220 = vld [vmem:[%s190 + $0xe0] sm:$0xff]
                  %221 = vst [vmem:[%s191 + $0x70] sm:$0xff] %v220
                  %v222 = vld [vmem:[%s190 + $0xf0] sm:$0xff]
                  %223 = vst [vmem:[%s191 + $0x78] sm:$0xff] %v222
                  %v224 = vld [vmem:[%s190 + $0x100] sm:$0xff]
                  %225 = vst [vmem:[%s191 + $0x80] sm:$0xff] %v224
                  %v226 = vld [vmem:[%s190 + $0x110] sm:$0xff]
                  %227 = vst [vmem:[%s191 + $0x88] sm:$0xff] %v226
                  %v228 = vld [vmem:[%s190 + $0x120] sm:$0xff]
                  %229 = vst [vmem:[%s191 + $0x90] sm:$0xff] %v228
                  %v230 = vld [vmem:[%s190 + $0x130] sm:$0xff]
                  %231 = vst [vmem:[%s191 + $0x98] sm:$0xff] %v230
                  %v232 = vld [vmem:[%s190 + $0x140] sm:$0xff]
                  %233 = vst [vmem:[%s191 + $0xa0] sm:$0xff] %v232
                  %v234 = vld [vmem:[%s190 + $0x150] sm:$0xff]
                  %235 = vst [vmem:[%s191 + $0xa8] sm:$0xff] %v234
                  %v236 = vld [vmem:[%s190 + $0x160] sm:$0xff]
                  %237 = vst [vmem:[%s191 + $0xb0] sm:$0xff] %v236
                  %v238 = vld [vmem:[%s190 + $0x170] sm:$0xff]
                  %239 = vst [vmem:[%s191 + $0xb8] sm:$0xff] %v238
                  %v240 = vld [vmem:[%s190 + $0x180] sm:$0xff]
                  %241 = vst [vmem:[%s191 + $0xc0] sm:$0xff] %v240
                  %v242 = vld [vmem:[%s190 + $0x190] sm:$0xff]
                  %243 = vst [vmem:[%s191 + $0xc8] sm:$0xff] %v242
                  %v244 = vld [vmem:[%s190 + $0x1a0] sm:$0xff]
                  %245 = vst [vmem:[%s191 + $0xd0] sm:$0xff] %v244
                $region52: #{encoder_caps_forward.4} parent=46 // loop_footer
                  %s189 = sadd.s32 1, %s185
                $region53: #{encoder_caps_forward.4} parent=46 // loop_footer_branch
                  %184 = sbr.rel target = $region49
                $region54: #{encoder_caps_forward.4} parent=46 // loop_exit
                  _
              $region47: #{encoder_caps_forward.4} parent=31 // pred_fallthru
                _
              // Predicated region
              $region55: #{encoder_caps_forward.4} parent=31 // pred_check
                _
              $region56: #{encoder_caps_forward.4} parent=31 // pred_check_branch
                %247 = sbr.rel target = $region58
              $region57: #{encoder_caps_forward.4} parent=31 // pred_region
                _
              $region58: #{encoder_caps_forward.4} parent=31 // pred_fallthru
                _
            $region32: #{encoder_caps_forward.4} parent=27 // pred_fallthru
              _
            // Predicated region
            $region33: #{encoder_caps_forward.4} parent=27 // pred_check
              _
            $region34: #{encoder_caps_forward.4} parent=27 // pred_check_branch
              %118 = sbr.rel target = $region36
            $region35: #{encoder_caps_forward.4} parent=27 // pred_region
              loop: start=0, step=1, limit=1
              $region37: #{encoder_caps_forward.4} parent=35 // loop_pre_header
                _
              $region38: #{encoder_caps_forward.4} parent=35 // loop_header
                %s121 = sphi 0, %s125
                %p122 = scmp.ge.s32.totalorder %s121, 1
                %s126 = sphi %s112, %s112
                %s127 = sphi %s109, %s109
              $region39: #{encoder_caps_forward.4} parent=35 // loop_header_branch
                %124 = sbr.rel (%p122) target = $region43
              $region40: #{encoder_caps_forward.4} parent=35 // loop_body
                %v128 = vld [vmem:[%s126] sm:$0xff]
                %129 = vst [vmem:[%s127] sm:$0xff] %v128
                %v130 = vld [vmem:[%s126 + $0x10] sm:$0xff]
                %131 = vst [vmem:[%s127 + $0x8] sm:$0xff] %v130
                %v132 = vld [vmem:[%s126 + $0x20] sm:$0xff]
                %133 = vst [vmem:[%s127 + $0x10] sm:$0xff] %v132
                %v134 = vld [vmem:[%s126 + $0x30] sm:$0xff]
                %135 = vst [vmem:[%s127 + $0x18] sm:$0xff] %v134
                %v136 = vld [vmem:[%s126 + $0x40] sm:$0xff]
                %137 = vst [vmem:[%s127 + $0x20] sm:$0xff] %v136
                %v138 = vld [vmem:[%s126 + $0x50] sm:$0xff]
                %139 = vst [vmem:[%s127 + $0x28] sm:$0xff] %v138
                %v140 = vld [vmem:[%s126 + $0x60] sm:$0xff]
                %141 = vst [vmem:[%s127 + $0x30] sm:$0xff] %v140
                %v142 = vld [vmem:[%s126 + $0x70] sm:$0xff]
                %143 = vst [vmem:[%s127 + $0x38] sm:$0xff] %v142
                %v144 = vld [vmem:[%s126 + $0x80] sm:$0xff]
                %145 = vst [vmem:[%s127 + $0x40] sm:$0xff] %v144
                %v146 = vld [vmem:[%s126 + $0x90] sm:$0xff]
                %147 = vst [vmem:[%s127 + $0x48] sm:$0xff] %v146
                %v148 = vld [vmem:[%s126 + $0xa0] sm:$0xff]
                %149 = vst [vmem:[%s127 + $0x50] sm:$0xff] %v148
                %v150 = vld [vmem:[%s126 + $0xb0] sm:$0xff]
                %151 = vst [vmem:[%s127 + $0x58] sm:$0xff] %v150
                %v152 = vld [vmem:[%s126 + $0xc0] sm:$0xff]
                %153 = vst [vmem:[%s127 + $0x60] sm:$0xff] %v152
                %v154 = vld [vmem:[%s126 + $0xd0] sm:$0xff]
                %155 = vst [vmem:[%s127 + $0x68] sm:$0xff] %v154
                %v156 = vld [vmem:[%s126 + $0xe0] sm:$0xff]
                %157 = vst [vmem:[%s127 + $0x70] sm:$0xff] %v156
                %v158 = vld [vmem:[%s126 + $0xf0] sm:$0xff]
                %159 = vst [vmem:[%s127 + $0x78] sm:$0xff] %v158
                %v160 = vld [vmem:[%s126 + $0x100] sm:$0xff]
                %161 = vst [vmem:[%s127 + $0x80] sm:$0xff] %v160
                %v162 = vld [vmem:[%s126 + $0x110] sm:$0xff]
                %163 = vst [vmem:[%s127 + $0x88] sm:$0xff] %v162
                %v164 = vld [vmem:[%s126 + $0x120] sm:$0xff]
                %165 = vst [vmem:[%s127 + $0x90] sm:$0xff] %v164
                %v166 = vld [vmem:[%s126 + $0x130] sm:$0xff]
                %167 = vst [vmem:[%s127 + $0x98] sm:$0xff] %v166
                %v168 = vld [vmem:[%s126 + $0x140] sm:$0xff]
                %169 = vst [vmem:[%s127 + $0xa0] sm:$0xff] %v168
                %v170 = vld [vmem:[%s126 + $0x150] sm:$0xff]
                %171 = vst [vmem:[%s127 + $0xa8] sm:$0xff] %v170
                %v172 = vld [vmem:[%s126 + $0x160] sm:$0xff]
                %173 = vst [vmem:[%s127 + $0xb0] sm:$0xff] %v172
                %v174 = vld [vmem:[%s126 + $0x170] sm:$0xff]
                %175 = vst [vmem:[%s127 + $0xb8] sm:$0xff] %v174
                %v176 = vld [vmem:[%s126 + $0x180] sm:$0xff]
                %177 = vst [vmem:[%s127 + $0xc0] sm:$0xff] %v176
                %v178 = vld [vmem:[%s126 + $0x190] sm:$0xff]
                %179 = vst [vmem:[%s127 + $0xc8] sm:$0xff] %v178
                %v180 = vld [vmem:[%s126 + $0x1a0] sm:$0xff]
                %181 = vst [vmem:[%s127 + $0xd0] sm:$0xff] %v180
              $region41: #{encoder_caps_forward.4} parent=35 // loop_footer
                %s125 = sadd.s32 1, %s121
              $region42: #{encoder_caps_forward.4} parent=35 // loop_footer_branch
                %120 = sbr.rel target = $region38
              $region43: #{encoder_caps_forward.4} parent=35 // loop_exit
                _
            $region36: #{encoder_caps_forward.4} parent=27 // pred_fallthru
              _
          $region28: #{encoder_caps_forward.4} parent=23 // pred_fallthru
            _
          %248 = vnop
        $region24: #{encoder_caps_forward.4} parent=19 // pred_fallthru
          _
      $region20: #{encoder_caps_forward.4} parent=5 // pred_fallthru
        _
      %p249 = scmp.le.s32.totalorder 1, %s8
      %p250 = scmp.lt.s32.totalorder %s8, 3
      %p251 = pnand %p249, %p250
      %p252 = pneg %p251
      // Predicated region
      $region59: #{encoder_caps_forward.4} parent=5 // pred_check
        _
      $region60: #{encoder_caps_forward.4} parent=5 // pred_check_branch
        %254 = sbr.rel (%p251) target = $region62
      $region61: #{encoder_caps_forward.4} parent=5 // pred_region
        %s255 = ssub.s32 %s8, 1
        %s256 = sand.u32 %s42, 1
        %s257 = sand.u32 %s42, 1
        %s258 = smul.addr %s257, 216
        %s259 = scalar_lea.vmem [#allocation2], %s258
        // Predicated region
        $region63: #{encoder_caps_forward.4} parent=61 // pred_check
          %p260 = pneg %p55
        $region64: #{encoder_caps_forward.4} parent=61 // pred_check_branch
          %262 = sbr.rel (%p260) target = $region66
        $region65: #{encoder_caps_forward.4} parent=61 // pred_region
          _
        $region66: #{encoder_caps_forward.4} parent=61 // pred_fallthru
          _
        %p263 = pneg %p29
        %p264 = pneg %p26
        %s265 = sand.u32 %s42, 1
        %s266 = sand.u32 %s42, 1
        %s267 = smul.addr %s266, 216
        %s268 = scalar_lea.vmem [#allocation2], %s267
        %p269 = pneg %p55
        %p270 = pneg %p52
        %p271 = pneg %p81
        %p272 = pneg %p78
        %s273 = sand.u32 %s68, 1
        %s274 = sand.u32 %s68, 1
        %s275 = smul.addr %s274, 64
        %s276 = scalar_lea.vmem [#allocation3], %s275
        %s277 = smul.u32 2, %s13
        %s278 = smul.u32 2, %s13
        %v280 = vld [vmem:[%s0] sm:$0xff]
        %v281 = vld [vmem:[%s0 + $0x8] sm:$0xff]
        %v282 = vld [vmem:[%s0 + $0x10] sm:$0xff]
        %v283 = vld [vmem:[%s0 + $0x18] sm:$0xff]
        %v284 = vld [vmem:[%s259] sm:$0xff]
        %v285 = vld [vmem:[%s259 + $0x8] sm:$0xff]
        %v286 = vld [vmem:[%s259 + $0x10] sm:$0xff]
        %v287 = vld [vmem:[%s259 + $0x18] sm:$0xff]
        %v288 = vld [vmem:[%s259 + $0x20] sm:$0xff]
        %v289 = vld [vmem:[%s259 + $0x28] sm:$0xff]
        %v290 = vld [vmem:[%s259 + $0x30] sm:$0xff]
        %v291 = vld [vmem:[%s259 + $0x38] sm:$0xff]
        %v292 = vld [vmem:[%s259 + $0x40] sm:$0xff]
        %v293 = vld [vmem:[%s259 + $0x48] sm:$0xff]
        %v294 = vld [vmem:[%s259 + $0x50] sm:$0xff]
        %v295 = vld [vmem:[%s259 + $0x58] sm:$0xff]
        %v296 = vld [vmem:[%s259 + $0x60] sm:$0xff]
        %v297 = vld [vmem:[%s259 + $0x68] sm:$0xff]
        %v298 = vld [vmem:[%s259 + $0x70] sm:$0xff]
        %v299 = vld [vmem:[%s259 + $0x78] sm:$0xff]
        %v300 = vld [vmem:[%s259 + $0x80] sm:$0xff]
        %v301 = vld [vmem:[%s259 + $0x88] sm:$0xff]
        %v302 = vld [vmem:[%s259 + $0x90] sm:$0xff]
        %v303 = vld [vmem:[%s259 + $0x98] sm:$0xff]
        %v304 = vld [vmem:[%s259 + $0xa0] sm:$0xff]
        %v305 = vld [vmem:[%s259 + $0xa8] sm:$0xff]
        %v306 = vld [vmem:[%s259 + $0xb0] sm:$0xff]
        %v307 = vld [vmem:[%s259 + $0xb8] sm:$0xff]
        %v308 = vld [vmem:[%s259 + $0xc0] sm:$0xff]
        %v309 = vld [vmem:[%s259 + $0xc8] sm:$0xff]
        %v310 = vld [vmem:[%s259 + $0xd0] sm:$0xff]
        %v315 = vunpack.c.l.b16 %v280
        %v316 = vunpack.c.h.b16 %v280
        %v317 = vunpack.c.l.b16 %v281
        %v318 = vunpack.c.h.b16 %v281
        %v319 = vunpack.c.l.b16 %v282
        %v320 = vunpack.c.h.b16 %v282
        %v321 = vunpack.c.l.b16 %v283
        %v322 = vunpack.c.h.b16 %v283
        %v323 = vpack.c.b16 %v317, %v315
        %v324 = vpack.c.b16 %v318, %v316
        %v325 = vpack.c.b16 %v321, %v319
        %v326 = vpack.c.b16 %v322, %v320
        %v356 = vunpack.c.l.b16 %v284
        %v357 = vunpack.c.h.b16 %v284
        %v358 = vunpack.c.l.b16 %v285
        %v359 = vunpack.c.h.b16 %v285
        %v360 = vunpack.c.l.b16 %v286
        %v361 = vunpack.c.h.b16 %v286
        %v362 = vunpack.c.l.b16 %v287
        %v363 = vunpack.c.h.b16 %v287
        %v364 = vunpack.c.l.b16 %v288
        %v365 = vunpack.c.h.b16 %v288
        %v366 = vunpack.c.l.b16 %v289
        %v367 = vunpack.c.h.b16 %v289
        %v368 = vunpack.c.l.b16 %v290
        %v369 = vunpack.c.h.b16 %v290
        %v370 = vunpack.c.l.b16 %v291
        %v371 = vunpack.c.h.b16 %v291
        %v372 = vunpack.c.l.b16 %v292
        %v373 = vunpack.c.h.b16 %v292
        %v374 = vunpack.c.l.b16 %v293
        %v375 = vunpack.c.h.b16 %v293
        %v376 = vunpack.c.l.b16 %v294
        %v377 = vunpack.c.h.b16 %v294
        %v378 = vunpack.c.l.b16 %v295
        %v379 = vunpack.c.h.b16 %v295
        %v380 = vunpack.c.l.b16 %v296
        %v381 = vunpack.c.h.b16 %v296
        %v382 = vunpack.c.l.b16 %v297
        %v383 = vunpack.c.h.b16 %v297
        %v384 = vunpack.c.l.b16 %v298
        %v385 = vunpack.c.h.b16 %v298
        %v386 = vunpack.c.l.b16 %v299
        %v387 = vunpack.c.h.b16 %v299
        %v388 = vunpack.c.l.b16 %v300
        %v389 = vunpack.c.h.b16 %v300
        %v390 = vunpack.c.l.b16 %v301
        %v391 = vunpack.c.h.b16 %v301
        %v392 = vunpack.c.l.b16 %v302
        %v393 = vunpack.c.h.b16 %v302
        %v394 = vunpack.c.l.b16 %v303
        %v395 = vunpack.c.h.b16 %v303
        %v396 = vunpack.c.l.b16 %v304
        %v397 = vunpack.c.h.b16 %v304
        %v398 = vunpack.c.l.b16 %v305
        %v399 = vunpack.c.h.b16 %v305
        %v400 = vunpack.c.l.b16 %v306
        %v401 = vunpack.c.h.b16 %v306
        %v402 = vunpack.c.l.b16 %v307
        %v403 = vunpack.c.h.b16 %v307
        %v404 = vunpack.c.l.b16 %v308
        %v405 = vunpack.c.h.b16 %v308
        %v406 = vunpack.c.l.b16 %v309
        %v407 = vunpack.c.h.b16 %v309
        %v408 = vunpack.c.l.b16 %v310
        %v409 = vunpack.c.h.b16 %v310
        %v410 = vpack.c.b16 %v358, %v356
        %v411 = vpack.c.b16 %v359, %v357
        %v412 = vpack.c.b16 %v362, %v360
        %v413 = vpack.c.b16 %v363, %v361
        %v414 = vpack.c.b16 %v366, %v364
        %v415 = vpack.c.b16 %v367, %v365
        %v416 = vpack.c.b16 %v370, %v368
        %v417 = vpack.c.b16 %v371, %v369
        %v418 = vpack.c.b16 %v374, %v372
        %v419 = vpack.c.b16 %v375, %v373
        %v420 = vpack.c.b16 %v378, %v376
        %v421 = vpack.c.b16 %v379, %v377
        %v422 = vpack.c.b16 %v382, %v380
        %v423 = vpack.c.b16 %v383, %v381
        %v424 = vpack.c.b16 %v386, %v384
        %v425 = vpack.c.b16 %v387, %v385
        %v426 = vpack.c.b16 %v390, %v388
        %v427 = vpack.c.b16 %v391, %v389
        %v428 = vpack.c.b16 %v394, %v392
        %v429 = vpack.c.b16 %v395, %v393
        %v430 = vpack.c.b16 %v398, %v396
        %v431 = vpack.c.b16 %v399, %v397
        %v432 = vpack.c.b16 %v402, %v400
        %v433 = vpack.c.b16 %v403, %v401
        %v434 = vpack.c.b16 %v406, %v404
        %v435 = vpack.c.b16 %v407, %v405
        %v436 = vpack.c.b16 %v408, %v408
        %v437 = vpack.c.b16 %v409, %v409
        %vm464 = vcmask 719872
        %v466 = vsel %vm464, %v324, 0
        %v469 = vsel %vm464, %v326, 0
        %vm471 = vcmask 1043456
        %v473 = vsel %vm471, %v436, 0
        %v476 = vsel %vm471, %v437, 0
        %478 = vmatprep.subr.bf16.mxu0 %v411
        %479 = vmatpush1.bf16.msra.mxu0 %v410
        %480 = vmatprep.subr.bf16.mxu0 %v413
        %481 = vmatpush1.bf16.msra.mxu0 %v412
        %482 = vmatprep.subr.bf16.mxu0 %v415
        %483 = vmatpush1.bf16.msra.mxu0 %v414
        %484 = vmatprep.subr.bf16.mxu0 %v417
        %485 = vmatpush1.bf16.msra.mxu0 %v416
        %486 = vmatprep.subr.bf16.mxu0 %v419
        %487 = vmatpush1.bf16.msra.mxu0 %v418
        %488 = vmatprep.subr.bf16.mxu0 %v421
        %489 = vmatpush1.bf16.msra.mxu0 %v420
        %490 = vmatprep.subr.bf16.mxu0 %v423
        %491 = vmatpush1.bf16.msra.mxu0 %v422
        %492 = vmatprep.subr.bf16.mxu0 %v425
        %493 = vmatpush1.bf16.msra.mxu0 %v424
        %494 = vmatprep.subr.bf16.mxu0 %v427
        %495 = vmatpush1.bf16.msra.mxu0 %v426
        %496 = vmatprep.subr.bf16.mxu0 %v429
        %497 = vmatpush1.bf16.msra.mxu0 %v428
        %498 = vmatprep.subr.bf16.mxu0 %v431
        %499 = vmatpush1.bf16.msra.mxu0 %v430
        %500 = vmatprep.subr.bf16.mxu0 %v433
        %501 = vmatpush1.bf16.msra.mxu0 %v432
        %502 = vmatprep.subr.bf16.mxu0 %v435
        %503 = vmatpush1.bf16.msra.mxu0 %v434
        %504 = vmatprep.subr.bf16.mxu0 %v476
        %505 = vmatpush1.bf16.msra.mxu0 %v473
        %506 = vmatprep.subr.bf16.mxu0 0
        %507 = vmatpush1.bf16.msra.mxu0 0
        %508 = vmatprep.subr.bf16.mxu0 0
        %509 = vmatpush1.bf16.msra.mxu0 0
        %510 = vmatprep.mubr.bf16.mxu0 %v466
        %511 = vmatmul.mubr.bf16.gmra.mrb[0].mxu0 %v323
        %v512 = vpop.f32.mrb[0].mxu0
        %v513 = vadd.f32 0.0, %v512
        %v514 = vpop.f32.mrb[0].mxu0
        %v515 = vadd.f32 0.0, %v514
        %v516 = vpop.f32.mrb[0].mxu0
        %v517 = vadd.f32 0.0, %v516
        %v518 = vpop.f32.mrb[0].mxu0
        %v519 = vadd.f32 0.0, %v518
        %520 = vmatprep.mubr.bf16.mxu0 %v469
        %521 = vmatmul.mubr.bf16.gmra.mrb[0].mxu0 %v325
        %v522 = vpop.f32.mrb[0].mxu0
        %v523 = vadd.f32 0.0, %v522
        %v524 = vpop.f32.mrb[0].mxu0
        %v525 = vadd.f32 0.0, %v524
        %v526 = vpop.f32.mrb[0].mxu0
        %v527 = vadd.f32 0.0, %v526
        %v528 = vpop.f32.mrb[0].mxu0
        %v529 = vadd.f32 0.0, %v528
        %530 = vdwg.mxu0
        %531 = vst [vmem:[%s276] sm:$0xff] %v513
        %532 = vst [vmem:[%s276 + $0x8] sm:$0xff] %v515
        %533 = vst [vmem:[%s276 + $0x10] sm:$0xff] %v517
        %534 = vst [vmem:[%s276 + $0x18] sm:$0xff] %v519
        %535 = vst [vmem:[%s276 + $0x20] sm:$0xff] %v523
        %536 = vst [vmem:[%s276 + $0x28] sm:$0xff] %v525
        %537 = vst [vmem:[%s276 + $0x30] sm:$0xff] %v527
        %538 = vst [vmem:[%s276 + $0x38] sm:$0xff] %v529
        %s539 = sand.u32 %s68, 1
        %s540 = sand.u32 %s68, 1
        %s541 = smul.addr %s540, 64
        %s542 = scalar_lea.vmem [#allocation3], %s541
        // Predicated region
        $region67: #{encoder_caps_forward.4} parent=61 // pred_check
          %p543 = pneg %p78
        $region68: #{encoder_caps_forward.4} parent=61 // pred_check_branch
          %545 = sbr.rel (%p543) target = $region70
        $region69: #{encoder_caps_forward.4} parent=61 // pred_region
          %s546 = smul.u32 2, %s13
          %s547 = smul.addr %s546, 8
          %s548 = scalar_lea.vmem %s2, %s547
          // Predicated region
          $region71: #{encoder_caps_forward.4} parent=69 // pred_check
            _
          $region72: #{encoder_caps_forward.4} parent=69 // pred_check_branch
            %550 = sbr.rel (0) target = $region74
          $region73: #{encoder_caps_forward.4} parent=69 // pred_region
            // Predicated region
            $region75: #{encoder_caps_forward.4} parent=73 // pred_check
              _
            $region76: #{encoder_caps_forward.4} parent=73 // pred_check_branch
              %552 = sbr.rel (0) target = $region78
            $region77: #{encoder_caps_forward.4} parent=73 // pred_region
              loop: start=0, step=1, limit=1
              $region79: #{encoder_caps_forward.4} parent=77 // loop_pre_header
                _
              $region80: #{encoder_caps_forward.4} parent=77 // loop_header
                %s554 = sphi 0, %s558
                %p555 = scmp.ge.s32.totalorder %s554, 1
                %s559 = sphi %s542, %s542
                %s560 = sphi %s548, %s548
              $region81: #{encoder_caps_forward.4} parent=77 // loop_header_branch
                %557 = sbr.rel (%p555) target = $region85
              $region82: #{encoder_caps_forward.4} parent=77 // loop_body
                %v561 = vld [vmem:[%s559] sm:$0xff]
                %562 = vst [vmem:[%s560] sm:$0xff] %v561
                %v563 = vld [vmem:[%s559 + $0x8] sm:$0xff]
                %564 = vst [vmem:[%s560 + $0x8] sm:$0xff] %v563
                %v565 = vld [vmem:[%s559 + $0x10] sm:$0xff]
                %566 = vst [vmem:[%s560 + $0x20] sm:$0xff] %v565
                %v567 = vld [vmem:[%s559 + $0x18] sm:$0xff]
                %568 = vst [vmem:[%s560 + $0x28] sm:$0xff] %v567
                %v569 = vld [vmem:[%s559 + $0x20] sm:$0xff]
                %570 = vst [vmem:[%s560 + $0x40] sm:$0xff] %v569
                %v571 = vld [vmem:[%s559 + $0x28] sm:$0xff]
                %572 = vst [vmem:[%s560 + $0x48] sm:$0xff] %v571
                %v573 = vld [vmem:[%s559 + $0x30] sm:$0xff]
                %574 = vst [vmem:[%s560 + $0x60] sm:$0xff] %v573
                %v575 = vld [vmem:[%s559 + $0x38] sm:$0xff]
                %576 = vst [vmem:[%s560 + $0x68] sm:$0xff] %v575
              $region83: #{encoder_caps_forward.4} parent=77 // loop_footer
                %s558 = sadd.s32 1, %s554
              $region84: #{encoder_caps_forward.4} parent=77 // loop_footer_branch
                %553 = sbr.rel target = $region80
              $region85: #{encoder_caps_forward.4} parent=77 // loop_exit
                _
            $region78: #{encoder_caps_forward.4} parent=73 // pred_fallthru
              _
            // Predicated region
            $region86: #{encoder_caps_forward.4} parent=73 // pred_check
              _
            $region87: #{encoder_caps_forward.4} parent=73 // pred_check_branch
              %578 = sbr.rel target = $region89
            $region88: #{encoder_caps_forward.4} parent=73 // pred_region
              _
            $region89: #{encoder_caps_forward.4} parent=73 // pred_fallthru
              _
          $region74: #{encoder_caps_forward.4} parent=69 // pred_fallthru
            _
          %579 = vnop
        $region70: #{encoder_caps_forward.4} parent=61 // pred_fallthru
          _
      $region62: #{encoder_caps_forward.4} parent=5 // pred_fallthru
        _
      %p580 = scmp.le.s32.totalorder 2, %s8
      // Predicated region
      $region90: #{encoder_caps_forward.4} parent=5 // pred_check
        %p581 = pneg %p580
      $region91: #{encoder_caps_forward.4} parent=5 // pred_check_branch
        %583 = sbr.rel (%p581) target = $region93
      $region92: #{encoder_caps_forward.4} parent=5 // pred_region
        %s584 = ssub.s32 %s8, 2
        // Predicated region
        $region94: #{encoder_caps_forward.4} parent=92 // pred_check
          %p585 = pneg %p84
        $region95: #{encoder_caps_forward.4} parent=92 // pred_check_branch
          %587 = sbr.rel (%p585) target = $region97
        $region96: #{encoder_caps_forward.4} parent=92 // pred_region
          %s588 = sand.u32 %s69, 1
          %s589 = sand.u32 %s69, 1
          %s590 = smul.addr %s589, 64
          %s591 = scalar_lea.vmem [#allocation3], %s590
        $region97: #{encoder_caps_forward.4} parent=92 // pred_fallthru
          _
      $region93: #{encoder_caps_forward.4} parent=5 // pred_fallthru
        _
    $region6: #{encoder_caps_forward.4} parent=1 // loop_footer
      %s12 = sadd.s32 1, %s8
    $region7: #{encoder_caps_forward.4} parent=1 // loop_footer_branch
      %7 = sbr.rel target = $region3
    $region8: #{encoder_caps_forward.4} parent=1 // loop_exit
      _

// kernel: encoder_caps_forward.6
$region0: #{encoder_caps_forward.6}
  #allocation0 [shape = 'u32[]', space=smem, size = 0x4, offset = 0x4, fixed_abs, tag = 'smem constant byte address 0x4 - core index']
  #allocation1 [shape = 'u32[144,128]{1,0:T(1,128)}', space=vmem, size = 0x12000, scoped, tag = 'internal scratch']
  %s0 = inlined_call_operand.vmem [shape: bf16[32,216], index: 0, kind: input, shape index: {}]
  %s1 = inlined_call_operand.vmem [shape: bf16[216,2048], index: 1, kind: input, shape index: {}]
  %s2 = inlined_call_operand.vmem [shape: f32[32,2048], index: 2, kind: output, shape index: {}]
  %s3 = sld [smem:[#allocation0]]
  $region83: #{encoder_caps_forward.6} parent=0
    _
  %s5 = ssub.s32 1, %s3
  %s6 = scalar_select 0, %s5, %s3
  $region1: #{encoder_caps_forward.6} parent=0
    #allocation2 [shape = 'u8[884736]{0}', space=vmem, size = 0xd8000, scoped, tag = 'input window, operand 1']
    #allocation3 [shape = 'u8[262144]{0}', space=vmem, size = 0x40000, scoped, tag = 'output window, operand 0']
    loop: start=0, step=1, limit=4
    $region2: #{encoder_caps_forward.6} parent=1 // loop_pre_header
      _
    $region3: #{encoder_caps_forward.6} parent=1 // loop_header
      %s8 = sphi 0, %s12
      %p9 = scmp.ge.s32.totalorder %s8, 4
      %s16 = sphi 0, %s16
      %s18 = sphi 0, %s16
      %s19 = sphi 0, %s18
      %s33 = sphi 0, %s19
      %s39 = sphi 0, %s41
      %s42 = sphi 0, %s39
      %s43 = sphi 0, %s42
      %s59 = sphi 0, %s43
      %s65 = sphi 0, %s67
      %s68 = sphi 0, %s65
      %s69 = sphi 0, %s68
      %s85 = sphi 0, %s69
    $region4: #{encoder_caps_forward.6} parent=1 // loop_header_branch
      %11 = sbr.rel (%p9) target = $region8
    $region5: #{encoder_caps_forward.6} parent=1 // loop_body
      %s13 = ssub.s32 %s8, 1
      %s14 = ssub.s32 %s8, 2
      %s15 = sadd.s32 %s8, 1
      %s17 = sadd.s32 %s16, 1
      %p20 = scmp.eq.s32.totalorder %s8, 1
      %p21 = scmp.ne.s32.totalorder %s16, %s18
      %p22 = scmp.eq.s32.totalorder %s8, 0
      %p23 = por %p21, %p22
      %p24 = scmp.ne.s32.totalorder %s16, %s18
      %p25 = scmp.eq.s32.totalorder %s13, 1
      %p26 = por %p24, %p25
      %p27 = scmp.ne.s32.totalorder %s18, %s19
      %p28 = scmp.eq.s32.totalorder %s13, 0
      %p29 = por %p27, %p28
      %p30 = scmp.ne.s32.totalorder %s18, %s19
      %p31 = scmp.eq.s32.totalorder %s14, 1
      %p32 = por %p30, %p31
      %p34 = scmp.ne.s32.totalorder %s19, %s33
      %p35 = scmp.eq.s32.totalorder %s14, 0
      %p36 = por %p34, %p35
      %s37 = ssub.s32 %s8, %s15
      %p38 = scmp.eq.s32.totalorder %s37, 0
      %s40 = sadd.s32 %s39, 1
      %s41 = scalar_select %p38, %s39, %s40
      %p44 = pneg %p38
      %p45 = scmp.eq.s32.totalorder %s8, 1
      %p46 = por %p44, %p45
      %p47 = scmp.ne.s32.totalorder %s39, %s42
      %p48 = scmp.eq.s32.totalorder %s8, 0
      %p49 = por %p47, %p48
      %p50 = scmp.ne.s32.totalorder %s39, %s42
      %p51 = scmp.eq.s32.totalorder %s13, 1
      %p52 = por %p50, %p51
      %p53 = scmp.ne.s32.totalorder %s42, %s43
      %p54 = scmp.eq.s32.totalorder %s13, 0
      %p55 = por %p53, %p54
      %p56 = scmp.ne.s32.totalorder %s42, %s43
      %p57 = scmp.eq.s32.totalorder %s14, 1
      %p58 = por %p56, %p57
      %p60 = scmp.ne.s32.totalorder %s43, %s59
      %p61 = scmp.eq.s32.totalorder %s14, 0
      %p62 = por %p60, %p61
      %s63 = ssub.s32 %s8, %s15
      %p64 = scmp.eq.s32.totalorder %s63, 0
      %s66 = sadd.s32 %s65, 1
      %s67 = scalar_select %p64, %s65, %s66
      %p70 = pneg %p64
      %p71 = scmp.eq.s32.totalorder %s8, 1
      %p72 = por %p70, %p71
      %p73 = scmp.ne.s32.totalorder %s65, %s68
      %p74 = scmp.eq.s32.totalorder %s8, 0
      %p75 = por %p73, %p74
      %p76 = scmp.ne.s32.totalorder %s65, %s68
      %p77 = scmp.eq.s32.totalorder %s13, 1
      %p78 = por %p76, %p77
      %p79 = scmp.ne.s32.totalorder %s68, %s69
      %p80 = scmp.eq.s32.totalorder %s13, 0
      %p81 = por %p79, %p80
      %p82 = scmp.ne.s32.totalorder %s68, %s69
      %p83 = scmp.eq.s32.totalorder %s14, 1
      %p84 = por %p82, %p83
      %p86 = scmp.ne.s32.totalorder %s69, %s85
      %p87 = scmp.eq.s32.totalorder %s14, 0
      %p88 = por %p86, %p87
      %p89 = scmp.le.s32.totalorder 1, %s8
      %p90 = scmp.lt.s32.totalorder %s8, 3
      %p91 = pnand %p89, %p90
      %p92 = pneg %p91
      // Predicated region
      $region9: #{encoder_caps_forward.6} parent=5 // pred_check
        _
      $region10: #{encoder_caps_forward.6} parent=5 // pred_check_branch
        %94 = sbr.rel (%p91) target = $region12
      $region11: #{encoder_caps_forward.6} parent=5 // pred_region
        %s95 = ssub.s32 %s8, 1
        // Predicated region
        $region13: #{encoder_caps_forward.6} parent=11 // pred_check
          %p96 = pneg %p29
        $region14: #{encoder_caps_forward.6} parent=11 // pred_check_branch
          %98 = sbr.rel (%p96) target = $region16
        $region15: #{encoder_caps_forward.6} parent=11 // pred_region
          _
        $region16: #{encoder_caps_forward.6} parent=11 // pred_fallthru
          _
      $region12: #{encoder_caps_forward.6} parent=5 // pred_fallthru
        _
      %p99 = scmp.lt.s32.totalorder %s8, 2
      // Predicated region
      $region17: #{encoder_caps_forward.6} parent=5 // pred_check
        %p100 = pneg %p99
      $region18: #{encoder_caps_forward.6} parent=5 // pred_check_branch
        %102 = sbr.rel (%p100) target = $region20
      $region19: #{encoder_caps_forward.6} parent=5 // pred_region
        // Predicated region
        $region21: #{encoder_caps_forward.6} parent=19 // pred_check
          %p103 = pneg %p49
        $region22: #{encoder_caps_forward.6} parent=19 // pred_check_branch
          %105 = sbr.rel (%p103) target = $region24
        $region23: #{encoder_caps_forward.6} parent=19 // pred_region
          %s106 = sand.u32 %s39, 1
          %s107 = sand.u32 %s39, 1
          %s108 = smul.addr %s107, 864
          %s109 = scalar_lea.vmem [#allocation2], %s108
          %s110 = smul.u32 8, %s8
          %s111 = smul.addr %s110, 4
          %s112 = scalar_lea.vmem %s1, %s111
          // Predicated region
          $region25: #{encoder_caps_forward.6} parent=23 // pred_check
            _
          $region26: #{encoder_caps_forward.6} parent=23 // pred_check_branch
            %114 = sbr.rel (0) target = $region28
          $region27: #{encoder_caps_forward.6} parent=23 // pred_region
            // Predicated region
            $region29: #{encoder_caps_forward.6} parent=27 // pred_check
              _
            $region30: #{encoder_caps_forward.6} parent=27 // pred_check_branch
              %116 = sbr.rel (0) target = $region32
            $region31: #{encoder_caps_forward.6} parent=27 // pred_region
              loop: start=0, step=1, limit=1
              $region33: #{encoder_caps_forward.6} parent=31 // loop_pre_header
                _
              $region34: #{encoder_caps_forward.6} parent=31 // loop_header
                %s118 = sphi 0, %s122
                %p119 = scmp.ge.s32.totalorder %s118, 1
                %s123 = sphi %s112, %s112
                %s124 = sphi %s109, %s109
              $region35: #{encoder_caps_forward.6} parent=31 // loop_header_branch
                %121 = sbr.rel (%p119) target = $region39
              $region36: #{encoder_caps_forward.6} parent=31 // loop_body
                %v125 = vld [vmem:[%s123] sm:$0xff]
                %126 = vst [vmem:[%s124] sm:$0xff] %v125
                %v127 = vld [vmem:[%s123 + $0x8] sm:$0xff]
                %128 = vst [vmem:[%s124 + $0x8] sm:$0xff] %v127
                %v129 = vld [vmem:[%s123 + $0x10] sm:$0xff]
                %130 = vst [vmem:[%s124 + $0x10] sm:$0xff] %v129
                %v131 = vld [vmem:[%s123 + $0x18] sm:$0xff]
                %132 = vst [vmem:[%s124 + $0x18] sm:$0xff] %v131
                %v133 = vld [vmem:[%s123 + $0x40] sm:$0xff]
                %134 = vst [vmem:[%s124 + $0x20] sm:$0xff] %v133
                %v135 = vld [vmem:[%s123 + $0x48] sm:$0xff]
                %136 = vst [vmem:[%s124 + $0x28] sm:$0xff] %v135
                %v137 = vld [vmem:[%s123 + $0x50] sm:$0xff]
                %138 = vst [vmem:[%s124 + $0x30] sm:$0xff] %v137
                %v139 = vld [vmem:[%s123 + $0x58] sm:$0xff]
                %140 = vst [vmem:[%s124 + $0x38] sm:$0xff] %v139
                %v141 = vld [vmem:[%s123 + $0x80] sm:$0xff]
                %142 = vst [vmem:[%s124 + $0x40] sm:$0xff] %v141
                %v143 = vld [vmem:[%s123 + $0x88] sm:$0xff]
                %144 = vst [vmem:[%s124 + $0x48] sm:$0xff] %v143
                %v145 = vld [vmem:[%s123 + $0x90] sm:$0xff]
                %146 = vst [vmem:[%s124 + $0x50] sm:$0xff] %v145
                %v147 = vld [vmem:[%s123 + $0x98] sm:$0xff]
                %148 = vst [vmem:[%s124 + $0x58] sm:$0xff] %v147
                %v149 = vld [vmem:[%s123 + $0xc0] sm:$0xff]
                %150 = vst [vmem:[%s124 + $0x60] sm:$0xff] %v149
                %v151 = vld [vmem:[%s123 + $0xc8] sm:$0xff]
                %152 = vst [vmem:[%s124 + $0x68] sm:$0xff] %v151
                %v153 = vld [vmem:[%s123 + $0xd0] sm:$0xff]
                %154 = vst [vmem:[%s124 + $0x70] sm:$0xff] %v153
                %v155 = vld [vmem:[%s123 + $0xd8] sm:$0xff]
                %156 = vst [vmem:[%s124 + $0x78] sm:$0xff] %v155
                %v157 = vld [vmem:[%s123 + $0x100] sm:$0xff]
                %158 = vst [vmem:[%s124 + $0x80] sm:$0xff] %v157
                %v159 = vld [vmem:[%s123 + $0x108] sm:$0xff]
                %160 = vst [vmem:[%s124 + $0x88] sm:$0xff] %v159
                %v161 = vld [vmem:[%s123 + $0x110] sm:$0xff]
                %162 = vst [vmem:[%s124 + $0x90] sm:$0xff] %v161
                %v163 = vld [vmem:[%s123 + $0x118] sm:$0xff]
                %164 = vst [vmem:[%s124 + $0x98] sm:$0xff] %v163
                %v165 = vld [vmem:[%s123 + $0x140] sm:$0xff]
                %166 = vst [vmem:[%s124 + $0xa0] sm:$0xff] %v165
                %v167 = vld [vmem:[%s123 + $0x148] sm:$0xff]
                %168 = vst [vmem:[%s124 + $0xa8] sm:$0xff] %v167
                %v169 = vld [vmem:[%s123 + $0x150] sm:$0xff]
                %170 = vst [vmem:[%s124 + $0xb0] sm:$0xff] %v169
                %v171 = vld [vmem:[%s123 + $0x158] sm:$0xff]
                %172 = vst [vmem:[%s124 + $0xb8] sm:$0xff] %v171
                %v173 = vld [vmem:[%s123 + $0x180] sm:$0xff]
                %174 = vst [vmem:[%s124 + $0xc0] sm:$0xff] %v173
                %v175 = vld [vmem:[%s123 + $0x188] sm:$0xff]
                %176 = vst [vmem:[%s124 + $0xc8] sm:$0xff] %v175
                %v177 = vld [vmem:[%s123 + $0x190] sm:$0xff]
                %178 = vst [vmem:[%s124 + $0xd0] sm:$0xff] %v177
                %v179 = vld [vmem:[%s123 + $0x198] sm:$0xff]
                %180 = vst [vmem:[%s124 + $0xd8] sm:$0xff] %v179
                %v181 = vld [vmem:[%s123 + $0x1c0] sm:$0xff]
                %182 = vst [vmem:[%s124 + $0xe0] sm:$0xff] %v181
                %v183 = vld [vmem:[%s123 + $0x1c8] sm:$0xff]
                %184 = vst [vmem:[%s124 + $0xe8] sm:$0xff] %v183
                %v185 = vld [vmem:[%s123 + $0x1d0] sm:$0xff]
                %186 = vst [vmem:[%s124 + $0xf0] sm:$0xff] %v185
                %v187 = vld [vmem:[%s123 + $0x1d8] sm:$0xff]
                %188 = vst [vmem:[%s124 + $0xf8] sm:$0xff] %v187
                %v189 = vld [vmem:[%s123 + $0x200] sm:$0xff]
                %190 = vst [vmem:[%s124 + $0x100] sm:$0xff] %v189
                %v191 = vld [vmem:[%s123 + $0x208] sm:$0xff]
                %192 = vst [vmem:[%s124 + $0x108] sm:$0xff] %v191
                %v193 = vld [vmem:[%s123 + $0x210] sm:$0xff]
                %194 = vst [vmem:[%s124 + $0x110] sm:$0xff] %v193
                %v195 = vld [vmem:[%s123 + $0x218] sm:$0xff]
                %196 = vst [vmem:[%s124 + $0x118] sm:$0xff] %v195
                %v197 = vld [vmem:[%s123 + $0x240] sm:$0xff]
                %198 = vst [vmem:[%s124 + $0x120] sm:$0xff] %v197
                %v199 = vld [vmem:[%s123 + $0x248] sm:$0xff]
                %200 = vst [vmem:[%s124 + $0x128] sm:$0xff] %v199
                %v201 = vld [vmem:[%s123 + $0x250] sm:$0xff]
                %202 = vst [vmem:[%s124 + $0x130] sm:$0xff] %v201
                %v203 = vld [vmem:[%s123 + $0x258] sm:$0xff]
                %204 = vst [vmem:[%s124 + $0x138] sm:$0xff] %v203
                %v205 = vld [vmem:[%s123 + $0x280] sm:$0xff]
                %206 = vst [vmem:[%s124 + $0x140] sm:$0xff] %v205
                %v207 = vld [vmem:[%s123 + $0x288] sm:$0xff]
                %208 = vst [vmem:[%s124 + $0x148] sm:$0xff] %v207
                %v209 = vld [vmem:[%s123 + $0x290] sm:$0xff]
                %210 = vst [vmem:[%s124 + $0x150] sm:$0xff] %v209
                %v211 = vld [vmem:[%s123 + $0x298] sm:$0xff]
                %212 = vst [vmem:[%s124 + $0x158] sm:$0xff] %v211
                %v213 = vld [vmem:[%s123 + $0x2c0] sm:$0xff]
                %214 = vst [vmem:[%s124 + $0x160] sm:$0xff] %v213
                %v215 = vld [vmem:[%s123 + $0x2c8] sm:$0xff]
                %216 = vst [vmem:[%s124 + $0x168] sm:$0xff] %v215
                %v217 = vld [vmem:[%s123 + $0x2d0] sm:$0xff]
                %218 = vst [vmem:[%s124 + $0x170] sm:$0xff] %v217
                %v219 = vld [vmem:[%s123 + $0x2d8] sm:$0xff]
                %220 = vst [vmem:[%s124 + $0x178] sm:$0xff] %v219
                %v221 = vld [vmem:[%s123 + $0x300] sm:$0xff]
                %222 = vst [vmem:[%s124 + $0x180] sm:$0xff] %v221
                %v223 = vld [vmem:[%s123 + $0x308] sm:$0xff]
                %224 = vst [vmem:[%s124 + $0x188] sm:$0xff] %v223
                %v225 = vld [vmem:[%s123 + $0x310] sm:$0xff]
                %226 = vst [vmem:[%s124 + $0x190] sm:$0xff] %v225
                %v227 = vld [vmem:[%s123 + $0x318] sm:$0xff]
                %228 = vst [vmem:[%s124 + $0x198] sm:$0xff] %v227
                %v229 = vld [vmem:[%s123 + $0x340] sm:$0xff]
                %230 = vst [vmem:[%s124 + $0x1a0] sm:$0xff] %v229
                %v231 = vld [vmem:[%s123 + $0x348] sm:$0xff]
                %232 = vst [vmem:[%s124 + $0x1a8] sm:$0xff] %v231
                %v233 = vld [vmem:[%s123 + $0x350] sm:$0xff]
                %234 = vst [vmem:[%s124 + $0x1b0] sm:$0xff] %v233
                %v235 = vld [vmem:[%s123 + $0x358] sm:$0xff]
                %236 = vst [vmem:[%s124 + $0x1b8] sm:$0xff] %v235
                %v237 = vld [vmem:[%s123 + $0x380] sm:$0xff]
                %238 = vst [vmem:[%s124 + $0x1c0] sm:$0xff] %v237
                %v239 = vld [vmem:[%s123 + $0x388] sm:$0xff]
                %240 = vst [vmem:[%s124 + $0x1c8] sm:$0xff] %v239
                %v241 = vld [vmem:[%s123 + $0x390] sm:$0xff]
                %242 = vst [vmem:[%s124 + $0x1d0] sm:$0xff] %v241
                %v243 = vld [vmem:[%s123 + $0x398] sm:$0xff]
                %244 = vst [vmem:[%s124 + $0x1d8] sm:$0xff] %v243
                %v245 = vld [vmem:[%s123 + $0x3c0] sm:$0xff]
                %246 = vst [vmem:[%s124 + $0x1e0] sm:$0xff] %v245
                %v247 = vld [vmem:[%s123 + $0x3c8] sm:$0xff]
                %248 = vst [vmem:[%s124 + $0x1e8] sm:$0xff] %v247
                %v249 = vld [vmem:[%s123 + $0x3d0] sm:$0xff]
                %250 = vst [vmem:[%s124 + $0x1f0] sm:$0xff] %v249
                %v251 = vld [vmem:[%s123 + $0x3d8] sm:$0xff]
                %252 = vst [vmem:[%s124 + $0x1f8] sm:$0xff] %v251
                %v253 = vld [vmem:[%s123 + $0x400] sm:$0xff]
                %254 = vst [vmem:[%s124 + $0x200] sm:$0xff] %v253
                %v255 = vld [vmem:[%s123 + $0x408] sm:$0xff]
                %256 = vst [vmem:[%s124 + $0x208] sm:$0xff] %v255
                %v257 = vld [vmem:[%s123 + $0x410] sm:$0xff]
                %258 = vst [vmem:[%s124 + $0x210] sm:$0xff] %v257
                %v259 = vld [vmem:[%s123 + $0x418] sm:$0xff]
                %260 = vst [vmem:[%s124 + $0x218] sm:$0xff] %v259
                %v261 = vld [vmem:[%s123 + $0x440] sm:$0xff]
                %262 = vst [vmem:[%s124 + $0x220] sm:$0xff] %v261
                %v263 = vld [vmem:[%s123 + $0x448] sm:$0xff]
                %264 = vst [vmem:[%s124 + $0x228] sm:$0xff] %v263
                %v265 = vld [vmem:[%s123 + $0x450] sm:$0xff]
                %266 = vst [vmem:[%s124 + $0x230] sm:$0xff] %v265
                %v267 = vld [vmem:[%s123 + $0x458] sm:$0xff]
                %268 = vst [vmem:[%s124 + $0x238] sm:$0xff] %v267
                %v269 = vld [vmem:[%s123 + $0x480] sm:$0xff]
                %270 = vst [vmem:[%s124 + $0x240] sm:$0xff] %v269
                %v271 = vld [vmem:[%s123 + $0x488] sm:$0xff]
                %272 = vst [vmem:[%s124 + $0x248] sm:$0xff] %v271
                %v273 = vld [vmem:[%s123 + $0x490] sm:$0xff]
                %274 = vst [vmem:[%s124 + $0x250] sm:$0xff] %v273
                %v275 = vld [vmem:[%s123 + $0x498] sm:$0xff]
                %276 = vst [vmem:[%s124 + $0x258] sm:$0xff] %v275
                %v277 = vld [vmem:[%s123 + $0x4c0] sm:$0xff]
                %278 = vst [vmem:[%s124 + $0x260] sm:$0xff] %v277
                %v279 = vld [vmem:[%s123 + $0x4c8] sm:$0xff]
                %280 = vst [vmem:[%s124 + $0x268] sm:$0xff] %v279
                %v281 = vld [vmem:[%s123 + $0x4d0] sm:$0xff]
                %282 = vst [vmem:[%s124 + $0x270] sm:$0xff] %v281
                %v283 = vld [vmem:[%s123 + $0x4d8] sm:$0xff]
                %284 = vst [vmem:[%s124 + $0x278] sm:$0xff] %v283
                %v285 = vld [vmem:[%s123 + $0x500] sm:$0xff]
                %286 = vst [vmem:[%s124 + $0x280] sm:$0xff] %v285
                %v287 = vld [vmem:[%s123 + $0x508] sm:$0xff]
                %288 = vst [vmem:[%s124 + $0x288] sm:$0xff] %v287
                %v289 = vld [vmem:[%s123 + $0x510] sm:$0xff]
                %290 = vst [vmem:[%s124 + $0x290] sm:$0xff] %v289
                %v291 = vld [vmem:[%s123 + $0x518] sm:$0xff]
                %292 = vst [vmem:[%s124 + $0x298] sm:$0xff] %v291
                %v293 = vld [vmem:[%s123 + $0x540] sm:$0xff]
                %294 = vst [vmem:[%s124 + $0x2a0] sm:$0xff] %v293
                %v295 = vld [vmem:[%s123 + $0x548] sm:$0xff]
                %296 = vst [vmem:[%s124 + $0x2a8] sm:$0xff] %v295
                %v297 = vld [vmem:[%s123 + $0x550] sm:$0xff]
                %298 = vst [vmem:[%s124 + $0x2b0] sm:$0xff] %v297
                %v299 = vld [vmem:[%s123 + $0x558] sm:$0xff]
                %300 = vst [vmem:[%s124 + $0x2b8] sm:$0xff] %v299
                %v301 = vld [vmem:[%s123 + $0x580] sm:$0xff]
                %302 = vst [vmem:[%s124 + $0x2c0] sm:$0xff] %v301
                %v303 = vld [vmem:[%s123 + $0x588] sm:$0xff]
                %304 = vst [vmem:[%s124 + $0x2c8] sm:$0xff] %v303
                %v305 = vld [vmem:[%s123 + $0x590] sm:$0xff]
                %306 = vst [vmem:[%s124 + $0x2d0] sm:$0xff] %v305
                %v307 = vld [vmem:[%s123 + $0x598] sm:$0xff]
                %308 = vst [vmem:[%s124 + $0x2d8] sm:$0xff] %v307
                %v309 = vld [vmem:[%s123 + $0x5c0] sm:$0xff]
                %310 = vst [vmem:[%s124 + $0x2e0] sm:$0xff] %v309
                %v311 = vld [vmem:[%s123 + $0x5c8] sm:$0xff]
                %312 = vst [vmem:[%s124 + $0x2e8] sm:$0xff] %v311
                %v313 = vld [vmem:[%s123 + $0x5d0] sm:$0xff]
                %314 = vst [vmem:[%s124 + $0x2f0] sm:$0xff] %v313
                %v315 = vld [vmem:[%s123 + $0x5d8] sm:$0xff]
                %316 = vst [vmem:[%s124 + $0x2f8] sm:$0xff] %v315
                %v317 = vld [vmem:[%s123 + $0x600] sm:$0xff]
                %318 = vst [vmem:[%s124 + $0x300] sm:$0xff] %v317
                %v319 = vld [vmem:[%s123 + $0x608] sm:$0xff]
                %320 = vst [vmem:[%s124 + $0x308] sm:$0xff] %v319
                %v321 = vld [vmem:[%s123 + $0x610] sm:$0xff]
                %322 = vst [vmem:[%s124 + $0x310] sm:$0xff] %v321
                %v323 = vld [vmem:[%s123 + $0x618] sm:$0xff]
                %324 = vst [vmem:[%s124 + $0x318] sm:$0xff] %v323
                %v325 = vld [vmem:[%s123 + $0x640] sm:$0xff]
                %326 = vst [vmem:[%s124 + $0x320] sm:$0xff] %v325
                %v327 = vld [vmem:[%s123 + $0x648] sm:$0xff]
                %328 = vst [vmem:[%s124 + $0x328] sm:$0xff] %v327
                %v329 = vld [vmem:[%s123 + $0x650] sm:$0xff]
                %330 = vst [vmem:[%s124 + $0x330] sm:$0xff] %v329
                %v331 = vld [vmem:[%s123 + $0x658] sm:$0xff]
                %332 = vst [vmem:[%s124 + $0x338] sm:$0xff] %v331
                %v333 = vld [vmem:[%s123 + $0x680] sm:$0xff]
                %334 = vst [vmem:[%s124 + $0x340] sm:$0xff] %v333
                %v335 = vld [vmem:[%s123 + $0x688] sm:$0xff]
                %336 = vst [vmem:[%s124 + $0x348] sm:$0xff] %v335
                %v337 = vld [vmem:[%s123 + $0x690] sm:$0xff]
                %338 = vst [vmem:[%s124 + $0x350] sm:$0xff] %v337
                %v339 = vld [vmem:[%s123 + $0x698] sm:$0xff]
                %340 = vst [vmem:[%s124 + $0x358] sm:$0xff] %v339
              $region37: #{encoder_caps_forward.6} parent=31 // loop_footer
                %s122 = sadd.s32 1, %s118
              $region38: #{encoder_caps_forward.6} parent=31 // loop_footer_branch
                %117 = sbr.rel target = $region34
              $region39: #{encoder_caps_forward.6} parent=31 // loop_exit
                _
            $region32: #{encoder_caps_forward.6} parent=27 // pred_fallthru
              _
            // Predicated region
            $region40: #{encoder_caps_forward.6} parent=27 // pred_check
              _
            $region41: #{encoder_caps_forward.6} parent=27 // pred_check_branch
              %342 = sbr.rel target = $region43
            $region42: #{encoder_caps_forward.6} parent=27 // pred_region
              _
            $region43: #{encoder_caps_forward.6} parent=27 // pred_fallthru
              _
          $region28: #{encoder_caps_forward.6} parent=23 // pred_fallthru
            _
          %343 = vnop
        $region24: #{encoder_caps_forward.6} parent=19 // pred_fallthru
          _
      $region20: #{encoder_caps_forward.6} parent=5 // pred_fallthru
        _
      %p344 = scmp.le.s32.totalorder 1, %s8
      %p345 = scmp.lt.s32.totalorder %s8, 3
      %p346 = pnand %p344, %p345
      %p347 = pneg %p346
      // Predicated region
      $region44: #{encoder_caps_forward.6} parent=5 // pred_check
        _
      $region45: #{encoder_caps_forward.6} parent=5 // pred_check_branch
        %349 = sbr.rel (%p346) target = $region47
      $region46: #{encoder_caps_forward.6} parent=5 // pred_region
        %s350 = ssub.s32 %s8, 1
        %s351 = sand.u32 %s42, 1
        %s352 = sand.u32 %s42, 1
        %s353 = smul.addr %s352, 864
        %s354 = scalar_lea.vmem [#allocation2], %s353
        // Predicated region
        $region48: #{encoder_caps_forward.6} parent=46 // pred_check
          %p355 = pneg %p55
        $region49: #{encoder_caps_forward.6} parent=46 // pred_check_branch
          %357 = sbr.rel (%p355) target = $region51
        $region50: #{encoder_caps_forward.6} parent=46 // pred_region
          _
        $region51: #{encoder_caps_forward.6} parent=46 // pred_fallthru
          _
        %p358 = pneg %p29
        %p359 = pneg %p26
        %s360 = sand.u32 %s42, 1
        %s361 = sand.u32 %s42, 1
        %s362 = smul.addr %s361, 864
        %s363 = scalar_lea.vmem [#allocation2], %s362
        %p364 = pneg %p55
        %p365 = pneg %p52
        %p366 = pneg %p81
        %p367 = pneg %p78
        %s368 = sand.u32 %s68, 1
        %s369 = sand.u32 %s68, 1
        %s370 = smul.addr %s369, 256
        %s371 = scalar_lea.vmem [#allocation3], %s370
        %s372 = smul.u32 8, %s13
        %s373 = smul.u32 8, %s13
        %v375 = vld [vmem:[%s0] sm:$0xff]
        %v376 = vld [vmem:[%s0 + $0x8] sm:$0xff]
        %v377 = vld [vmem:[%s0 + $0x10] sm:$0xff]
        %v378 = vld [vmem:[%s0 + $0x18] sm:$0xff]
        %v379 = vld [vmem:[%s354] sm:$0xff]
        %v380 = vld [vmem:[%s354 + $0x8] sm:$0xff]
        %v381 = vld [vmem:[%s354 + $0x10] sm:$0xff]
        %v382 = vld [vmem:[%s354 + $0x18] sm:$0xff]
        %v383 = vld [vmem:[%s354 + $0x20] sm:$0xff]
        %v384 = vld [vmem:[%s354 + $0x28] sm:$0xff]
        %v385 = vld [vmem:[%s354 + $0x30] sm:$0xff]
        %v386 = vld [vmem:[%s354 + $0x38] sm:$0xff]
        %v387 = vld [vmem:[%s354 + $0x40] sm:$0xff]
        %v388 = vld [vmem:[%s354 + $0x48] sm:$0xff]
        %v389 = vld [vmem:[%s354 + $0x50] sm:$0xff]
        %v390 = vld [vmem:[%s354 + $0x58] sm:$0xff]
        %v391 = vld [vmem:[%s354 + $0x60] sm:$0xff]
        %v392 = vld [vmem:[%s354 + $0x68] sm:$0xff]
        %v393 = vld [vmem:[%s354 + $0x70] sm:$0xff]
        %v394 = vld [vmem:[%s354 + $0x78] sm:$0xff]
        %v395 = vld [vmem:[%s354 + $0x80] sm:$0xff]
        %v396 = vld [vmem:[%s354 + $0x88] sm:$0xff]
        %v397 = vld [vmem:[%s354 + $0x90] sm:$0xff]
        %v398 = vld [vmem:[%s354 + $0x98] sm:$0xff]
        %v399 = vld [vmem:[%s354 + $0xa0] sm:$0xff]
        %v400 = vld [vmem:[%s354 + $0xa8] sm:$0xff]
        %v401 = vld [vmem:[%s354 + $0xb0] sm:$0xff]
        %v402 = vld [vmem:[%s354 + $0xb8] sm:$0xff]
        %v403 = vld [vmem:[%s354 + $0xc0] sm:$0xff]
        %v404 = vld [vmem:[%s354 + $0xc8] sm:$0xff]
        %v405 = vld [vmem:[%s354 + $0xd0] sm:$0xff]
        %v406 = vld [vmem:[%s354 + $0xd8] sm:$0xff]
        %v407 = vld [vmem:[%s354 + $0xe0] sm:$0xff]
        %v408 = vld [vmem:[%s354 + $0xe8] sm:$0xff]
        %v409 = vld [vmem:[%s354 + $0xf0] sm:$0xff]
        %v410 = vld [vmem:[%s354 + $0xf8] sm:$0xff]
        %v411 = vld [vmem:[%s354 + $0x100] sm:$0xff]
        %v412 = vld [vmem:[%s354 + $0x108] sm:$0xff]
        %v413 = vld [vmem:[%s354 + $0x110] sm:$0xff]
        %v414 = vld [vmem:[%s354 + $0x118] sm:$0xff]
        %v415 = vld [vmem:[%s354 + $0x120] sm:$0xff]
        %v416 = vld [vmem:[%s354 + $0x128] sm:$0xff]
        %v417 = vld [vmem:[%s354 + $0x130] sm:$0xff]
        %v418 = vld [vmem:[%s354 + $0x138] sm:$0xff]
        %v419 = vld [vmem:[%s354 + $0x140] sm:$0xff]
        %v420 = vld [vmem:[%s354 + $0x148] sm:$0xff]
        %v421 = vld [vmem:[%s354 + $0x150] sm:$0xff]
        %v422 = vld [vmem:[%s354 + $0x158] sm:$0xff]
        %v423 = vld [vmem:[%s354 + $0x160] sm:$0xff]
        %v424 = vld [vmem:[%s354 + $0x168] sm:$0xff]
        %v425 = vld [vmem:[%s354 + $0x170] sm:$0xff]
        %v426 = vld [vmem:[%s354 + $0x178] sm:$0xff]
        %v427 = vld [vmem:[%s354 + $0x180] sm:$0xff]
        %v428 = vld [vmem:[%s354 + $0x188] sm:$0xff]
        %v429 = vld [vmem:[%s354 + $0x190] sm:$0xff]
        %v430 = vld [vmem:[%s354 + $0x198] sm:$0xff]
        %v431 = vld [vmem:[%s354 + $0x1a0] sm:$0xff]
        %v432 = vld [vmem:[%s354 + $0x1a8] sm:$0xff]
        %v433 = vld [vmem:[%s354 + $0x1b0] sm:$0xff]
        %v434 = vld [vmem:[%s354 + $0x1b8] sm:$0xff]
        %v435 = vld [vmem:[%s354 + $0x1c0] sm:$0xff]
        %v436 = vld [vmem:[%s354 + $0x1c8] sm:$0xff]
        %v437 = vld [vmem:[%s354 + $0x1d0] sm:$0xff]
        %v438 = vld [vmem:[%s354 + $0x1d8] sm:$0xff]
        %v439 = vld [vmem:[%s354 + $0x1e0] sm:$0xff]
        %v440 = vld [vmem:[%s354 + $0x1e8] sm:$0xff]
        %v441 = vld [vmem:[%s354 + $0x1f0] sm:$0xff]
        %v442 = vld [vmem:[%s354 + $0x1f8] sm:$0xff]
        %v443 = vld [vmem:[%s354 + $0x200] sm:$0xff]
        %v444 = vld [vmem:[%s354 + $0x208] sm:$0xff]
        %v445 = vld [vmem:[%s354 + $0x210] sm:$0xff]
        %v446 = vld [vmem:[%s354 + $0x218] sm:$0xff]
        %v447 = vld [vmem:[%s354 + $0x220] sm:$0xff]
        %v448 = vld [vmem:[%s354 + $0x228] sm:$0xff]
        %v449 = vld [vmem:[%s354 + $0x230] sm:$0xff]
        %v450 = vld [vmem:[%s354 + $0x238] sm:$0xff]
        %v451 = vld [vmem:[%s354 + $0x240] sm:$0xff]
        %v452 = vld [vmem:[%s354 + $0x248] sm:$0xff]
        %v453 = vld [vmem:[%s354 + $0x250] sm:$0xff]
        %v454 = vld [vmem:[%s354 + $0x258] sm:$0xff]
        %v455 = vld [vmem:[%s354 + $0x260] sm:$0xff]
        %v456 = vld [vmem:[%s354 + $0x268] sm:$0xff]
        %v457 = vld [vmem:[%s354 + $0x270] sm:$0xff]
        %v458 = vld [vmem:[%s354 + $0x278] sm:$0xff]
        %v459 = vld [vmem:[%s354 + $0x280] sm:$0xff]
        %v460 = vld [vmem:[%s354 + $0x288] sm:$0xff]
        %v461 = vld [vmem:[%s354 + $0x290] sm:$0xff]
        %v462 = vld [vmem:[%s354 + $0x298] sm:$0xff]
        %v463 = vld [vmem:[%s354 + $0x2a0] sm:$0xff]
        %v464 = vld [vmem:[%s354 + $0x2a8] sm:$0xff]
        %v465 = vld [vmem:[%s354 + $0x2b0] sm:$0xff]
        %v466 = vld [vmem:[%s354 + $0x2b8] sm:$0xff]
        %v467 = vld [vmem:[%s354 + $0x2c0] sm:$0xff]
        %v468 = vld [vmem:[%s354 + $0x2c8] sm:$0xff]
        %v469 = vld [vmem:[%s354 + $0x2d0] sm:$0xff]
        %v470 = vld [vmem:[%s354 + $0x2d8] sm:$0xff]
        %v471 = vld [vmem:[%s354 + $0x2e0] sm:$0xff]
        %v472 = vld [vmem:[%s354 + $0x2e8] sm:$0xff]
        %v473 = vld [vmem:[%s354 + $0x2f0] sm:$0xff]
        %v474 = vld [vmem:[%s354 + $0x2f8] sm:$0xff]
        %v475 = vld [vmem:[%s354 + $0x300] sm:$0xff]
        %v476 = vld [vmem:[%s354 + $0x308] sm:$0xff]
        %v477 = vld [vmem:[%s354 + $0x310] sm:$0xff]
        %v478 = vld [vmem:[%s354 + $0x318] sm:$0xff]
        %v479 = vld [vmem:[%s354 + $0x320] sm:$0xff]
        %v480 = vld [vmem:[%s354 + $0x328] sm:$0xff]
        %v481 = vld [vmem:[%s354 + $0x330] sm:$0xff]
        %v482 = vld [vmem:[%s354 + $0x338] sm:$0xff]
        %v483 = vld [vmem:[%s354 + $0x340] sm:$0xff]
        %v484 = vld [vmem:[%s354 + $0x348] sm:$0xff]
        %v485 = vld [vmem:[%s354 + $0x350] sm:$0xff]
        %v486 = vld [vmem:[%s354 + $0x358] sm:$0xff]
        %v491 = vunpack.c.l.b16 %v375
        %v492 = vunpack.c.h.b16 %v375
        %v493 = vunpack.c.l.b16 %v376
        %v494 = vunpack.c.h.b16 %v376
        %v495 = vunpack.c.l.b16 %v377
        %v496 = vunpack.c.h.b16 %v377
        %v497 = vunpack.c.l.b16 %v378
        %v498 = vunpack.c.h.b16 %v378
        %v499 = vpack.c.b16 %v493, %v491
        %v500 = vpack.c.b16 %v494, %v492
        %v501 = vpack.c.b16 %v497, %v495
        %v502 = vpack.c.b16 %v498, %v496
        %v613 = vunpack.c.l.b16 %v379
        %v614 = vunpack.c.h.b16 %v379
        %v615 = vunpack.c.l.b16 %v380
        %v616 = vunpack.c.h.b16 %v380
        %v617 = vunpack.c.l.b16 %v381
        %v618 = vunpack.c.h.b16 %v381
        %v619 = vunpack.c.l.b16 %v382
        %v620 = vunpack.c.h.b16 %v382
        %v621 = vunpack.c.l.b16 %v383
        %v622 = vunpack.c.h.b16 %v383
        %v623 = vunpack.c.l.b16 %v384
        %v624 = vunpack.c.h.b16 %v384
        %v625 = vunpack.c.l.b16 %v385
        %v626 = vunpack.c.h.b16 %v385
        %v627 = vunpack.c.l.b16 %v386
        %v628 = vunpack.c.h.b16 %v386
        %v629 = vunpack.c.l.b16 %v387
        %v630 = vunpack.c.h.b16 %v387
        %v631 = vunpack.c.l.b16 %v388
        %v632 = vunpack.c.h.b16 %v388
        %v633 = vunpack.c.l.b16 %v389
        %v634 = vunpack.c.h.b16 %v389
        %v635 = vunpack.c.l.b16 %v390
        %v636 = vunpack.c.h.b16 %v390
        %v637 = vunpack.c.l.b16 %v391
        %v638 = vunpack.c.h.b16 %v391
        %v639 = vunpack.c.l.b16 %v392
        %v640 = vunpack.c.h.b16 %v392
        %v641 = vunpack.c.l.b16 %v393
        %v642 = vunpack.c.h.b16 %v393
        %v643 = vunpack.c.l.b16 %v394
        %v644 = vunpack.c.h.b16 %v394
        %v645 = vunpack.c.l.b16 %v395
        %v646 = vunpack.c.h.b16 %v395
        %v647 = vunpack.c.l.b16 %v396
        %v648 = vunpack.c.h.b16 %v396
        %v649 = vunpack.c.l.b16 %v397
        %v650 = vunpack.c.h.b16 %v397
        %v651 = vunpack.c.l.b16 %v398
        %v652 = vunpack.c.h.b16 %v398
        %v653 = vunpack.c.l.b16 %v399
        %v654 = vunpack.c.h.b16 %v399
        %v655 = vunpack.c.l.b16 %v400
        %v656 = vunpack.c.h.b16 %v400
        %v657 = vunpack.c.l.b16 %v401
        %v658 = vunpack.c.h.b16 %v401
        %v659 = vunpack.c.l.b16 %v402
        %v660 = vunpack.c.h.b16 %v402
        %v661 = vunpack.c.l.b16 %v403
        %v662 = vunpack.c.h.b16 %v403
        %v663 = vunpack.c.l.b16 %v404
        %v664 = vunpack.c.h.b16 %v404
        %v665 = vunpack.c.l.b16 %v405
        %v666 = vunpack.c.h.b16 %v405
        %v667 = vunpack.c.l.b16 %v406
        %v668 = vunpack.c.h.b16 %v406
        %v669 = vunpack.c.l.b16 %v407
        %v670 = vunpack.c.h.b16 %v407
        %v671 = vunpack.c.l.b16 %v408
        %v672 = vunpack.c.h.b16 %v408
        %v673 = vunpack.c.l.b16 %v409
        %v674 = vunpack.c.h.b16 %v409
        %v675 = vunpack.c.l.b16 %v410
        %v676 = vunpack.c.h.b16 %v410
        %v677 = vunpack.c.l.b16 %v411
        %v678 = vunpack.c.h.b16 %v411
        %v679 = vunpack.c.l.b16 %v412
        %v680 = vunpack.c.h.b16 %v412
        %v681 = vunpack.c.l.b16 %v413
        %v682 = vunpack.c.h.b16 %v413
        %v683 = vunpack.c.l.b16 %v414
        %v684 = vunpack.c.h.b16 %v414
        %v685 = vunpack.c.l.b16 %v415
        %v686 = vunpack.c.h.b16 %v415
        %v687 = vunpack.c.l.b16 %v416
        %v688 = vunpack.c.h.b16 %v416
        %v689 = vunpack.c.l.b16 %v417
        %v690 = vunpack.c.h.b16 %v417
        %v691 = vunpack.c.l.b16 %v418
        %v692 = vunpack.c.h.b16 %v418
        %v693 = vunpack.c.l.b16 %v419
        %v694 = vunpack.c.h.b16 %v419
        %v695 = vunpack.c.l.b16 %v420
        %v696 = vunpack.c.h.b16 %v420
        %v697 = vunpack.c.l.b16 %v421
        %v698 = vunpack.c.h.b16 %v421
        %v699 = vunpack.c.l.b16 %v422
        %v700 = vunpack.c.h.b16 %v422
        %v701 = vunpack.c.l.b16 %v423
        %v702 = vunpack.c.h.b16 %v423
        %v703 = vunpack.c.l.b16 %v424
        %v704 = vunpack.c.h.b16 %v424
        %v705 = vunpack.c.l.b16 %v425
        %v706 = vunpack.c.h.b16 %v425
        %v707 = vunpack.c.l.b16 %v426
        %v708 = vunpack.c.h.b16 %v426
        %v709 = vunpack.c.l.b16 %v427
        %v710 = vunpack.c.h.b16 %v427
        %v711 = vunpack.c.l.b16 %v428
        %v712 = vunpack.c.h.b16 %v428
        %v713 = vunpack.c.l.b16 %v429
        %v714 = vunpack.c.h.b16 %v429
        %v715 = vunpack.c.l.b16 %v430
        %v716 = vunpack.c.h.b16 %v430
        %v717 = vunpack.c.l.b16 %v431
        %v718 = vunpack.c.h.b16 %v431
        %v719 = vunpack.c.l.b16 %v432
        %v720 = vunpack.c.h.b16 %v432
        %v721 = vunpack.c.l.b16 %v433
        %v722 = vunpack.c.h.b16 %v433
        %v723 = vunpack.c.l.b16 %v434
        %v724 = vunpack.c.h.b16 %v434
        %v725 = vunpack.c.l.b16 %v435
        %v726 = vunpack.c.h.b16 %v435
        %v727 = vunpack.c.l.b16 %v436
        %v728 = vunpack.c.h.b16 %v436
        %v729 = vunpack.c.l.b16 %v437
        %v730 = vunpack.c.h.b16 %v437
        %v731 = vunpack.c.l.b16 %v438
        %v732 = vunpack.c.h.b16 %v438
        %v733 = vunpack.c.l.b16 %v439
        %v734 = vunpack.c.h.b16 %v439
        %v735 = vunpack.c.l.b16 %v440
        %v736 = vunpack.c.h.b16 %v440
        %v737 = vunpack.c.l.b16 %v441
        %v738 = vunpack.c.h.b16 %v441
        %v739 = vunpack.c.l.b16 %v442
        %v740 = vunpack.c.h.b16 %v442
        %v741 = vunpack.c.l.b16 %v443
        %v742 = vunpack.c.h.b16 %v443
        %v743 = vunpack.c.l.b16 %v444
        %v744 = vunpack.c.h.b16 %v444
        %v745 = vunpack.c.l.b16 %v445
        %v746 = vunpack.c.h.b16 %v445
        %v747 = vunpack.c.l.b16 %v446
        %v748 = vunpack.c.h.b16 %v446
        %v749 = vunpack.c.l.b16 %v447
        %v750 = vunpack.c.h.b16 %v447
        %v751 = vunpack.c.l.b16 %v448
        %v752 = vunpack.c.h.b16 %v448
        %v753 = vunpack.c.l.b16 %v449
        %v754 = vunpack.c.h.b16 %v449
        %v755 = vunpack.c.l.b16 %v450
        %v756 = vunpack.c.h.b16 %v450
        %v757 = vunpack.c.l.b16 %v451
        %v758 = vunpack.c.h.b16 %v451
        %v759 = vunpack.c.l.b16 %v452
        %v760 = vunpack.c.h.b16 %v452
        %v761 = vunpack.c.l.b16 %v453
        %v762 = vunpack.c.h.b16 %v453
        %v763 = vunpack.c.l.b16 %v454
        %v764 = vunpack.c.h.b16 %v454
        %v765 = vunpack.c.l.b16 %v455
        %v766 = vunpack.c.h.b16 %v455
        %v767 = vunpack.c.l.b16 %v456
        %v768 = vunpack.c.h.b16 %v456
        %v769 = vunpack.c.l.b16 %v457
        %v770 = vunpack.c.h.b16 %v457
        %v771 = vunpack.c.l.b16 %v458
        %v772 = vunpack.c.h.b16 %v458
        %v773 = vunpack.c.l.b16 %v459
        %v774 = vunpack.c.h.b16 %v459
        %v775 = vunpack.c.l.b16 %v460
        %v776 = vunpack.c.h.b16 %v460
        %v777 = vunpack.c.l.b16 %v461
        %v778 = vunpack.c.h.b16 %v461
        %v779 = vunpack.c.l.b16 %v462
        %v780 = vunpack.c.h.b16 %v462
        %v781 = vunpack.c.l.b16 %v463
        %v782 = vunpack.c.h.b16 %v463
        %v783 = vunpack.c.l.b16 %v464
        %v784 = vunpack.c.h.b16 %v464
        %v785 = vunpack.c.l.b16 %v465
        %v786 = vunpack.c.h.b16 %v465
        %v787 = vunpack.c.l.b16 %v466
        %v788 = vunpack.c.h.b16 %v466
        %v789 = vunpack.c.l.b16 %v467
        %v790 = vunpack.c.h.b16 %v467
        %v791 = vunpack.c.l.b16 %v468
        %v792 = vunpack.c.h.b16 %v468
        %v793 = vunpack.c.l.b16 %v469
        %v794 = vunpack.c.h.b16 %v469
        %v795 = vunpack.c.l.b16 %v470
        %v796 = vunpack.c.h.b16 %v470
        %v797 = vunpack.c.l.b16 %v471
        %v798 = vunpack.c.h.b16 %v471
        %v799 = vunpack.c.l.b16 %v472
        %v800 = vunpack.c.h.b16 %v472
        %v801 = vunpack.c.l.b16 %v473
        %v802 = vunpack.c.h.b16 %v473
        %v803 = vunpack.c.l.b16 %v474
        %v804 = vunpack.c.h.b16 %v474
        %v805 = vunpack.c.l.b16 %v475
        %v806 = vunpack.c.h.b16 %v475
        %v807 = vunpack.c.l.b16 %v476
        %v808 = vunpack.c.h.b16 %v476
        %v809 = vunpack.c.l.b16 %v477
        %v810 = vunpack.c.h.b16 %v477
        %v811 = vunpack.c.l.b16 %v478
        %v812 = vunpack.c.h.b16 %v478
        %v813 = vunpack.c.l.b16 %v479
        %v814 = vunpack.c.h.b16 %v479
        %v815 = vunpack.c.l.b16 %v480
        %v816 = vunpack.c.h.b16 %v480
        %v817 = vunpack.c.l.b16 %v481
        %v818 = vunpack.c.h.b16 %v481
        %v819 = vunpack.c.l.b16 %v482
        %v820 = vunpack.c.h.b16 %v482
        %v821 = vunpack.c.l.b16 %v483
        %v822 = vunpack.c.h.b16 %v483
        %v823 = vunpack.c.l.b16 %v484
        %v824 = vunpack.c.h.b16 %v484
        %v825 = vunpack.c.l.b16 %v485
        %v826 = vunpack.c.h.b16 %v485
        %v827 = vunpack.c.l.b16 %v486
        %v828 = vunpack.c.h.b16 %v486
        %v829 = vpack.c.b16 %v621, %v613
        %v830 = vpack.c.b16 %v622, %v614
        %v831 = vpack.c.b16 %v623, %v615
        %v832 = vpack.c.b16 %v624, %v616
        %v833 = vpack.c.b16 %v625, %v617
        %v834 = vpack.c.b16 %v626, %v618
        %v835 = vpack.c.b16 %v627, %v619
        %v836 = vpack.c.b16 %v628, %v620
        %v837 = vpack.c.b16 %v637, %v629
        %v838 = vpack.c.b16 %v638, %v630
        %v839 = vpack.c.b16 %v639, %v631
        %v840 = vpack.c.b16 %v640, %v632
        %v841 = vpack.c.b16 %v641, %v633
        %v842 = vpack.c.b16 %v642, %v634
        %v843 = vpack.c.b16 %v643, %v635
        %v844 = vpack.c.b16 %v644, %v636
        %v845 = vpack.c.b16 %v653, %v645
        %v846 = vpack.c.b16 %v654, %v646
        %v847 = vpack.c.b16 %v655, %v647
        %v848 = vpack.c.b16 %v656, %v648
        %v849 = vpack.c.b16 %v657, %v649
        %v850 = vpack.c.b16 %v658, %v650
        %v851 = vpack.c.b16 %v659, %v651
        %v852 = vpack.c.b16 %v660, %v652
        %v853 = vpack.c.b16 %v669, %v661
        %v854 = vpack.c.b16 %v670, %v662
        %v855 = vpack.c.b16 %v671, %v663
        %v856 = vpack.c.b16 %v672, %v664
        %v857 = vpack.c.b16 %v673, %v665
        %v858 = vpack.c.b16 %v674, %v666
        %v859 = vpack.c.b16 %v675, %v667
        %v860 = vpack.c.b16 %v676, %v668
        %v861 = vpack.c.b16 %v685, %v677
        %v862 = vpack.c.b16 %v686, %v678
        %v863 = vpack.c.b16 %v687, %v679
        %v864 = vpack.c.b16 %v688, %v680
        %v865 = vpack.c.b16 %v689, %v681
        %v866 = vpack.c.b16 %v690, %v682
        %v867 = vpack.c.b16 %v691, %v683
        %v868 = vpack.c.b16 %v692, %v684
        %v869 = vpack.c.b16 %v701, %v693
        %v870 = vpack.c.b16 %v702, %v694
        %v871 = vpack.c.b16 %v703, %v695
        %v872 = vpack.c.b16 %v704, %v696
        %v873 = vpack.c.b16 %v705, %v697
        %v874 = vpack.c.b16 %v706, %v698
        %v875 = vpack.c.b16 %v707, %v699
        %v876 = vpack.c.b16 %v708, %v700
        %v877 = vpack.c.b16 %v717, %v709
        %v878 = vpack.c.b16 %v718, %v710
        %v879 = vpack.c.b16 %v719, %v711
        %v880 = vpack.c.b16 %v720, %v712
        %v881 = vpack.c.b16 %v721, %v713
        %v882 = vpack.c.b16 %v722, %v714
        %v883 = vpack.c.b16 %v723, %v715
        %v884 = vpack.c.b16 %v724, %v716
        %v885 = vpack.c.b16 %v733, %v725
        %v886 = vpack.c.b16 %v734, %v726
        %v887 = vpack.c.b16 %v735, %v727
        %v888 = vpack.c.b16 %v736, %v728
        %v889 = vpack.c.b16 %v737, %v729
        %v890 = vpack.c.b16 %v738, %v730
        %v891 = vpack.c.b16 %v739, %v731
        %v892 = vpack.c.b16 %v740, %v732
        %v893 = vpack.c.b16 %v749, %v741
        %v894 = vpack.c.b16 %v750, %v742
        %v895 = vpack.c.b16 %v751, %v743
        %v896 = vpack.c.b16 %v752, %v744
        %v897 = vpack.c.b16 %v753, %v745
        %v898 = vpack.c.b16 %v754, %v746
        %v899 = vpack.c.b16 %v755, %v747
        %v900 = vpack.c.b16 %v756, %v748
        %v901 = vpack.c.b16 %v765, %v757
        %v902 = vpack.c.b16 %v766, %v758
        %v903 = vpack.c.b16 %v767, %v759
        %v904 = vpack.c.b16 %v768, %v760
        %v905 = vpack.c.b16 %v769, %v761
        %v906 = vpack.c.b16 %v770, %v762
        %v907 = vpack.c.b16 %v771, %v763
        %v908 = vpack.c.b16 %v772, %v764
        %v909 = vpack.c.b16 %v781, %v773
        %v910 = vpack.c.b16 %v782, %v774
        %v911 = vpack.c.b16 %v783, %v775
        %v912 = vpack.c.b16 %v784, %v776
        %v913 = vpack.c.b16 %v785, %v777
        %v914 = vpack.c.b16 %v786, %v778
        %v915 = vpack.c.b16 %v787, %v779
        %v916 = vpack.c.b16 %v788, %v780
        %v917 = vpack.c.b16 %v797, %v789
        %v918 = vpack.c.b16 %v798, %v790
        %v919 = vpack.c.b16 %v799, %v791
        %v920 = vpack.c.b16 %v800, %v792
        %v921 = vpack.c.b16 %v801, %v793
        %v922 = vpack.c.b16 %v802, %v794
        %v923 = vpack.c.b16 %v803, %v795
        %v924 = vpack.c.b16 %v804, %v796
        %v925 = vpack.c.b16 %v813, %v805
        %v926 = vpack.c.b16 %v814, %v806
        %v927 = vpack.c.b16 %v815, %v807
        %v928 = vpack.c.b16 %v816, %v808
        %v929 = vpack.c.b16 %v817, %v809
        %v930 = vpack.c.b16 %v818, %v810
        %v931 = vpack.c.b16 %v819, %v811
        %v932 = vpack.c.b16 %v820, %v812
        %v933 = vpack.c.b16 %v821, %v821
        %v934 = vpack.c.b16 %v822, %v822
        %v935 = vpack.c.b16 %v823, %v823
        %v936 = vpack.c.b16 %v824, %v824
        %v937 = vpack.c.b16 %v825, %v825
        %v938 = vpack.c.b16 %v826, %v826
        %v939 = vpack.c.b16 %v827, %v827
        %v940 = vpack.c.b16 %v828, %v828
        %vm1045 = vcmask 719872
        %v1047 = vsel %vm1045, %v500, 0
        %v1050 = vsel %vm1045, %v502, 0
        %vm1052 = vcmask 1043456
        %v1054 = vsel %vm1052, %v933, 0
        %v1057 = vsel %vm1052, %v934, 0
        %v1060 = vsel %vm1052, %v935, 0
        %v1063 = vsel %vm1052, %v936, 0
        %v1066 = vsel %vm1052, %v937, 0
        %v1069 = vsel %vm1052, %v938, 0
        %v1072 = vsel %vm1052, %v939, 0
        %v1075 = vsel %vm1052, %v940, 0
        %1077 = vmatprep.subr.bf16.mxu0 %v830
        %1078 = vmatpush1.bf16.msra.mxu0 %v829
        %1079 = vmatprep.subr.bf16.mxu0 %v838
        %1080 = vmatpush1.bf16.msra.mxu0 %v837
        %1081 = vmatprep.subr.bf16.mxu0 %v846
        %1082 = vmatpush1.bf16.msra.mxu0 %v845
        %1083 = vmatprep.subr.bf16.mxu0 %v854
        %1084 = vmatpush1.bf16.msra.mxu0 %v853
        %1085 = vmatprep.subr.bf16.mxu0 %v862
        %1086 = vmatpush1.bf16.msra.mxu0 %v861
        %1087 = vmatprep.subr.bf16.mxu0 %v870
        %1088 = vmatpush1.bf16.msra.mxu0 %v869
        %1089 = vmatprep.subr.bf16.mxu0 %v878
        %1090 = vmatpush1.bf16.msra.mxu0 %v877
        %1091 = vmatprep.subr.bf16.mxu0 %v886
        %1092 = vmatpush1.bf16.msra.mxu0 %v885
        %1093 = vmatprep.subr.bf16.mxu0 %v894
        %1094 = vmatpush1.bf16.msra.mxu0 %v893
        %1095 = vmatprep.subr.bf16.mxu0 %v902
        %1096 = vmatpush1.bf16.msra.mxu0 %v901
        %1097 = vmatprep.subr.bf16.mxu0 %v910
        %1098 = vmatpush1.bf16.msra.mxu0 %v909
        %1099 = vmatprep.subr.bf16.mxu0 %v918
        %1100 = vmatpush1.bf16.msra.mxu0 %v917
        %1101 = vmatprep.subr.bf16.mxu0 %v926
        %1102 = vmatpush1.bf16.msra.mxu0 %v925
        %1103 = vmatprep.subr.bf16.mxu0 %v1057
        %1104 = vmatpush1.bf16.msra.mxu0 %v1054
        %1105 = vmatprep.subr.bf16.mxu0 0
        %1106 = vmatpush1.bf16.msra.mxu0 0
        %1107 = vmatprep.subr.bf16.mxu0 0
        %1108 = vmatpush1.bf16.msra.mxu0 0
        %1109 = vmatprep.mubr.bf16.mxu0 %v1047
        %1110 = vmatmul.mubr.bf16.gmra.mrb[0].mxu0 %v499
        %v1111 = vpop.f32.mrb[0].mxu0
        %v1112 = vadd.f32 0.0, %v1111
        %v1113 = vpop.f32.mrb[0].mxu0
        %v1114 = vadd.f32 0.0, %v1113
        %v1115 = vpop.f32.mrb[0].mxu0
        %v1116 = vadd.f32 0.0, %v1115
        %v1117 = vpop.f32.mrb[0].mxu0
        %v1118 = vadd.f32 0.0, %v1117
        %1119 = vmatprep.mubr.bf16.mxu0 %v1050
        %1120 = vmatmul.mubr.bf16.gmra.mrb[0].mxu0 %v501
        %v1121 = vpop.f32.mrb[0].mxu0
        %v1122 = vadd.f32 0.0, %v1121
        %v1123 = vpop.f32.mrb[0].mxu0
        %v1124 = vadd.f32 0.0, %v1123
        %v1125 = vpop.f32.mrb[0].mxu0
        %v1126 = vadd.f32 0.0, %v1125
        %v1127 = vpop.f32.mrb[0].mxu0
        %v1128 = vadd.f32 0.0, %v1127
        %1129 = vdwg.mxu0
        %1130 = vmatprep.subr.bf16.mxu0 %v832
        %1131 = vmatpush1.bf16.msra.mxu0 %v831
        %1132 = vmatprep.subr.bf16.mxu0 %v840
        %1133 = vmatpush1.bf16.msra.mxu0 %v839
        %1134 = vmatprep.subr.bf16.mxu0 %v848
        %1135 = vmatpush1.bf16.msra.mxu0 %v847
        %1136 = vmatprep.subr.bf16.mxu0 %v856
        %1137 = vmatpush1.bf16.msra.mxu0 %v855
        %1138 = vmatprep.subr.bf16.mxu0 %v864
        %1139 = vmatpush1.bf16.msra.mxu0 %v863
        %1140 = vmatprep.subr.bf16.mxu0 %v872
        %1141 = vmatpush1.bf16.msra.mxu0 %v871
        %1142 = vmatprep.subr.bf16.mxu0 %v880
        %1143 = vmatpush1.bf16.msra.mxu0 %v879
        %1144 = vmatprep.subr.bf16.mxu0 %v888
        %1145 = vmatpush1.bf16.msra.mxu0 %v887
        %1146 = vmatprep.subr.bf16.mxu0 %v896
        %1147 = vmatpush1.bf16.msra.mxu0 %v895
        %1148 = vmatprep.subr.bf16.mxu0 %v904
        %1149 = vmatpush1.bf16.msra.mxu0 %v903
        %1150 = vmatprep.subr.bf16.mxu0 %v912
        %1151 = vmatpush1.bf16.msra.mxu0 %v911
        %1152 = vmatprep.subr.bf16.mxu0 %v920
        %1153 = vmatpush1.bf16.msra.mxu0 %v919
        %1154 = vmatprep.subr.bf16.mxu0 %v928
        %1155 = vmatpush1.bf16.msra.mxu0 %v927
        %1156 = vmatprep.subr.bf16.mxu0 %v1063
        %1157 = vmatpush1.bf16.msra.mxu0 %v1060
        %1158 = vmatprep.subr.bf16.mxu0 0
        %1159 = vmatpush1.bf16.msra.mxu0 0
        %1160 = vmatprep.subr.bf16.mxu0 0
        %1161 = vmatpush1.bf16.msra.mxu0 0
        %1162 = vmatprep.mubr.bf16.mxu0 %v1047
        %1163 = vmatmul.mubr.bf16.gmra.mrb[0].mxu0 %v499
        %v1164 = vpop.f32.mrb[0].mxu0
        %v1165 = vadd.f32 0.0, %v1164
        %v1166 = vpop.f32.mrb[0].mxu0
        %v1167 = vadd.f32 0.0, %v1166
        %v1168 = vpop.f32.mrb[0].mxu0
        %v1169 = vadd.f32 0.0, %v1168
        %v1170 = vpop.f32.mrb[0].mxu0
        %v1171 = vadd.f32 0.0, %v1170
        %1172 = vmatprep.mubr.bf16.mxu0 %v1050
        %1173 = vmatmul.mubr.bf16.gmra.mrb[0].mxu0 %v501
        %v1174 = vpop.f32.mrb[0].mxu0
        %v1175 = vadd.f32 0.0, %v1174
        %v1176 = vpop.f32.mrb[0].mxu0
        %v1177 = vadd.f32 0.0, %v1176
        %v1178 = vpop.f32.mrb[0].mxu0
        %v1179 = vadd.f32 0.0, %v1178
        %v1180 = vpop.f32.mrb[0].mxu0
        %v1181 = vadd.f32 0.0, %v1180
        %1182 = vdwg.mxu0
        %1183 = vmatprep.subr.bf16.mxu0 %v834
        %1184 = vmatpush1.bf16.msra.mxu0 %v833
        %1185 = vmatprep.subr.bf16.mxu0 %v842
        %1186 = vmatpush1.bf16.msra.mxu0 %v841
        %1187 = vmatprep.subr.bf16.mxu0 %v850
        %1188 = vmatpush1.bf16.msra.mxu0 %v849
        %1189 = vmatprep.subr.bf16.mxu0 %v858
        %1190 = vmatpush1.bf16.msra.mxu0 %v857
        %1191 = vmatprep.subr.bf16.mxu0 %v866
        %1192 = vmatpush1.bf16.msra.mxu0 %v865
        %1193 = vmatprep.subr.bf16.mxu0 %v874
        %1194 = vmatpush1.bf16.msra.mxu0 %v873
        %1195 = vmatprep.subr.bf16.mxu0 %v882
        %1196 = vmatpush1.bf16.msra.mxu0 %v881
        %1197 = vmatprep.subr.bf16.mxu0 %v890
        %1198 = vmatpush1.bf16.msra.mxu0 %v889
        %1199 = vmatprep.subr.bf16.mxu0 %v898
        %1200 = vmatpush1.bf16.msra.mxu0 %v897
        %1201 = vmatprep.subr.bf16.mxu0 %v906
        %1202 = vmatpush1.bf16.msra.mxu0 %v905
        %1203 = vmatprep.subr.bf16.mxu0 %v914
        %1204 = vmatpush1.bf16.msra.mxu0 %v913
        %1205 = vmatprep.subr.bf16.mxu0 %v922
        %1206 = vmatpush1.bf16.msra.mxu0 %v921
        %1207 = vmatprep.subr.bf16.mxu0 %v930
        %1208 = vmatpush1.bf16.msra.mxu0 %v929
        %1209 = vmatprep.subr.bf16.mxu0 %v1069
        %1210 = vmatpush1.bf16.msra.mxu0 %v1066
        %1211 = vmatprep.subr.bf16.mxu0 0
        %1212 = vmatpush1.bf16.msra.mxu0 0
        %1213 = vmatprep.subr.bf16.mxu0 0
        %1214 = vmatpush1.bf16.msra.mxu0 0
        %1215 = vmatprep.mubr.bf16.mxu0 %v1047
        %1216 = vmatmul.mubr.bf16.gmra.mrb[0].mxu0 %v499
        %v1217 = vpop.f32.mrb[0].mxu0
        %v1218 = vadd.f32 0.0, %v1217
        %v1219 = vpop.f32.mrb[0].mxu0
        %v1220 = vadd.f32 0.0, %v1219
        %v1221 = vpop.f32.mrb[0].mxu0
        %v1222 = vadd.f32 0.0, %v1221
        %v1223 = vpop.f32.mrb[0].mxu0
        %v1224 = vadd.f32 0.0, %v1223
        %1225 = vmatprep.mubr.bf16.mxu0 %v1050
        %1226 = vmatmul.mubr.bf16.gmra.mrb[0].mxu0 %v501
        %v1227 = vpop.f32.mrb[0].mxu0
        %v1228 = vadd.f32 0.0, %v1227
        %v1229 = vpop.f32.mrb[0].mxu0
        %v1230 = vadd.f32 0.0, %v1229
        %v1231 = vpop.f32.mrb[0].mxu0
        %v1232 = vadd.f32 0.0, %v1231
        %v1233 = vpop.f32.mrb[0].mxu0
        %v1234 = vadd.f32 0.0, %v1233
        %1235 = vdwg.mxu0
        %1236 = vmatprep.subr.bf16.mxu0 %v836
        %1237 = vmatpush1.bf16.msra.mxu0 %v835
        %1238 = vmatprep.subr.bf16.mxu0 %v844
        %1239 = vmatpush1.bf16.msra.mxu0 %v843
        %1240 = vmatprep.subr.bf16.mxu0 %v852
        %1241 = vmatpush1.bf16.msra.mxu0 %v851
        %1242 = vmatprep.subr.bf16.mxu0 %v860
        %1243 = vmatpush1.bf16.msra.mxu0 %v859
        %1244 = vmatprep.subr.bf16.mxu0 %v868
        %1245 = vmatpush1.bf16.msra.mxu0 %v867
        %1246 = vmatprep.subr.bf16.mxu0 %v876
        %1247 = vmatpush1.bf16.msra.mxu0 %v875
        %1248 = vmatprep.subr.bf16.mxu0 %v884
        %1249 = vmatpush1.bf16.msra.mxu0 %v883
        %1250 = vmatprep.subr.bf16.mxu0 %v892
        %1251 = vmatpush1.bf16.msra.mxu0 %v891
        %1252 = vmatprep.subr.bf16.mxu0 %v900
        %1253 = vmatpush1.bf16.msra.mxu0 %v899
        %1254 = vmatprep.subr.bf16.mxu0 %v908
        %1255 = vmatpush1.bf16.msra.mxu0 %v907
        %1256 = vmatprep.subr.bf16.mxu0 %v916
        %1257 = vmatpush1.bf16.msra.mxu0 %v915
        %1258 = vmatprep.subr.bf16.mxu0 %v924
        %1259 = vmatpush1.bf16.msra.mxu0 %v923
        %1260 = vmatprep.subr.bf16.mxu0 %v932
        %1261 = vmatpush1.bf16.msra.mxu0 %v931
        %1262 = vmatprep.subr.bf16.mxu0 %v1075
        %1263 = vmatpush1.bf16.msra.mxu0 %v1072
        %1264 = vmatprep.subr.bf16.mxu0 0
        %1265 = vmatpush1.bf16.msra.mxu0 0
        %1266 = vmatprep.subr.bf16.mxu0 0
        %1267 = vmatpush1.bf16.msra.mxu0 0
        %1268 = vmatprep.mubr.bf16.mxu0 %v1047
        %1269 = vmatmul.mubr.bf16.gmra.mrb[0].mxu0 %v499
        %v1270 = vpop.f32.mrb[0].mxu0
        %v1271 = vadd.f32 0.0, %v1270
        %v1272 = vpop.f32.mrb[0].mxu0
        %v1273 = vadd.f32 0.0, %v1272
        %v1274 = vpop.f32.mrb[0].mxu0
        %v1275 = vadd.f32 0.0, %v1274
        %v1276 = vpop.f32.mrb[0].mxu0
        %v1277 = vadd.f32 0.0, %v1276
        %1278 = vmatprep.mubr.bf16.mxu0 %v1050
        %1279 = vmatmul.mubr.bf16.gmra.mrb[0].mxu0 %v501
        %v1280 = vpop.f32.mrb[0].mxu0
        %v1281 = vadd.f32 0.0, %v1280
        %v1282 = vpop.f32.mrb[0].mxu0
        %v1283 = vadd.f32 0.0, %v1282
        %v1284 = vpop.f32.mrb[0].mxu0
        %v1285 = vadd.f32 0.0, %v1284
        %v1286 = vpop.f32.mrb[0].mxu0
        %v1287 = vadd.f32 0.0, %v1286
        %1288 = vdwg.mxu0
        %1289 = vst [vmem:[%s371] sm:$0xff] %v1112
        %1290 = vst [vmem:[%s371 + $0x8] sm:$0xff] %v1114
        %1291 = vst [vmem:[%s371 + $0x10] sm:$0xff] %v1165
        %1292 = vst [vmem:[%s371 + $0x18] sm:$0xff] %v1167
        %1293 = vst [vmem:[%s371 + $0x20] sm:$0xff] %v1218
        %1294 = vst [vmem:[%s371 + $0x28] sm:$0xff] %v1220
        %1295 = vst [vmem:[%s371 + $0x30] sm:$0xff] %v1271
        %1296 = vst [vmem:[%s371 + $0x38] sm:$0xff] %v1273
        %1297 = vst [vmem:[%s371 + $0x40] sm:$0xff] %v1116
        %1298 = vst [vmem:[%s371 + $0x48] sm:$0xff] %v1118
        %1299 = vst [vmem:[%s371 + $0x50] sm:$0xff] %v1169
        %1300 = vst [vmem:[%s371 + $0x58] sm:$0xff] %v1171
        %1301 = vst [vmem:[%s371 + $0x60] sm:$0xff] %v1222
        %1302 = vst [vmem:[%s371 + $0x68] sm:$0xff] %v1224
        %1303 = vst [vmem:[%s371 + $0x70] sm:$0xff] %v1275
        %1304 = vst [vmem:[%s371 + $0x78] sm:$0xff] %v1277
        %1305 = vst [vmem:[%s371 + $0x80] sm:$0xff] %v1122
        %1306 = vst [vmem:[%s371 + $0x88] sm:$0xff] %v1124
        %1307 = vst [vmem:[%s371 + $0x90] sm:$0xff] %v1175
        %1308 = vst [vmem:[%s371 + $0x98] sm:$0xff] %v1177
        %1309 = vst [vmem:[%s371 + $0xa0] sm:$0xff] %v1228
        %1310 = vst [vmem:[%s371 + $0xa8] sm:$0xff] %v1230
        %1311 = vst [vmem:[%s371 + $0xb0] sm:$0xff] %v1281
        %1312 = vst [vmem:[%s371 + $0xb8] sm:$0xff] %v1283
        %1313 = vst [vmem:[%s371 + $0xc0] sm:$0xff] %v1126
        %1314 = vst [vmem:[%s371 + $0xc8] sm:$0xff] %v1128
        %1315 = vst [vmem:[%s371 + $0xd0] sm:$0xff] %v1179
        %1316 = vst [vmem:[%s371 + $0xd8] sm:$0xff] %v1181
        %1317 = vst [vmem:[%s371 + $0xe0] sm:$0xff] %v1232
        %1318 = vst [vmem:[%s371 + $0xe8] sm:$0xff] %v1234
        %1319 = vst [vmem:[%s371 + $0xf0] sm:$0xff] %v1285
        %1320 = vst [vmem:[%s371 + $0xf8] sm:$0xff] %v1287
        %s1321 = sand.u32 %s68, 1
        %s1322 = sand.u32 %s68, 1
        %s1323 = smul.addr %s1322, 256
        %s1324 = scalar_lea.vmem [#allocation3], %s1323
        // Predicated region
        $region52: #{encoder_caps_forward.6} parent=46 // pred_check
          %p1325 = pneg %p78
        $region53: #{encoder_caps_forward.6} parent=46 // pred_check_branch
          %1327 = sbr.rel (%p1325) target = $region55
        $region54: #{encoder_caps_forward.6} parent=46 // pred_region
          %s1328 = smul.u32 8, %s13
          %s1329 = smul.addr %s1328, 8
          %s1330 = scalar_lea.vmem %s2, %s1329
          // Predicated region
          $region56: #{encoder_caps_forward.6} parent=54 // pred_check
            _
          $region57: #{encoder_caps_forward.6} parent=54 // pred_check_branch
            %1332 = sbr.rel (0) target = $region59
          $region58: #{encoder_caps_forward.6} parent=54 // pred_region
            // Predicated region
            $region60: #{encoder_caps_forward.6} parent=58 // pred_check
              _
            $region61: #{encoder_caps_forward.6} parent=58 // pred_check_branch
              %1334 = sbr.rel (0) target = $region63
            $region62: #{encoder_caps_forward.6} parent=58 // pred_region
              loop: start=0, step=1, limit=1
              $region64: #{encoder_caps_forward.6} parent=62 // loop_pre_header
                _
              $region65: #{encoder_caps_forward.6} parent=62 // loop_header
                %s1336 = sphi 0, %s1340
                %p1337 = scmp.ge.s32.totalorder %s1336, 1
                %s1341 = sphi %s1324, %s1324
                %s1342 = sphi %s1330, %s1330
              $region66: #{encoder_caps_forward.6} parent=62 // loop_header_branch
                %1339 = sbr.rel (%p1337) target = $region70
              $region67: #{encoder_caps_forward.6} parent=62 // loop_body
                %v1343 = vld [vmem:[%s1341] sm:$0xff]
                %1344 = vst [vmem:[%s1342] sm:$0xff] %v1343
                %v1345 = vld [vmem:[%s1341 + $0x8] sm:$0xff]
                %1346 = vst [vmem:[%s1342 + $0x8] sm:$0xff] %v1345
                %v1347 = vld [vmem:[%s1341 + $0x10] sm:$0xff]
                %1348 = vst [vmem:[%s1342 + $0x10] sm:$0xff] %v1347
                %v1349 = vld [vmem:[%s1341 + $0x18] sm:$0xff]
                %1350 = vst [vmem:[%s1342 + $0x18] sm:$0xff] %v1349
                %v1351 = vld [vmem:[%s1341 + $0x20] sm:$0xff]
                %1352 = vst [vmem:[%s1342 + $0x20] sm:$0xff] %v1351
                %v1353 = vld [vmem:[%s1341 + $0x28] sm:$0xff]
                %1354 = vst [vmem:[%s1342 + $0x28] sm:$0xff] %v1353
                %v1355 = vld [vmem:[%s1341 + $0x30] sm:$0xff]
                %1356 = vst [vmem:[%s1342 + $0x30] sm:$0xff] %v1355
                %v1357 = vld [vmem:[%s1341 + $0x38] sm:$0xff]
                %1358 = vst [vmem:[%s1342 + $0x38] sm:$0xff] %v1357
                %v1359 = vld [vmem:[%s1341 + $0x40] sm:$0xff]
                %1360 = vst [vmem:[%s1342 + $0x80] sm:$0xff] %v1359
                %v1361 = vld [vmem:[%s1341 + $0x48] sm:$0xff]
                %1362 = vst [vmem:[%s1342 + $0x88] sm:$0xff] %v1361
                %v1363 = vld [vmem:[%s1341 + $0x50] sm:$0xff]
                %1364 = vst [vmem:[%s1342 + $0x90] sm:$0xff] %v1363
                %v1365 = vld [vmem:[%s1341 + $0x58] sm:$0xff]
                %1366 = vst [vmem:[%s1342 + $0x98] sm:$0xff] %v1365
                %v1367 = vld [vmem:[%s1341 + $0x60] sm:$0xff]
                %1368 = vst [vmem:[%s1342 + $0xa0] sm:$0xff] %v1367
                %v1369 = vld [vmem:[%s1341 + $0x68] sm:$0xff]
                %1370 = vst [vmem:[%s1342 + $0xa8] sm:$0xff] %v1369
                %v1371 = vld [vmem:[%s1341 + $0x70] sm:$0xff]
                %1372 = vst [vmem:[%s1342 + $0xb0] sm:$0xff] %v1371
                %v1373 = vld [vmem:[%s1341 + $0x78] sm:$0xff]
                %1374 = vst [vmem:[%s1342 + $0xb8] sm:$0xff] %v1373
                %v1375 = vld [vmem:[%s1341 + $0x80] sm:$0xff]
                %1376 = vst [vmem:[%s1342 + $0x100] sm:$0xff] %v1375
                %v1377 = vld [vmem:[%s1341 + $0x88] sm:$0xff]
                %1378 = vst [vmem:[%s1342 + $0x108] sm:$0xff] %v1377
                %v1379 = vld [vmem:[%s1341 + $0x90] sm:$0xff]
                %1380 = vst [vmem:[%s1342 + $0x110] sm:$0xff] %v1379
                %v1381 = vld [vmem:[%s1341 + $0x98] sm:$0xff]
                %1382 = vst [vmem:[%s1342 + $0x118] sm:$0xff] %v1381
                %v1383 = vld [vmem:[%s1341 + $0xa0] sm:$0xff]
                %1384 = vst [vmem:[%s1342 + $0x120] sm:$0xff] %v1383
                %v1385 = vld [vmem:[%s1341 + $0xa8] sm:$0xff]
                %1386 = vst [vmem:[%s1342 + $0x128] sm:$0xff] %v1385
                %v1387 = vld [vmem:[%s1341 + $0xb0] sm:$0xff]
                %1388 = vst [vmem:[%s1342 + $0x130] sm:$0xff] %v1387
                %v1389 = vld [vmem:[%s1341 + $0xb8] sm:$0xff]
                %1390 = vst [vmem:[%s1342 + $0x138] sm:$0xff] %v1389
                %v1391 = vld [vmem:[%s1341 + $0xc0] sm:$0xff]
                %1392 = vst [vmem:[%s1342 + $0x180] sm:$0xff] %v1391
                %v1393 = vld [vmem:[%s1341 + $0xc8] sm:$0xff]
                %1394 = vst [vmem:[%s1342 + $0x188] sm:$0xff] %v1393
                %v1395 = vld [vmem:[%s1341 + $0xd0] sm:$0xff]
                %1396 = vst [vmem:[%s1342 + $0x190] sm:$0xff] %v1395
                %v1397 = vld [vmem:[%s1341 + $0xd8] sm:$0xff]
                %1398 = vst [vmem:[%s1342 + $0x198] sm:$0xff] %v1397
                %v1399 = vld [vmem:[%s1341 + $0xe0] sm:$0xff]
                %1400 = vst [vmem:[%s1342 + $0x1a0] sm:$0xff] %v1399
                %v1401 = vld [vmem:[%s1341 + $0xe8] sm:$0xff]
                %1402 = vst [vmem:[%s1342 + $0x1a8] sm:$0xff] %v1401
                %v1403 = vld [vmem:[%s1341 + $0xf0] sm:$0xff]
                %1404 = vst [vmem:[%s1342 + $0x1b0] sm:$0xff] %v1403
                %v1405 = vld [vmem:[%s1341 + $0xf8] sm:$0xff]
                %1406 = vst [vmem:[%s1342 + $0x1b8] sm:$0xff] %v1405
              $region68: #{encoder_caps_forward.6} parent=62 // loop_footer
                %s1340 = sadd.s32 1, %s1336
              $region69: #{encoder_caps_forward.6} parent=62 // loop_footer_branch
                %1335 = sbr.rel target = $region65
              $region70: #{encoder_caps_forward.6} parent=62 // loop_exit
                _
            $region63: #{encoder_caps_forward.6} parent=58 // pred_fallthru
              _
            // Predicated region
            $region71: #{encoder_caps_forward.6} parent=58 // pred_check
              _
            $region72: #{encoder_caps_forward.6} parent=58 // pred_check_branch
              %1408 = sbr.rel target = $region74
            $region73: #{encoder_caps_forward.6} parent=58 // pred_region
              _
            $region74: #{encoder_caps_forward.6} parent=58 // pred_fallthru
              _
          $region59: #{encoder_caps_forward.6} parent=54 // pred_fallthru
            _
          %1409 = vnop
        $region55: #{encoder_caps_forward.6} parent=46 // pred_fallthru
          _
      $region47: #{encoder_caps_forward.6} parent=5 // pred_fallthru
        _
      %p1410 = scmp.le.s32.totalorder 2, %s8
      // Predicated region
      $region75: #{encoder_caps_forward.6} parent=5 // pred_check
        %p1411 = pneg %p1410
      $region76: #{encoder_caps_forward.6} parent=5 // pred_check_branch
        %1413 = sbr.rel (%p1411) target = $region78
      $region77: #{encoder_caps_forward.6} parent=5 // pred_region
        %s1414 = ssub.s32 %s8, 2
        // Predicated region
        $region79: #{encoder_caps_forward.6} parent=77 // pred_check
          %p1415 = pneg %p84
        $region80: #{encoder_caps_forward.6} parent=77 // pred_check_branch
          %1417 = sbr.rel (%p1415) target = $region82
        $region81: #{encoder_caps_forward.6} parent=77 // pred_region
          %s1418 = sand.u32 %s69, 1
          %s1419 = sand.u32 %s69, 1
          %s1420 = smul.addr %s1419, 256
          %s1421 = scalar_lea.vmem [#allocation3], %s1420
        $region82: #{encoder_caps_forward.6} parent=77 // pred_fallthru
          _
      $region78: #{encoder_caps_forward.6} parent=5 // pred_fallthru
        _
    $region6: #{encoder_caps_forward.6} parent=1 // loop_footer
      %s12 = sadd.s32 1, %s8
    $region7: #{encoder_caps_forward.6} parent=1 // loop_footer_branch
      %7 = sbr.rel target = $region3
    $region8: #{encoder_caps_forward.6} parent=1 // loop_exit
      _

// kernel: encoder_caps_forward.7
$region0: #{encoder_caps_forward.7}
  #allocation0 [shape = 'u32[]', space=smem, size = 0x4, offset = 0x4, fixed_abs, tag = 'smem constant byte address 0x4 - core index']
  #allocation1 [shape = 'u32[144,128]{1,0:T(1,128)}', space=vmem, size = 0x12000, scoped, tag = 'internal scratch']
  %s0 = inlined_call_operand.vmem [shape: f32[4,8,1,4,512], index: 0, kind: input, shape index: {}]
  %s1 = inlined_call_operand.vmem [shape: f32[4,8,1], index: 1, kind: input, shape index: {}]
  %s2 = inlined_call_operand.vmem [shape: f32[1,4,8,512], index: 2, kind: output, shape index: {}]
  %s3 = sld [smem:[#allocation0]]
  $region98: #{encoder_caps_forward.7} parent=0
    _
  %s5 = ssub.s32 1, %s3
  %s6 = scalar_select 0, %s5, %s3
  $region1: #{encoder_caps_forward.7} parent=0
    #allocation2 [shape = 'u8[262144]{0}', space=vmem, size = 0x40000, scoped, tag = 'input window, operand 0']
    #allocation3 [shape = 'u8[65536]{0}', space=vmem, size = 0x10000, scoped, tag = 'output window, operand 0']
    loop: start=0, step=1, limit=4
    $region2: #{encoder_caps_forward.7} parent=1 // loop_pre_header
      _
    $region3: #{encoder_caps_forward.7} parent=1 // loop_header
      %s8 = sphi 0, %s12
      %p9 = scmp.ge.s32.totalorder %s8, 4
      %s15 = sphi 0, %s27
      %s16 = sphi 0, %s23
      %s17 = sphi 0, %s15
      %s18 = sphi 0, %s16
      %s19 = sphi 0, %s17
      %s20 = sphi 0, %s18
      %s32 = sphi 0, %s34
      %s35 = sphi 0, %s32
      %s36 = sphi 0, %s35
      %s52 = sphi 0, %s36
      %s56 = sphi 0, %s56
      %s58 = sphi 0, %s56
      %s59 = sphi 0, %s58
      %s73 = sphi 0, %s59
      %s81 = sphi 0, %s83
      %s84 = sphi 0, %s81
      %s85 = sphi 0, %s84
      %s101 = sphi 0, %s85
    $region4: #{encoder_caps_forward.7} parent=1 // loop_header_branch
      %11 = sbr.rel (%p9) target = $region8
    $region5: #{encoder_caps_forward.7} parent=1 // loop_body
      %s13 = ssub.s32 %s8, 1
      %s14 = ssub.s32 %s8, 2
      %s21 = sadd.s32 1, %s16
      %p22 = scmp.ge.s32.totalorder %s21, 2
      %s23 = scalar_select %p22, 0, %s21
      %s24 = sadd.s32 1, %s15
      %s25 = scalar_select %p22, %s24, %s15
      %p26 = scmp.ge.s32.totalorder %s25, 1
      %s27 = scalar_select %p26, 0, %s25
      %s28 = ssub.s32 %s15, %s27
      %s29 = ssub.s32 %s16, %s23
      %s30 = sor.u32 %s28, %s29
      %p31 = scmp.eq.s32.totalorder %s30, 0
      %s33 = sadd.s32 %s32, 1
      %s34 = scalar_select %p31, %s32, %s33
      %p37 = pneg %p31
      %p38 = scmp.eq.s32.totalorder %s8, 1
      %p39 = por %p37, %p38
      %p40 = scmp.ne.s32.totalorder %s32, %s35
      %p41 = scmp.eq.s32.totalorder %s8, 0
      %p42 = por %p40, %p41
      %p43 = scmp.ne.s32.totalorder %s32, %s35
      %p44 = scmp.eq.s32.totalorder %s13, 1
      %p45 = por %p43, %p44
      %p46 = scmp.ne.s32.totalorder %s35, %s36
      %p47 = scmp.eq.s32.totalorder %s13, 0
      %p48 = por %p46, %p47
      %p49 = scmp.ne.s32.totalorder %s35, %s36
      %p50 = scmp.eq.s32.totalorder %s14, 1
      %p51 = por %p49, %p50
      %p53 = scmp.ne.s32.totalorder %s36, %s52
      %p54 = scmp.eq.s32.totalorder %s14, 0
      %p55 = por %p53, %p54
      %s57 = sadd.s32 %s56, 1
      %p60 = scmp.eq.s32.totalorder %s8, 1
      %p61 = scmp.ne.s32.totalorder %s56, %s58
      %p62 = scmp.eq.s32.totalorder %s8, 0
      %p63 = por %p61, %p62
      %p64 = scmp.ne.s32.totalorder %s56, %s58
      %p65 = scmp.eq.s32.totalorder %s13, 1
      %p66 = por %p64, %p65
      %p67 = scmp.ne.s32.totalorder %s58, %s59
      %p68 = scmp.eq.s32.totalorder %s13, 0
      %p69 = por %p67, %p68
      %p70 = scmp.ne.s32.totalorder %s58, %s59
      %p71 = scmp.eq.s32.totalorder %s14, 1
      %p72 = por %p70, %p71
      %p74 = scmp.ne.s32.totalorder %s59, %s73
      %p75 = scmp.eq.s32.totalorder %s14, 0
      %p76 = por %p74, %p75
      %s77 = ssub.s32 %s15, %s27
      %s78 = ssub.s32 %s16, %s23
      %s79 = sor.u32 %s77, %s78
      %p80 = scmp.eq.s32.totalorder %s79, 0
      %s82 = sadd.s32 %s81, 1
      %s83 = scalar_select %p80, %s81, %s82
      %p86 = pneg %p80
      %p87 = scmp.eq.s32.totalorder %s8, 1
      %p88 = por %p86, %p87
      %p89 = scmp.ne.s32.totalorder %s81, %s84
      %p90 = scmp.eq.s32.totalorder %s8, 0
      %p91 = por %p89, %p90
      %p92 = scmp.ne.s32.totalorder %s81, %s84
      %p93 = scmp.eq.s32.totalorder %s13, 1
      %p94 = por %p92, %p93
      %p95 = scmp.ne.s32.totalorder %s84, %s85
      %p96 = scmp.eq.s32.totalorder %s13, 0
      %p97 = por %p95, %p96
      %p98 = scmp.ne.s32.totalorder %s84, %s85
      %p99 = scmp.eq.s32.totalorder %s14, 1
      %p100 = por %p98, %p99
      %p102 = scmp.ne.s32.totalorder %s85, %s101
      %p103 = scmp.eq.s32.totalorder %s14, 0
      %p104 = por %p102, %p103
      %p105 = scmp.le.s32.totalorder 1, %s8
      %p106 = scmp.lt.s32.totalorder %s8, 3
      %p107 = pnand %p105, %p106
      %p108 = pneg %p107
      // Predicated region
      $region9: #{encoder_caps_forward.7} parent=5 // pred_check
        _
      $region10: #{encoder_caps_forward.7} parent=5 // pred_check_branch
        %110 = sbr.rel (%p107) target = $region12
      $region11: #{encoder_caps_forward.7} parent=5 // pred_region
        %s111 = ssub.s32 %s8, 1
        // Predicated region
        $region13: #{encoder_caps_forward.7} parent=11 // pred_check
          %p112 = pneg %p69
        $region14: #{encoder_caps_forward.7} parent=11 // pred_check_branch
          %114 = sbr.rel (%p112) target = $region16
        $region15: #{encoder_caps_forward.7} parent=11 // pred_region
          _
        $region16: #{encoder_caps_forward.7} parent=11 // pred_fallthru
          _
      $region12: #{encoder_caps_forward.7} parent=5 // pred_fallthru
        _
      %p115 = scmp.lt.s32.totalorder %s8, 2
      // Predicated region
      $region17: #{encoder_caps_forward.7} parent=5 // pred_check
        %p116 = pneg %p115
      $region18: #{encoder_caps_forward.7} parent=5 // pred_check_branch
        %118 = sbr.rel (%p116) target = $region20
      $region19: #{encoder_caps_forward.7} parent=5 // pred_region
        // Predicated region
        $region21: #{encoder_caps_forward.7} parent=19 // pred_check
          %p119 = pneg %p42
        $region22: #{encoder_caps_forward.7} parent=19 // pred_check_branch
          %121 = sbr.rel (%p119) target = $region24
        $region23: #{encoder_caps_forward.7} parent=19 // pred_region
          %s122 = sand.u32 %s32, 1
          %s123 = sand.u32 %s32, 1
          %s124 = smul.addr %s123, 256
          %s125 = scalar_lea.vmem [#allocation2], %s124
          %s126 = smul.u32 2, %s16
          %s127 = smul.addr %s15, 4
          %s128 = sadd.s32 %s126, %s127
          %s129 = smul.addr %s128, 4
          %s130 = scalar_lea.vmem %s0, %s129
          // Predicated region
          $region25: #{encoder_caps_forward.7} parent=23 // pred_check
            _
          $region26: #{encoder_caps_forward.7} parent=23 // pred_check_branch
            %132 = sbr.rel (0) target = $region28
          $region27: #{encoder_caps_forward.7} parent=23 // pred_region
            // Predicated region
            $region29: #{encoder_caps_forward.7} parent=27 // pred_check
              _
            $region30: #{encoder_caps_forward.7} parent=27 // pred_check_branch
              %134 = sbr.rel (0) target = $region32
            $region31: #{encoder_caps_forward.7} parent=27 // pred_region
              // Predicated region
              $region44: #{encoder_caps_forward.7} parent=31 // pred_check
                _
              $region45: #{encoder_caps_forward.7} parent=31 // pred_check_branch
                %211 = sbr.rel (0) target = $region47
              $region46: #{encoder_caps_forward.7} parent=31 // pred_region
                loop: start=0, step=1, limit=1
                $region48: #{encoder_caps_forward.7} parent=46 // loop_pre_header
                  _
                $region49: #{encoder_caps_forward.7} parent=46 // loop_header
                  %s213 = sphi 0, %s217
                  %p214 = scmp.ge.s32.totalorder %s213, 1
                  %s218 = sphi %s130, %s130
                  %s219 = sphi %s125, %s125
                $region50: #{encoder_caps_forward.7} parent=46 // loop_header_branch
                  %216 = sbr.rel (%p214) target = $region54
                $region51: #{encoder_caps_forward.7} parent=46 // loop_body
                  %v220 = vld [vmem:[%s218] sm:$0xff]
                  %221 = vst [vmem:[%s219] sm:$0xff] %v220
                  %v222 = vld [vmem:[%s218 + $0x10] sm:$0xff]
                  %223 = vst [vmem:[%s219 + $0x8] sm:$0xff] %v222
                  %v224 = vld [vmem:[%s218 + $0x20] sm:$0xff]
                  %225 = vst [vmem:[%s219 + $0x10] sm:$0xff] %v224
                  %v226 = vld [vmem:[%s218 + $0x30] sm:$0xff]
                  %227 = vst [vmem:[%s219 + $0x18] sm:$0xff] %v226
                  %v228 = vld [vmem:[%s218 + $0x40] sm:$0xff]
                  %229 = vst [vmem:[%s219 + $0x20] sm:$0xff] %v228
                  %v230 = vld [vmem:[%s218 + $0x50] sm:$0xff]
                  %231 = vst [vmem:[%s219 + $0x28] sm:$0xff] %v230
                  %v232 = vld [vmem:[%s218 + $0x60] sm:$0xff]
                  %233 = vst [vmem:[%s219 + $0x30] sm:$0xff] %v232
                  %v234 = vld [vmem:[%s218 + $0x70] sm:$0xff]
                  %235 = vst [vmem:[%s219 + $0x38] sm:$0xff] %v234
                  %v236 = vld [vmem:[%s218 + $0x80] sm:$0xff]
                  %237 = vst [vmem:[%s219 + $0x40] sm:$0xff] %v236
                  %v238 = vld [vmem:[%s218 + $0x90] sm:$0xff]
                  %239 = vst [vmem:[%s219 + $0x48] sm:$0xff] %v238
                  %v240 = vld [vmem:[%s218 + $0xa0] sm:$0xff]
                  %241 = vst [vmem:[%s219 + $0x50] sm:$0xff] %v240
                  %v242 = vld [vmem:[%s218 + $0xb0] sm:$0xff]
                  %243 = vst [vmem:[%s219 + $0x58] sm:$0xff] %v242
                  %v244 = vld [vmem:[%s218 + $0xc0] sm:$0xff]
                  %245 = vst [vmem:[%s219 + $0x60] sm:$0xff] %v244
                  %v246 = vld [vmem:[%s218 + $0xd0] sm:$0xff]
                  %247 = vst [vmem:[%s219 + $0x68] sm:$0xff] %v246
                  %v248 = vld [vmem:[%s218 + $0xe0] sm:$0xff]
                  %249 = vst [vmem:[%s219 + $0x70] sm:$0xff] %v248
                  %v250 = vld [vmem:[%s218 + $0xf0] sm:$0xff]
                  %251 = vst [vmem:[%s219 + $0x78] sm:$0xff] %v250
                  %v252 = vld [vmem:[%s218 + $0x100] sm:$0xff]
                  %253 = vst [vmem:[%s219 + $0x80] sm:$0xff] %v252
                  %v254 = vld [vmem:[%s218 + $0x110] sm:$0xff]
                  %255 = vst [vmem:[%s219 + $0x88] sm:$0xff] %v254
                  %v256 = vld [vmem:[%s218 + $0x120] sm:$0xff]
                  %257 = vst [vmem:[%s219 + $0x90] sm:$0xff] %v256
                  %v258 = vld [vmem:[%s218 + $0x130] sm:$0xff]
                  %259 = vst [vmem:[%s219 + $0x98] sm:$0xff] %v258
                  %v260 = vld [vmem:[%s218 + $0x140] sm:$0xff]
                  %261 = vst [vmem:[%s219 + $0xa0] sm:$0xff] %v260
                  %v262 = vld [vmem:[%s218 + $0x150] sm:$0xff]
                  %263 = vst [vmem:[%s219 + $0xa8] sm:$0xff] %v262
                  %v264 = vld [vmem:[%s218 + $0x160] sm:$0xff]
                  %265 = vst [vmem:[%s219 + $0xb0] sm:$0xff] %v264
                  %v266 = vld [vmem:[%s218 + $0x170] sm:$0xff]
                  %267 = vst [vmem:[%s219 + $0xb8] sm:$0xff] %v266
                  %v268 = vld [vmem:[%s218 + $0x180] sm:$0xff]
                  %269 = vst [vmem:[%s219 + $0xc0] sm:$0xff] %v268
                  %v270 = vld [vmem:[%s218 + $0x190] sm:$0xff]
                  %271 = vst [vmem:[%s219 + $0xc8] sm:$0xff] %v270
                  %v272 = vld [vmem:[%s218 + $0x1a0] sm:$0xff]
                  %273 = vst [vmem:[%s219 + $0xd0] sm:$0xff] %v272
                  %v274 = vld [vmem:[%s218 + $0x1b0] sm:$0xff]
                  %275 = vst [vmem:[%s219 + $0xd8] sm:$0xff] %v274
                  %v276 = vld [vmem:[%s218 + $0x1c0] sm:$0xff]
                  %277 = vst [vmem:[%s219 + $0xe0] sm:$0xff] %v276
                  %v278 = vld [vmem:[%s218 + $0x1d0] sm:$0xff]
                  %279 = vst [vmem:[%s219 + $0xe8] sm:$0xff] %v278
                  %v280 = vld [vmem:[%s218 + $0x1e0] sm:$0xff]
                  %281 = vst [vmem:[%s219 + $0xf0] sm:$0xff] %v280
                  %v282 = vld [vmem:[%s218 + $0x1f0] sm:$0xff]
                  %283 = vst [vmem:[%s219 + $0xf8] sm:$0xff] %v282
                $region52: #{encoder_caps_forward.7} parent=46 // loop_footer
                  %s217 = sadd.s32 1, %s213
                $region53: #{encoder_caps_forward.7} parent=46 // loop_footer_branch
                  %212 = sbr.rel target = $region49
                $region54: #{encoder_caps_forward.7} parent=46 // loop_exit
                  _
              $region47: #{encoder_caps_forward.7} parent=31 // pred_fallthru
                _
              // Predicated region
              $region55: #{encoder_caps_forward.7} parent=31 // pred_check
                _
              $region56: #{encoder_caps_forward.7} parent=31 // pred_check_branch
                %285 = sbr.rel target = $region58
              $region57: #{encoder_caps_forward.7} parent=31 // pred_region
                _
              $region58: #{encoder_caps_forward.7} parent=31 // pred_fallthru
                _
            $region32: #{encoder_caps_forward.7} parent=27 // pred_fallthru
              _
            // Predicated region
            $region33: #{encoder_caps_forward.7} parent=27 // pred_check
              _
            $region34: #{encoder_caps_forward.7} parent=27 // pred_check_branch
              %136 = sbr.rel target = $region36
            $region35: #{encoder_caps_forward.7} parent=27 // pred_region
              loop: start=0, step=1, limit=1
              $region37: #{encoder_caps_forward.7} parent=35 // loop_pre_header
                _
              $region38: #{encoder_caps_forward.7} parent=35 // loop_header
                %s139 = sphi 0, %s143
                %p140 = scmp.ge.s32.totalorder %s139, 1
                %s144 = sphi %s130, %s130
                %s145 = sphi %s125, %s125
              $region39: #{encoder_caps_forward.7} parent=35 // loop_header_branch
                %142 = sbr.rel (%p140) target = $region43
              $region40: #{encoder_caps_forward.7} parent=35 // loop_body
                %v146 = vld [vmem:[%s144] sm:$0xff]
                %147 = vst [vmem:[%s145] sm:$0xff] %v146
                %v148 = vld [vmem:[%s144 + $0x10] sm:$0xff]
                %149 = vst [vmem:[%s145 + $0x8] sm:$0xff] %v148
                %v150 = vld [vmem:[%s144 + $0x20] sm:$0xff]
                %151 = vst [vmem:[%s145 + $0x10] sm:$0xff] %v150
                %v152 = vld [vmem:[%s144 + $0x30] sm:$0xff]
                %153 = vst [vmem:[%s145 + $0x18] sm:$0xff] %v152
                %v154 = vld [vmem:[%s144 + $0x40] sm:$0xff]
                %155 = vst [vmem:[%s145 + $0x20] sm:$0xff] %v154
                %v156 = vld [vmem:[%s144 + $0x50] sm:$0xff]
                %157 = vst [vmem:[%s145 + $0x28] sm:$0xff] %v156
                %v158 = vld [vmem:[%s144 + $0x60] sm:$0xff]
                %159 = vst [vmem:[%s145 + $0x30] sm:$0xff] %v158
                %v160 = vld [vmem:[%s144 + $0x70] sm:$0xff]
                %161 = vst [vmem:[%s145 + $0x38] sm:$0xff] %v160
                %v162 = vld [vmem:[%s144 + $0x80] sm:$0xff]
                %163 = vst [vmem:[%s145 + $0x40] sm:$0xff] %v162
                %v164 = vld [vmem:[%s144 + $0x90] sm:$0xff]
                %165 = vst [vmem:[%s145 + $0x48] sm:$0xff] %v164
                %v166 = vld [vmem:[%s144 + $0xa0] sm:$0xff]
                %167 = vst [vmem:[%s145 + $0x50] sm:$0xff] %v166
                %v168 = vld [vmem:[%s144 + $0xb0] sm:$0xff]
                %169 = vst [vmem:[%s145 + $0x58] sm:$0xff] %v168
                %v170 = vld [vmem:[%s144 + $0xc0] sm:$0xff]
                %171 = vst [vmem:[%s145 + $0x60] sm:$0xff] %v170
                %v172 = vld [vmem:[%s144 + $0xd0] sm:$0xff]
                %173 = vst [vmem:[%s145 + $0x68] sm:$0xff] %v172
                %v174 = vld [vmem:[%s144 + $0xe0] sm:$0xff]
                %175 = vst [vmem:[%s145 + $0x70] sm:$0xff] %v174
                %v176 = vld [vmem:[%s144 + $0xf0] sm:$0xff]
                %177 = vst [vmem:[%s145 + $0x78] sm:$0xff] %v176
                %v178 = vld [vmem:[%s144 + $0x100] sm:$0xff]
                %179 = vst [vmem:[%s145 + $0x80] sm:$0xff] %v178
                %v180 = vld [vmem:[%s144 + $0x110] sm:$0xff]
                %181 = vst [vmem:[%s145 + $0x88] sm:$0xff] %v180
                %v182 = vld [vmem:[%s144 + $0x120] sm:$0xff]
                %183 = vst [vmem:[%s145 + $0x90] sm:$0xff] %v182
                %v184 = vld [vmem:[%s144 + $0x130] sm:$0xff]
                %185 = vst [vmem:[%s145 + $0x98] sm:$0xff] %v184
                %v186 = vld [vmem:[%s144 + $0x140] sm:$0xff]
                %187 = vst [vmem:[%s145 + $0xa0] sm:$0xff] %v186
                %v188 = vld [vmem:[%s144 + $0x150] sm:$0xff]
                %189 = vst [vmem:[%s145 + $0xa8] sm:$0xff] %v188
                %v190 = vld [vmem:[%s144 + $0x160] sm:$0xff]
                %191 = vst [vmem:[%s145 + $0xb0] sm:$0xff] %v190
                %v192 = vld [vmem:[%s144 + $0x170] sm:$0xff]
                %193 = vst [vmem:[%s145 + $0xb8] sm:$0xff] %v192
                %v194 = vld [vmem:[%s144 + $0x180] sm:$0xff]
                %195 = vst [vmem:[%s145 + $0xc0] sm:$0xff] %v194
                %v196 = vld [vmem:[%s144 + $0x190] sm:$0xff]
                %197 = vst [vmem:[%s145 + $0xc8] sm:$0xff] %v196
                %v198 = vld [vmem:[%s144 + $0x1a0] sm:$0xff]
                %199 = vst [vmem:[%s145 + $0xd0] sm:$0xff] %v198
                %v200 = vld [vmem:[%s144 + $0x1b0] sm:$0xff]
                %201 = vst [vmem:[%s145 + $0xd8] sm:$0xff] %v200
                %v202 = vld [vmem:[%s144 + $0x1c0] sm:$0xff]
                %203 = vst [vmem:[%s145 + $0xe0] sm:$0xff] %v202
                %v204 = vld [vmem:[%s144 + $0x1d0] sm:$0xff]
                %205 = vst [vmem:[%s145 + $0xe8] sm:$0xff] %v204
                %v206 = vld [vmem:[%s144 + $0x1e0] sm:$0xff]
                %207 = vst [vmem:[%s145 + $0xf0] sm:$0xff] %v206
                %v208 = vld [vmem:[%s144 + $0x1f0] sm:$0xff]
                %209 = vst [vmem:[%s145 + $0xf8] sm:$0xff] %v208
              $region41: #{encoder_caps_forward.7} parent=35 // loop_footer
                %s143 = sadd.s32 1, %s139
              $region42: #{encoder_caps_forward.7} parent=35 // loop_footer_branch
                %138 = sbr.rel target = $region38
              $region43: #{encoder_caps_forward.7} parent=35 // loop_exit
                _
            $region36: #{encoder_caps_forward.7} parent=27 // pred_fallthru
              _
          $region28: #{encoder_caps_forward.7} parent=23 // pred_fallthru
            _
          %286 = vnop
        $region24: #{encoder_caps_forward.7} parent=19 // pred_fallthru
          _
      $region20: #{encoder_caps_forward.7} parent=5 // pred_fallthru
        _
      %p287 = scmp.le.s32.totalorder 1, %s8
      %p288 = scmp.lt.s32.totalorder %s8, 3
      %p289 = pnand %p287, %p288
      %p290 = pneg %p289
      // Predicated region
      $region59: #{encoder_caps_forward.7} parent=5 // pred_check
        _
      $region60: #{encoder_caps_forward.7} parent=5 // pred_check_branch
        %292 = sbr.rel (%p289) target = $region62
      $region61: #{encoder_caps_forward.7} parent=5 // pred_region
        %s293 = ssub.s32 %s8, 1
        %s294 = sand.u32 %s35, 1
        %s295 = sand.u32 %s35, 1
        %s296 = smul.addr %s295, 256
        %s297 = scalar_lea.vmem [#allocation2], %s296
        // Predicated region
        $region63: #{encoder_caps_forward.7} parent=61 // pred_check
          %p298 = pneg %p48
        $region64: #{encoder_caps_forward.7} parent=61 // pred_check_branch
          %300 = sbr.rel (%p298) target = $region66
        $region65: #{encoder_caps_forward.7} parent=61 // pred_region
          _
        $region66: #{encoder_caps_forward.7} parent=61 // pred_fallthru
          _
        %s301 = sand.u32 %s35, 1
        %s302 = sand.u32 %s35, 1
        %s303 = smul.addr %s302, 256
        %s304 = scalar_lea.vmem [#allocation2], %s303
        %p305 = pneg %p48
        %p306 = pneg %p45
        %p307 = pneg %p69
        %p308 = pneg %p66
        %p309 = pneg %p97
        %p310 = pneg %p94
        %s311 = sand.u32 %s84, 1
        %s312 = sand.u32 %s84, 1
        %s313 = smul.addr %s312, 64
        %s314 = scalar_lea.vmem [#allocation3], %s313
        %s315 = smul.u32 2, %s18
        %s316 = smul.u32 2, %s18
        %v317 = vld [vmem:[%s297] sm:$0xff]
        %v318 = vld [vmem:[%s297 + $0x8] sm:$0xff]
        %v319 = vld [vmem:[%s297 + $0x10] sm:$0xff]
        %v320 = vld [vmem:[%s297 + $0x18] sm:$0xff]
        %v321 = vld [vmem:[%s297 + $0x20] sm:$0xff]
        %v322 = vld [vmem:[%s297 + $0x28] sm:$0xff]
        %v323 = vld [vmem:[%s297 + $0x30] sm:$0xff]
        %v324 = vld [vmem:[%s297 + $0x38] sm:$0xff]
        %v325 = vld [vmem:[%s297 + $0x40] sm:$0xff]
        %v326 = vld [vmem:[%s297 + $0x48] sm:$0xff]
        %v327 = vld [vmem:[%s297 + $0x50] sm:$0xff]
        %v328 = vld [vmem:[%s297 + $0x58] sm:$0xff]
        %v329 = vld [vmem:[%s297 + $0x60] sm:$0xff]
        %v330 = vld [vmem:[%s297 + $0x68] sm:$0xff]
        %v331 = vld [vmem:[%s297 + $0x70] sm:$0xff]
        %v332 = vld [vmem:[%s297 + $0x78] sm:$0xff]
        %v333 = vld [vmem:[%s297 + $0x80] sm:$0xff]
        %v334 = vld [vmem:[%s297 + $0x88] sm:$0xff]
        %v335 = vld [vmem:[%s297 + $0x90] sm:$0xff]
        %v336 = vld [vmem:[%s297 + $0x98] sm:$0xff]
        %v337 = vld [vmem:[%s297 + $0xa0] sm:$0xff]
        %v338 = vld [vmem:[%s297 + $0xa8] sm:$0xff]
        %v339 = vld [vmem:[%s297 + $0xb0] sm:$0xff]
        %v340 = vld [vmem:[%s297 + $0xb8] sm:$0xff]
        %v341 = vld [vmem:[%s297 + $0xc0] sm:$0xff]
        %v342 = vld [vmem:[%s297 + $0xc8] sm:$0xff]
        %v343 = vld [vmem:[%s297 + $0xd0] sm:$0xff]
        %v344 = vld [vmem:[%s297 + $0xd8] sm:$0xff]
        %v345 = vld [vmem:[%s297 + $0xe0] sm:$0xff]
        %v346 = vld [vmem:[%s297 + $0xe8] sm:$0xff]
        %v347 = vld [vmem:[%s297 + $0xf0] sm:$0xff]
        %v348 = vld [vmem:[%s297 + $0xf8] sm:$0xff]
        %v349 = vld [vmem:[%s1] sm:$0xff]
        %v350 = vld [vmem:[%s1 + $0x8] sm:$0xff]
        %v351 = vld [vmem:[%s1 + $0x10] sm:$0xff]
        %v352 = vld [vmem:[%s1 + $0x18] sm:$0xff]
        %v385 = vcombine.high %v317, %v317
        %v386 = vcombine.high %v318, %v318
        %v387 = vcombine.high %v319, %v319
        %v388 = vcombine.high %v320, %v320
        %v389 = vcombine.high %v321, %v321
        %v390 = vcombine.high %v322, %v322
        %v391 = vcombine.high %v323, %v323
        %v392 = vcombine.high %v324, %v324
        %v393 = vcombine.high %v325, %v325
        %v394 = vcombine.high %v326, %v326
        %v395 = vcombine.high %v327, %v327
        %v396 = vcombine.high %v328, %v328
        %v397 = vcombine.high %v329, %v329
        %v398 = vcombine.high %v330, %v330
        %v399 = vcombine.high %v331, %v331
        %v400 = vcombine.high %v332, %v332
        %v401 = vcombine.high %v333, %v333
        %v402 = vcombine.high %v334, %v334
        %v403 = vcombine.high %v335, %v335
        %v404 = vcombine.high %v336, %v336
        %v405 = vcombine.high %v337, %v337
        %v406 = vcombine.high %v338, %v338
        %v407 = vcombine.high %v339, %v339
        %v408 = vcombine.high %v340, %v340
        %v409 = vcombine.high %v341, %v341
        %v410 = vcombine.high %v342, %v342
        %v411 = vcombine.high %v343, %v343
        %v412 = vcombine.high %v344, %v344
        %v413 = vcombine.high %v345, %v345
        %v414 = vcombine.high %v346, %v346
        %v415 = vcombine.high %v347, %v347
        %v416 = vcombine.high %v348, %v348
        %vm449 = vcmask 1043456
        %v450 = vsel %vm449, %v317, 0.0
        %v451 = vrot.slane %v450, 4
        %v452 = vadd.f32 %v450, %v451
        %v453 = vrot.slane %v452, 2
        %v454 = vadd.f32 %v452, %v453
        %v455 = vrot.slane %v454, 1
        %v456 = vadd.f32 %v454, %v455
        %v457 = vsel %vm449, %v385, 0.0
        %v458 = vrot.slane %v457, 4
        %v459 = vadd.f32 %v457, %v458
        %v460 = vrot.slane %v459, 2
        %v461 = vadd.f32 %v459, %v460
        %v462 = vrot.slane %v461, 1
        %v463 = vadd.f32 %v461, %v462
        %v464 = vsel %vm449, %v318, 0.0
        %v465 = vrot.slane %v464, 4
        %v466 = vadd.f32 %v464, %v465
        %v467 = vrot.slane %v466, 2
        %v468 = vadd.f32 %v466, %v467
        %v469 = vrot.slane %v468, 1
        %v470 = vadd.f32 %v468, %v469
        %v471 = vsel %vm449, %v386, 0.0
        %v472 = vrot.slane %v471, 4
        %v473 = vadd.f32 %v471, %v472
        %v474 = vrot.slane %v473, 2
        %v475 = vadd.f32 %v473, %v474
        %v476 = vrot.slane %v475, 1
        %v477 = vadd.f32 %v475, %v476
        %v478 = vsel %vm449, %v319, 0.0
        %v479 = vrot.slane %v478, 4
        %v480 = vadd.f32 %v478, %v479
        %v481 = vrot.slane %v480, 2
        %v482 = vadd.f32 %v480, %v481
        %v483 = vrot.slane %v482, 1
        %v484 = vadd.f32 %v482, %v483
        %v485 = vsel %vm449, %v387, 0.0
        %v486 = vrot.slane %v485, 4
        %v487 = vadd.f32 %v485, %v486
        %v488 = vrot.slane %v487, 2
        %v489 = vadd.f32 %v487, %v488
        %v490 = vrot.slane %v489, 1
        %v491 = vadd.f32 %v489, %v490
        %v492 = vsel %vm449, %v320, 0.0
        %v493 = vrot.slane %v492, 4
        %v494 = vadd.f32 %v492, %v493
        %v495 = vrot.slane %v494, 2
        %v496 = vadd.f32 %v494, %v495
        %v497 = vrot.slane %v496, 1
        %v498 = vadd.f32 %v496, %v497
        %v499 = vsel %vm449, %v388, 0.0
        %v500 = vrot.slane %v499, 4
        %v501 = vadd.f32 %v499, %v500
        %v502 = vrot.slane %v501, 2
        %v503 = vadd.f32 %v501, %v502
        %v504 = vrot.slane %v503, 1
        %v505 = vadd.f32 %v503, %v504
        %v506 = vsel %vm449, %v321, 0.0
        %v507 = vrot.slane %v506, 4
        %v508 = vadd.f32 %v506, %v507
        %v509 = vrot.slane %v508, 2
        %v510 = vadd.f32 %v508, %v509
        %v511 = vrot.slane %v510, 1
        %v512 = vadd.f32 %v510, %v511
        %v513 = vsel %vm449, %v389, 0.0
        %v514 = vrot.slane %v513, 4
        %v515 = vadd.f32 %v513, %v514
        %v516 = vrot.slane %v515, 2
        %v517 = vadd.f32 %v515, %v516
        %v518 = vrot.slane %v517, 1
        %v519 = vadd.f32 %v517, %v518
        %v520 = vsel %vm449, %v322, 0.0
        %v521 = vrot.slane %v520, 4
        %v522 = vadd.f32 %v520, %v521
        %v523 = vrot.slane %v522, 2
        %v524 = vadd.f32 %v522, %v523
        %v525 = vrot.slane %v524, 1
        %v526 = vadd.f32 %v524, %v525
        %v527 = vsel %vm449, %v390, 0.0
        %v528 = vrot.slane %v527, 4
        %v529 = vadd.f32 %v527, %v528
        %v530 = vrot.slane %v529, 2
        %v531 = vadd.f32 %v529, %v530
        %v532 = vrot.slane %v531, 1
        %v533 = vadd.f32 %v531, %v532
        %v534 = vsel %vm449, %v323, 0.0
        %v535 = vrot.slane %v534, 4
        %v536 = vadd.f32 %v534, %v535
        %v537 = vrot.slane %v536, 2
        %v538 = vadd.f32 %v536, %v537
        %v539 = vrot.slane %v538, 1
        %v540 = vadd.f32 %v538, %v539
        %v541 = vsel %vm449, %v391, 0.0
        %v542 = vrot.slane %v541, 4
        %v543 = vadd.f32 %v541, %v542
        %v544 = vrot.slane %v543, 2
        %v545 = vadd.f32 %v543, %v544
        %v546 = vrot.slane %v545, 1
        %v547 = vadd.f32 %v545, %v546
        %v548 = vsel %vm449, %v324, 0.0
        %v549 = vrot.slane %v548, 4
        %v550 = vadd.f32 %v548, %v549
        %v551 = vrot.slane %v550, 2
        %v552 = vadd.f32 %v550, %v551
        %v553 = vrot.slane %v552, 1
        %v554 = vadd.f32 %v552, %v553
        %v555 = vsel %vm449, %v392, 0.0
        %v556 = vrot.slane %v555, 4
        %v557 = vadd.f32 %v555, %v556
        %v558 = vrot.slane %v557, 2
        %v559 = vadd.f32 %v557, %v558
        %v560 = vrot.slane %v559, 1
        %v561 = vadd.f32 %v559, %v560
        %v562 = vsel %vm449, %v325, 0.0
        %v563 = vrot.slane %v562, 4
        %v564 = vadd.f32 %v562, %v563
        %v565 = vrot.slane %v564, 2
        %v566 = vadd.f32 %v564, %v565
        %v567 = vrot.slane %v566, 1
        %v568 = vadd.f32 %v566, %v567
        %v569 = vsel %vm449, %v393, 0.0
        %v570 = vrot.slane %v569, 4
        %v571 = vadd.f32 %v569, %v570
        %v572 = vrot.slane %v571, 2
        %v573 = vadd.f32 %v571, %v572
        %v574 = vrot.slane %v573, 1
        %v575 = vadd.f32 %v573, %v574
        %v576 = vsel %vm449, %v326, 0.0
        %v577 = vrot.slane %v576, 4
        %v578 = vadd.f32 %v576, %v577
        %v579 = vrot.slane %v578, 2
        %v580 = vadd.f32 %v578, %v579
        %v581 = vrot.slane %v580, 1
        %v582 = vadd.f32 %v580, %v581
        %v583 = vsel %vm449, %v394, 0.0
        %v584 = vrot.slane %v583, 4
        %v585 = vadd.f32 %v583, %v584
        %v586 = vrot.slane %v585, 2
        %v587 = vadd.f32 %v585, %v586
        %v588 = vrot.slane %v587, 1
        %v589 = vadd.f32 %v587, %v588
        %v590 = vsel %vm449, %v327, 0.0
        %v591 = vrot.slane %v590, 4
        %v592 = vadd.f32 %v590, %v591
        %v593 = vrot.slane %v592, 2
        %v594 = vadd.f32 %v592, %v593
        %v595 = vrot.slane %v594, 1
        %v596 = vadd.f32 %v594, %v595
        %v597 = vsel %vm449, %v395, 0.0
        %v598 = vrot.slane %v597, 4
        %v599 = vadd.f32 %v597, %v598
        %v600 = vrot.slane %v599, 2
        %v601 = vadd.f32 %v599, %v600
        %v602 = vrot.slane %v601, 1
        %v603 = vadd.f32 %v601, %v602
        %v604 = vsel %vm449, %v328, 0.0
        %v605 = vrot.slane %v604, 4
        %v606 = vadd.f32 %v604, %v605
        %v607 = vrot.slane %v606, 2
        %v608 = vadd.f32 %v606, %v607
        %v609 = vrot.slane %v608, 1
        %v610 = vadd.f32 %v608, %v609
        %v611 = vsel %vm449, %v396, 0.0
        %v612 = vrot.slane %v611, 4
        %v613 = vadd.f32 %v611, %v612
        %v614 = vrot.slane %v613, 2
        %v615 = vadd.f32 %v613, %v614
        %v616 = vrot.slane %v615, 1
        %v617 = vadd.f32 %v615, %v616
        %v618 = vsel %vm449, %v329, 0.0
        %v619 = vrot.slane %v618, 4
        %v620 = vadd.f32 %v618, %v619
        %v621 = vrot.slane %v620, 2
        %v622 = vadd.f32 %v620, %v621
        %v623 = vrot.slane %v622, 1
        %v624 = vadd.f32 %v622, %v623
        %v625 = vsel %vm449, %v397, 0.0
        %v626 = vrot.slane %v625, 4
        %v627 = vadd.f32 %v625, %v626
        %v628 = vrot.slane %v627, 2
        %v629 = vadd.f32 %v627, %v628
        %v630 = vrot.slane %v629, 1
        %v631 = vadd.f32 %v629, %v630
        %v632 = vsel %vm449, %v330, 0.0
        %v633 = vrot.slane %v632, 4
        %v634 = vadd.f32 %v632, %v633
        %v635 = vrot.slane %v634, 2
        %v636 = vadd.f32 %v634, %v635
        %v637 = vrot.slane %v636, 1
        %v638 = vadd.f32 %v636, %v637
        %v639 = vsel %vm449, %v398, 0.0
        %v640 = vrot.slane %v639, 4
        %v641 = vadd.f32 %v639, %v640
        %v642 = vrot.slane %v641, 2
        %v643 = vadd.f32 %v641, %v642
        %v644 = vrot.slane %v643, 1
        %v645 = vadd.f32 %v643, %v644
        %v646 = vsel %vm449, %v331, 0.0
        %v647 = vrot.slane %v646, 4
        %v648 = vadd.f32 %v646, %v647
        %v649 = vrot.slane %v648, 2
        %v650 = vadd.f32 %v648, %v649
        %v651 = vrot.slane %v650, 1
        %v652 = vadd.f32 %v650, %v651
        %v653 = vsel %vm449, %v399, 0.0
        %v654 = vrot.slane %v653, 4
        %v655 = vadd.f32 %v653, %v654
        %v656 = vrot.slane %v655, 2
        %v657 = vadd.f32 %v655, %v656
        %v658 = vrot.slane %v657, 1
        %v659 = vadd.f32 %v657, %v658
        %v660 = vsel %vm449, %v332, 0.0
        %v661 = vrot.slane %v660, 4
        %v662 = vadd.f32 %v660, %v661
        %v663 = vrot.slane %v662, 2
        %v664 = vadd.f32 %v662, %v663
        %v665 = vrot.slane %v664, 1
        %v666 = vadd.f32 %v664, %v665
        %v667 = vsel %vm449, %v400, 0.0
        %v668 = vrot.slane %v667, 4
        %v669 = vadd.f32 %v667, %v668
        %v670 = vrot.slane %v669, 2
        %v671 = vadd.f32 %v669, %v670
        %v672 = vrot.slane %v671, 1
        %v673 = vadd.f32 %v671, %v672
        %v674 = vsel %vm449, %v333, 0.0
        %v675 = vrot.slane %v674, 4
        %v676 = vadd.f32 %v674, %v675
        %v677 = vrot.slane %v676, 2
        %v678 = vadd.f32 %v676, %v677
        %v679 = vrot.slane %v678, 1
        %v680 = vadd.f32 %v678, %v679
        %v681 = vsel %vm449, %v401, 0.0
        %v682 = vrot.slane %v681, 4
        %v683 = vadd.f32 %v681, %v682
        %v684 = vrot.slane %v683, 2
        %v685 = vadd.f32 %v683, %v684
        %v686 = vrot.slane %v685, 1
        %v687 = vadd.f32 %v685, %v686
        %v688 = vsel %vm449, %v334, 0.0
        %v689 = vrot.slane %v688, 4
        %v690 = vadd.f32 %v688, %v689
        %v691 = vrot.slane %v690, 2
        %v692 = vadd.f32 %v690, %v691
        %v693 = vrot.slane %v692, 1
        %v694 = vadd.f32 %v692, %v693
        %v695 = vsel %vm449, %v402, 0.0
        %v696 = vrot.slane %v695, 4
        %v697 = vadd.f32 %v695, %v696
        %v698 = vrot.slane %v697, 2
        %v699 = vadd.f32 %v697, %v698
        %v700 = vrot.slane %v699, 1
        %v701 = vadd.f32 %v699, %v700
        %v702 = vsel %vm449, %v335, 0.0
        %v703 = vrot.slane %v702, 4
        %v704 = vadd.f32 %v702, %v703
        %v705 = vrot.slane %v704, 2
        %v706 = vadd.f32 %v704, %v705
        %v707 = vrot.slane %v706, 1
        %v708 = vadd.f32 %v706, %v707
        %v709 = vsel %vm449, %v403, 0.0
        %v710 = vrot.slane %v709, 4
        %v711 = vadd.f32 %v709, %v710
        %v712 = vrot.slane %v711, 2
        %v713 = vadd.f32 %v711, %v712
        %v714 = vrot.slane %v713, 1
        %v715 = vadd.f32 %v713, %v714
        %v716 = vsel %vm449, %v336, 0.0
        %v717 = vrot.slane %v716, 4
        %v718 = vadd.f32 %v716, %v717
        %v719 = vrot.slane %v718, 2
        %v720 = vadd.f32 %v718, %v719
        %v721 = vrot.slane %v720, 1
        %v722 = vadd.f32 %v720, %v721
        %v723 = vsel %vm449, %v404, 0.0
        %v724 = vrot.slane %v723, 4
        %v725 = vadd.f32 %v723, %v724
        %v726 = vrot.slane %v725, 2
        %v727 = vadd.f32 %v725, %v726
        %v728 = vrot.slane %v727, 1
        %v729 = vadd.f32 %v727, %v728
        %v730 = vsel %vm449, %v337, 0.0
        %v731 = vrot.slane %v730, 4
        %v732 = vadd.f32 %v730, %v731
        %v733 = vrot.slane %v732, 2
        %v734 = vadd.f32 %v732, %v733
        %v735 = vrot.slane %v734, 1
        %v736 = vadd.f32 %v734, %v735
        %v737 = vsel %vm449, %v405, 0.0
        %v738 = vrot.slane %v737, 4
        %v739 = vadd.f32 %v737, %v738
        %v740 = vrot.slane %v739, 2
        %v741 = vadd.f32 %v739, %v740
        %v742 = vrot.slane %v741, 1
        %v743 = vadd.f32 %v741, %v742
        %v744 = vsel %vm449, %v338, 0.0
        %v745 = vrot.slane %v744, 4
        %v746 = vadd.f32 %v744, %v745
        %v747 = vrot.slane %v746, 2
        %v748 = vadd.f32 %v746, %v747
        %v749 = vrot.slane %v748, 1
        %v750 = vadd.f32 %v748, %v749
        %v751 = vsel %vm449, %v406, 0.0
        %v752 = vrot.slane %v751, 4
        %v753 = vadd.f32 %v751, %v752
        %v754 = vrot.slane %v753, 2
        %v755 = vadd.f32 %v753, %v754
        %v756 = vrot.slane %v755, 1
        %v757 = vadd.f32 %v755, %v756
        %v758 = vsel %vm449, %v339, 0.0
        %v759 = vrot.slane %v758, 4
        %v760 = vadd.f32 %v758, %v759
        %v761 = vrot.slane %v760, 2
        %v762 = vadd.f32 %v760, %v761
        %v763 = vrot.slane %v762, 1
        %v764 = vadd.f32 %v762, %v763
        %v765 = vsel %vm449, %v407, 0.0
        %v766 = vrot.slane %v765, 4
        %v767 = vadd.f32 %v765, %v766
        %v768 = vrot.slane %v767, 2
        %v769 = vadd.f32 %v767, %v768
        %v770 = vrot.slane %v769, 1
        %v771 = vadd.f32 %v769, %v770
        %v772 = vsel %vm449, %v340, 0.0
        %v773 = vrot.slane %v772, 4
        %v774 = vadd.f32 %v772, %v773
        %v775 = vrot.slane %v774, 2
        %v776 = vadd.f32 %v774, %v775
        %v777 = vrot.slane %v776, 1
        %v778 = vadd.f32 %v776, %v777
        %v779 = vsel %vm449, %v408, 0.0
        %v780 = vrot.slane %v779, 4
        %v781 = vadd.f32 %v779, %v780
        %v782 = vrot.slane %v781, 2
        %v783 = vadd.f32 %v781, %v782
        %v784 = vrot.slane %v783, 1
        %v785 = vadd.f32 %v783, %v784
        %v786 = vsel %vm449, %v341, 0.0
        %v787 = vrot.slane %v786, 4
        %v788 = vadd.f32 %v786, %v787
        %v789 = vrot.slane %v788, 2
        %v790 = vadd.f32 %v788, %v789
        %v791 = vrot.slane %v790, 1
        %v792 = vadd.f32 %v790, %v791
        %v793 = vsel %vm449, %v409, 0.0
        %v794 = vrot.slane %v793, 4
        %v795 = vadd.f32 %v793, %v794
        %v796 = vrot.slane %v795, 2
        %v797 = vadd.f32 %v795, %v796
        %v798 = vrot.slane %v797, 1
        %v799 = vadd.f32 %v797, %v798
        %v800 = vsel %vm449, %v342, 0.0
        %v801 = vrot.slane %v800, 4
        %v802 = vadd.f32 %v800, %v801
        %v803 = vrot.slane %v802, 2
        %v804 = vadd.f32 %v802, %v803
        %v805 = vrot.slane %v804, 1
        %v806 = vadd.f32 %v804, %v805
        %v807 = vsel %vm449, %v410, 0.0
        %v808 = vrot.slane %v807, 4
        %v809 = vadd.f32 %v807, %v808
        %v810 = vrot.slane %v809, 2
        %v811 = vadd.f32 %v809, %v810
        %v812 = vrot.slane %v811, 1
        %v813 = vadd.f32 %v811, %v812
        %v814 = vsel %vm449, %v343, 0.0
        %v815 = vrot.slane %v814, 4
        %v816 = vadd.f32 %v814, %v815
        %v817 = vrot.slane %v816, 2
        %v818 = vadd.f32 %v816, %v817
        %v819 = vrot.slane %v818, 1
        %v820 = vadd.f32 %v818, %v819
        %v821 = vsel %vm449, %v411, 0.0
        %v822 = vrot.slane %v821, 4
        %v823 = vadd.f32 %v821, %v822
        %v824 = vrot.slane %v823, 2
        %v825 = vadd.f32 %v823, %v824
        %v826 = vrot.slane %v825, 1
        %v827 = vadd.f32 %v825, %v826
        %v828 = vsel %vm449, %v344, 0.0
        %v829 = vrot.slane %v828, 4
        %v830 = vadd.f32 %v828, %v829
        %v831 = vrot.slane %v830, 2
        %v832 = vadd.f32 %v830, %v831
        %v833 = vrot.slane %v832, 1
        %v834 = vadd.f32 %v832, %v833
        %v835 = vsel %vm449, %v412, 0.0
        %v836 = vrot.slane %v835, 4
        %v837 = vadd.f32 %v835, %v836
        %v838 = vrot.slane %v837, 2
        %v839 = vadd.f32 %v837, %v838
        %v840 = vrot.slane %v839, 1
        %v841 = vadd.f32 %v839, %v840
        %v842 = vsel %vm449, %v345, 0.0
        %v843 = vrot.slane %v842, 4
        %v844 = vadd.f32 %v842, %v843
        %v845 = vrot.slane %v844, 2
        %v846 = vadd.f32 %v844, %v845
        %v847 = vrot.slane %v846, 1
        %v848 = vadd.f32 %v846, %v847
        %v849 = vsel %vm449, %v413, 0.0
        %v850 = vrot.slane %v849, 4
        %v851 = vadd.f32 %v849, %v850
        %v852 = vrot.slane %v851, 2
        %v853 = vadd.f32 %v851, %v852
        %v854 = vrot.slane %v853, 1
        %v855 = vadd.f32 %v853, %v854
        %v856 = vsel %vm449, %v346, 0.0
        %v857 = vrot.slane %v856, 4
        %v858 = vadd.f32 %v856, %v857
        %v859 = vrot.slane %v858, 2
        %v860 = vadd.f32 %v858, %v859
        %v861 = vrot.slane %v860, 1
        %v862 = vadd.f32 %v860, %v861
        %v863 = vsel %vm449, %v414, 0.0
        %v864 = vrot.slane %v863, 4
        %v865 = vadd.f32 %v863, %v864
        %v866 = vrot.slane %v865, 2
        %v867 = vadd.f32 %v865, %v866
        %v868 = vrot.slane %v867, 1
        %v869 = vadd.f32 %v867, %v868
        %v870 = vsel %vm449, %v347, 0.0
        %v871 = vrot.slane %v870, 4
        %v872 = vadd.f32 %v870, %v871
        %v873 = vrot.slane %v872, 2
        %v874 = vadd.f32 %v872, %v873
        %v875 = vrot.slane %v874, 1
        %v876 = vadd.f32 %v874, %v875
        %v877 = vsel %vm449, %v415, 0.0
        %v878 = vrot.slane %v877, 4
        %v879 = vadd.f32 %v877, %v878
        %v880 = vrot.slane %v879, 2
        %v881 = vadd.f32 %v879, %v880
        %v882 = vrot.slane %v881, 1
        %v883 = vadd.f32 %v881, %v882
        %v884 = vsel %vm449, %v348, 0.0
        %v885 = vrot.slane %v884, 4
        %v886 = vadd.f32 %v884, %v885
        %v887 = vrot.slane %v886, 2
        %v888 = vadd.f32 %v886, %v887
        %v889 = vrot.slane %v888, 1
        %v890 = vadd.f32 %v888, %v889
        %v891 = vsel %vm449, %v416, 0.0
        %v892 = vrot.slane %v891, 4
        %v893 = vadd.f32 %v891, %v892
        %v894 = vrot.slane %v893, 2
        %v895 = vadd.f32 %v893, %v894
        %v896 = vrot.slane %v895, 1
        %v897 = vadd.f32 %v895, %v896
        %v898 = vmul.f32 %v456, 0.5
        %v899 = vmul.f32 %v463, 0.5
        %v900 = vmul.f32 %v470, 0.5
        %v901 = vmul.f32 %v477, 0.5
        %v902 = vmul.f32 %v484, 0.5
        %v903 = vmul.f32 %v491, 0.5
        %v904 = vmul.f32 %v498, 0.5
        %v905 = vmul.f32 %v505, 0.5
        %v906 = vmul.f32 %v512, 0.5
        %v907 = vmul.f32 %v519, 0.5
        %v908 = vmul.f32 %v526, 0.5
        %v909 = vmul.f32 %v533, 0.5
        %v910 = vmul.f32 %v540, 0.5
        %v911 = vmul.f32 %v547, 0.5
        %v912 = vmul.f32 %v554, 0.5
        %v913 = vmul.f32 %v561, 0.5
        %v914 = vmul.f32 %v568, 0.5
        %v915 = vmul.f32 %v575, 0.5
        %v916 = vmul.f32 %v582, 0.5
        %v917 = vmul.f32 %v589, 0.5
        %v918 = vmul.f32 %v596, 0.5
        %v919 = vmul.f32 %v603, 0.5
        %v920 = vmul.f32 %v610, 0.5
        %v921 = vmul.f32 %v617, 0.5
        %v922 = vmul.f32 %v624, 0.5
        %v923 = vmul.f32 %v631, 0.5
        %v924 = vmul.f32 %v638, 0.5
        %v925 = vmul.f32 %v645, 0.5
        %v926 = vmul.f32 %v652, 0.5
        %v927 = vmul.f32 %v659, 0.5
        %v928 = vmul.f32 %v666, 0.5
        %v929 = vmul.f32 %v673, 0.5
        %v930 = vmul.f32 %v680, 0.5
        %v931 = vmul.f32 %v687, 0.5
        %v932 = vmul.f32 %v694, 0.5
        %v933 = vmul.f32 %v701, 0.5
        %v934 = vmul.f32 %v708, 0.5
        %v935 = vmul.f32 %v715, 0.5
        %v936 = vmul.f32 %v722, 0.5
        %v937 = vmul.f32 %v729, 0.5
        %v938 = vmul.f32 %v736, 0.5
        %v939 = vmul.f32 %v743, 0.5
        %v940 = vmul.f32 %v750, 0.5
        %v941 = vmul.f32 %v757, 0.5
        %v942 = vmul.f32 %v764, 0.5
        %v943 = vmul.f32 %v771, 0.5
        %v944 = vmul.f32 %v778, 0.5
        %v945 = vmul.f32 %v785, 0.5
        %v946 = vmul.f32 %v792, 0.5
        %v947 = vmul.f32 %v799, 0.5
        %v948 = vmul.f32 %v806, 0.5
        %v949 = vmul.f32 %v813, 0.5
        %v950 = vmul.f32 %v820, 0.5
        %v951 = vmul.f32 %v827, 0.5
        %v952 = vmul.f32 %v834, 0.5
        %v953 = vmul.f32 %v841, 0.5
        %v954 = vmul.f32 %v848, 0.5
        %v955 = vmul.f32 %v855, 0.5
        %v956 = vmul.f32 %v862, 0.5
        %v957 = vmul.f32 %v869, 0.5
        %v958 = vmul.f32 %v876, 0.5
        %v959 = vmul.f32 %v883, 0.5
        %v960 = vmul.f32 %v890, 0.5
        %v961 = vmul.f32 %v897, 0.5
        %963 = vset.pattern.permute.xlu0 0
        %964 = vperm.xlu0 %963, %v349
        %v965 = vpop.permute.xlu0 %964
        %967 = vset.pattern.permute.xlu0 0
        %968 = vperm.xlu0 %967, %v350
        %v969 = vpop.permute.xlu0 %968
        %971 = vset.pattern.permute.xlu0 0
        %972 = vperm.xlu0 %971, %v351
        %v973 = vpop.permute.xlu0 %972
        %975 = vset.pattern.permute.xlu0 0
        %976 = vperm.xlu0 %975, %v352
        %v977 = vpop.permute.xlu0 %976
        %v978 = vrot.slane %v965, 1
        %v979 = vrot.slane %v965, 2
        %v980 = vrot.slane %v965, 3
        %v981 = vrot.slane %v965, 4
        %v982 = vrot.slane %v965, 5
        %v983 = vrot.slane %v965, 6
        %v984 = vrot.slane %v965, 7
        %v985 = vrot.slane %v969, 1
        %v986 = vrot.slane %v969, 2
        %v987 = vrot.slane %v969, 3
        %v988 = vrot.slane %v969, 4
        %v989 = vrot.slane %v969, 5
        %v990 = vrot.slane %v969, 6
        %v991 = vrot.slane %v969, 7
        %v992 = vrot.slane %v973, 1
        %v993 = vrot.slane %v973, 2
        %v994 = vrot.slane %v973, 3
        %v995 = vrot.slane %v973, 4
        %v996 = vrot.slane %v973, 5
        %v997 = vrot.slane %v973, 6
        %v998 = vrot.slane %v973, 7
        %v999 = vrot.slane %v977, 1
        %v1000 = vrot.slane %v977, 2
        %v1001 = vrot.slane %v977, 3
        %v1002 = vrot.slane %v977, 4
        %v1003 = vrot.slane %v977, 5
        %v1004 = vrot.slane %v977, 6
        %v1005 = vrot.slane %v977, 7
        %v1038 = vadd.f32 %v898, %v965
        %v1039 = vadd.f32 %v899, %v965
        %v1040 = vadd.f32 %v900, %v978
        %v1041 = vadd.f32 %v901, %v978
        %v1042 = vadd.f32 %v902, %v979
        %v1043 = vadd.f32 %v903, %v979
        %v1044 = vadd.f32 %v904, %v980
        %v1045 = vadd.f32 %v905, %v980
        %v1046 = vadd.f32 %v906, %v981
        %v1047 = vadd.f32 %v907, %v981
        %v1048 = vadd.f32 %v908, %v982
        %v1049 = vadd.f32 %v909, %v982
        %v1050 = vadd.f32 %v910, %v983
        %v1051 = vadd.f32 %v911, %v983
        %v1052 = vadd.f32 %v912, %v984
        %v1053 = vadd.f32 %v913, %v984
        %v1054 = vadd.f32 %v914, %v969
        %v1055 = vadd.f32 %v915, %v969
        %v1056 = vadd.f32 %v916, %v985
        %v1057 = vadd.f32 %v917, %v985
        %v1058 = vadd.f32 %v918, %v986
        %v1059 = vadd.f32 %v919, %v986
        %v1060 = vadd.f32 %v920, %v987
        %v1061 = vadd.f32 %v921, %v987
        %v1062 = vadd.f32 %v922, %v988
        %v1063 = vadd.f32 %v923, %v988
        %v1064 = vadd.f32 %v924, %v989
        %v1065 = vadd.f32 %v925, %v989
        %v1066 = vadd.f32 %v926, %v990
        %v1067 = vadd.f32 %v927, %v990
        %v1068 = vadd.f32 %v928, %v991
        %v1069 = vadd.f32 %v929, %v991
        %v1070 = vadd.f32 %v930, %v973
        %v1071 = vadd.f32 %v931, %v973
        %v1072 = vadd.f32 %v932, %v992
        %v1073 = vadd.f32 %v933, %v992
        %v1074 = vadd.f32 %v934, %v993
        %v1075 = vadd.f32 %v935, %v993
        %v1076 = vadd.f32 %v936, %v994
        %v1077 = vadd.f32 %v937, %v994
        %v1078 = vadd.f32 %v938, %v995
        %v1079 = vadd.f32 %v939, %v995
        %v1080 = vadd.f32 %v940, %v996
        %v1081 = vadd.f32 %v941, %v996
        %v1082 = vadd.f32 %v942, %v997
        %v1083 = vadd.f32 %v943, %v997
        %v1084 = vadd.f32 %v944, %v998
        %v1085 = vadd.f32 %v945, %v998
        %v1086 = vadd.f32 %v946, %v977
        %v1087 = vadd.f32 %v947, %v977
        %v1088 = vadd.f32 %v948, %v999
        %v1089 = vadd.f32 %v949, %v999
        %v1090 = vadd.f32 %v950, %v1000
        %v1091 = vadd.f32 %v951, %v1000
        %v1092 = vadd.f32 %v952, %v1001
        %v1093 = vadd.f32 %v953, %v1001
        %v1094 = vadd.f32 %v954, %v1002
        %v1095 = vadd.f32 %v955, %v1002
        %v1096 = vadd.f32 %v956, %v1003
        %v1097 = vadd.f32 %v957, %v1003
        %v1098 = vadd.f32 %v958, %v1004
        %v1099 = vadd.f32 %v959, %v1004
        %v1100 = vadd.f32 %v960, %v1005
        %v1101 = vadd.f32 %v961, %v1005
        %v1102 = vmul.f32 %v1038, %v1038
        %v1103 = vmul.f32 %v1039, %v1039
        %v1104 = vmul.f32 %v1040, %v1040
        %v1105 = vmul.f32 %v1041, %v1041
        %v1106 = vmul.f32 %v1042, %v1042
        %v1107 = vmul.f32 %v1043, %v1043
        %v1108 = vmul.f32 %v1044, %v1044
        %v1109 = vmul.f32 %v1045, %v1045
        %v1110 = vmul.f32 %v1046, %v1046
        %v1111 = vmul.f32 %v1047, %v1047
        %v1112 = vmul.f32 %v1048, %v1048
        %v1113 = vmul.f32 %v1049, %v1049
        %v1114 = vmul.f32 %v1050, %v1050
        %v1115 = vmul.f32 %v1051, %v1051
        %v1116 = vmul.f32 %v1052, %v1052
        %v1117 = vmul.f32 %v1053, %v1053
        %v1118 = vmul.f32 %v1054, %v1054
        %v1119 = vmul.f32 %v1055, %v1055
        %v1120 = vmul.f32 %v1056, %v1056
        %v1121 = vmul.f32 %v1057, %v1057
        %v1122 = vmul.f32 %v1058, %v1058
        %v1123 = vmul.f32 %v1059, %v1059
        %v1124 = vmul.f32 %v1060, %v1060
        %v1125 = vmul.f32 %v1061, %v1061
        %v1126 = vmul.f32 %v1062, %v1062
        %v1127 = vmul.f32 %v1063, %v1063
        %v1128 = vmul.f32 %v1064, %v1064
        %v1129 = vmul.f32 %v1065, %v1065
        %v1130 = vmul.f32 %v1066, %v1066
        %v1131 = vmul.f32 %v1067, %v1067
        %v1132 = vmul.f32 %v1068, %v1068
        %v1133 = vmul.f32 %v1069, %v1069
        %v1134 = vmul.f32 %v1070, %v1070
        %v1135 = vmul.f32 %v1071, %v1071
        %v1136 = vmul.f32 %v1072, %v1072
        %v1137 = vmul.f32 %v1073, %v1073
        %v1138 = vmul.f32 %v1074, %v1074
        %v1139 = vmul.f32 %v1075, %v1075
        %v1140 = vmul.f32 %v1076, %v1076
        %v1141 = vmul.f32 %v1077, %v1077
        %v1142 = vmul.f32 %v1078, %v1078
        %v1143 = vmul.f32 %v1079, %v1079
        %v1144 = vmul.f32 %v1080, %v1080
        %v1145 = vmul.f32 %v1081, %v1081
        %v1146 = vmul.f32 %v1082, %v1082
        %v1147 = vmul.f32 %v1083, %v1083
        %v1148 = vmul.f32 %v1084, %v1084
        %v1149 = vmul.f32 %v1085, %v1085
        %v1150 = vmul.f32 %v1086, %v1086
        %v1151 = vmul.f32 %v1087, %v1087
        %v1152 = vmul.f32 %v1088, %v1088
        %v1153 = vmul.f32 %v1089, %v1089
        %v1154 = vmul.f32 %v1090, %v1090
        %v1155 = vmul.f32 %v1091, %v1091
        %v1156 = vmul.f32 %v1092, %v1092
        %v1157 = vmul.f32 %v1093, %v1093
        %v1158 = vmul.f32 %v1094, %v1094
        %v1159 = vmul.f32 %v1095, %v1095
        %v1160 = vmul.f32 %v1096, %v1096
        %v1161 = vmul.f32 %v1097, %v1097
        %v1162 = vmul.f32 %v1098, %v1098
        %v1163 = vmul.f32 %v1099, %v1099
        %v1164 = vmul.f32 %v1100, %v1100
        %v1165 = vmul.f32 %v1101, %v1101
        %v1230 = vrot.slane %v1104, 7
        %vm1231 = vcmask 1041409
        %v1232 = vsel %vm1231, %v1230, %v1102
        %v1233 = vrot.slane %v1106, 6
        %vm1234 = vcmask 1042434
        %v1235 = vsel %vm1234, %v1233, %v1232
        %v1236 = vrot.slane %v1108, 5
        %vm1237 = vcmask 1043459
        %v1238 = vsel %vm1237, %v1236, %v1235
        %v1239 = vrot.slane %v1110, 4
        %vm1240 = vcmask 1044484
        %v1241 = vsel %vm1240, %v1239, %v1238
        %v1242 = vrot.slane %v1112, 3
        %vm1243 = vcmask 1045509
        %v1244 = vsel %vm1243, %v1242, %v1241
        %v1245 = vrot.slane %v1114, 2
        %vm1246 = vcmask 1046534
        %v1247 = vsel %vm1246, %v1245, %v1244
        %v1248 = vrot.slane %v1116, 1
        %vm1249 = vcmask 1047559
        %v1250 = vsel %vm1249, %v1248, %v1247
        %v1251 = vrot.slane %v1105, 7
        %v1252 = vsel %vm1231, %v1251, %v1103
        %v1253 = vrot.slane %v1107, 6
        %v1254 = vsel %vm1234, %v1253, %v1252
        %v1255 = vrot.slane %v1109, 5
        %v1256 = vsel %vm1237, %v1255, %v1254
        %v1257 = vrot.slane %v1111, 4
        %v1258 = vsel %vm1240, %v1257, %v1256
        %v1259 = vrot.slane %v1113, 3
        %v1260 = vsel %vm1243, %v1259, %v1258
        %v1261 = vrot.slane %v1115, 2
        %v1262 = vsel %vm1246, %v1261, %v1260
        %v1263 = vrot.slane %v1117, 1
        %v1264 = vsel %vm1249, %v1263, %v1262
        %v1265 = vrot.slane %v1120, 7
        %v1266 = vsel %vm1231, %v1265, %v1118
        %v1267 = vrot.slane %v1122, 6
        %v1268 = vsel %vm1234, %v1267, %v1266
        %v1269 = vrot.slane %v1124, 5
        %v1270 = vsel %vm1237, %v1269, %v1268
        %v1271 = vrot.slane %v1126, 4
        %v1272 = vsel %vm1240, %v1271, %v1270
        %v1273 = vrot.slane %v1128, 3
        %v1274 = vsel %vm1243, %v1273, %v1272
        %v1275 = vrot.slane %v1130, 2
        %v1276 = vsel %vm1246, %v1275, %v1274
        %v1277 = vrot.slane %v1132, 1
        %v1278 = vsel %vm1249, %v1277, %v1276
        %v1279 = vrot.slane %v1121, 7
        %v1280 = vsel %vm1231, %v1279, %v1119
        %v1281 = vrot.slane %v1123, 6
        %v1282 = vsel %vm1234, %v1281, %v1280
        %v1283 = vrot.slane %v1125, 5
        %v1284 = vsel %vm1237, %v1283, %v1282
        %v1285 = vrot.slane %v1127, 4
        %v1286 = vsel %vm1240, %v1285, %v1284
        %v1287 = vrot.slane %v1129, 3
        %v1288 = vsel %vm1243, %v1287, %v1286
        %v1289 = vrot.slane %v1131, 2
        %v1290 = vsel %vm1246, %v1289, %v1288
        %v1291 = vrot.slane %v1133, 1
        %v1292 = vsel %vm1249, %v1291, %v1290
        %v1293 = vrot.slane %v1136, 7
        %v1294 = vsel %vm1231, %v1293, %v1134
        %v1295 = vrot.slane %v1138, 6
        %v1296 = vsel %vm1234, %v1295, %v1294
        %v1297 = vrot.slane %v1140, 5
        %v1298 = vsel %vm1237, %v1297, %v1296
        %v1299 = vrot.slane %v1142, 4
        %v1300 = vsel %vm1240, %v1299, %v1298
        %v1301 = vrot.slane %v1144, 3
        %v1302 = vsel %vm1243, %v1301, %v1300
        %v1303 = vrot.slane %v1146, 2
        %v1304 = vsel %vm1246, %v1303, %v1302
        %v1305 = vrot.slane %v1148, 1
        %v1306 = vsel %vm1249, %v1305, %v1304
        %v1307 = vrot.slane %v1137, 7
        %v1308 = vsel %vm1231, %v1307, %v1135
        %v1309 = vrot.slane %v1139, 6
        %v1310 = vsel %vm1234, %v1309, %v1308
        %v1311 = vrot.slane %v1141, 5
        %v1312 = vsel %vm1237, %v1311, %v1310
        %v1313 = vrot.slane %v1143, 4
        %v1314 = vsel %vm1240, %v1313, %v1312
        %v1315 = vrot.slane %v1145, 3
        %v1316 = vsel %vm1243, %v1315, %v1314
        %v1317 = vrot.slane %v1147, 2
        %v1318 = vsel %vm1246, %v1317, %v1316
        %v1319 = vrot.slane %v1149, 1
        %v1320 = vsel %vm1249, %v1319, %v1318
        %v1321 = vrot.slane %v1152, 7
        %v1322 = vsel %vm1231, %v1321, %v1150
        %v1323 = vrot.slane %v1154, 6
        %v1324 = vsel %vm1234, %v1323, %v1322
        %v1325 = vrot.slane %v1156, 5
        %v1326 = vsel %vm1237, %v1325, %v1324
        %v1327 = vrot.slane %v1158, 4
        %v1328 = vsel %vm1240, %v1327, %v1326
        %v1329 = vrot.slane %v1160, 3
        %v1330 = vsel %vm1243, %v1329, %v1328
        %v1331 = vrot.slane %v1162, 2
        %v1332 = vsel %vm1246, %v1331, %v1330
        %v1333 = vrot.slane %v1164, 1
        %v1334 = vsel %vm1249, %v1333, %v1332
        %v1335 = vrot.slane %v1153, 7
        %v1336 = vsel %vm1231, %v1335, %v1151
        %v1337 = vrot.slane %v1155, 6
        %v1338 = vsel %vm1234, %v1337, %v1336
        %v1339 = vrot.slane %v1157, 5
        %v1340 = vsel %vm1237, %v1339, %v1338
        %v1341 = vrot.slane %v1159, 4
        %v1342 = vsel %vm1240, %v1341, %v1340
        %v1343 = vrot.slane %v1161, 3
        %v1344 = vsel %vm1243, %v1343, %v1342
        %v1345 = vrot.slane %v1163, 2
        %v1346 = vsel %vm1246, %v1345, %v1344
        %v1347 = vrot.slane %v1165, 1
        %v1348 = vsel %vm1249, %v1347, %v1346
        %v1357 = vrot.slane %v1250, 4
        %v1358 = vadd.f32 %v1250, %v1357
        %v1359 = vrot.slane %v1358, 2
        %v1360 = vadd.f32 %v1358, %v1359
        %v1361 = vrot.slane %v1360, 1
        %v1362 = vadd.f32 %v1360, %v1361
        %v1363 = vrot.slane %v1264, 4
        %v1364 = vadd.f32 %v1264, %v1363
        %v1365 = vrot.slane %v1364, 2
        %v1366 = vadd.f32 %v1364, %v1365
        %v1367 = vrot.slane %v1366, 1
        %v1368 = vadd.f32 %v1366, %v1367
        %v1369 = vrot.slane %v1278, 4
        %v1370 = vadd.f32 %v1278, %v1369
        %v1371 = vrot.slane %v1370, 2
        %v1372 = vadd.f32 %v1370, %v1371
        %v1373 = vrot.slane %v1372, 1
        %v1374 = vadd.f32 %v1372, %v1373
        %v1375 = vrot.slane %v1292, 4
        %v1376 = vadd.f32 %v1292, %v1375
        %v1377 = vrot.slane %v1376, 2
        %v1378 = vadd.f32 %v1376, %v1377
        %v1379 = vrot.slane %v1378, 1
        %v1380 = vadd.f32 %v1378, %v1379
        %v1381 = vrot.slane %v1306, 4
        %v1382 = vadd.f32 %v1306, %v1381
        %v1383 = vrot.slane %v1382, 2
        %v1384 = vadd.f32 %v1382, %v1383
        %v1385 = vrot.slane %v1384, 1
        %v1386 = vadd.f32 %v1384, %v1385
        %v1387 = vrot.slane %v1320, 4
        %v1388 = vadd.f32 %v1320, %v1387
        %v1389 = vrot.slane %v1388, 2
        %v1390 = vadd.f32 %v1388, %v1389
        %v1391 = vrot.slane %v1390, 1
        %v1392 = vadd.f32 %v1390, %v1391
        %v1393 = vrot.slane %v1334, 4
        %v1394 = vadd.f32 %v1334, %v1393
        %v1395 = vrot.slane %v1394, 2
        %v1396 = vadd.f32 %v1394, %v1395
        %v1397 = vrot.slane %v1396, 1
        %v1398 = vadd.f32 %v1396, %v1397
        %v1399 = vrot.slane %v1348, 4
        %v1400 = vadd.f32 %v1348, %v1399
        %v1401 = vrot.slane %v1400, 2
        %v1402 = vadd.f32 %v1400, %v1401
        %v1403 = vrot.slane %v1402, 1
        %v1404 = vadd.f32 %v1402, %v1403
        %v1405 = vadd.f32 %v1362, 1.0
        %v1406 = vadd.f32 %v1368, 1.0
        %v1407 = vadd.f32 %v1374, 1.0
        %v1408 = vadd.f32 %v1380, 1.0
        %v1409 = vadd.f32 %v1386, 1.0
        %v1410 = vadd.f32 %v1392, 1.0
        %v1411 = vadd.f32 %v1398, 1.0
        %v1412 = vadd.f32 %v1404, 1.0
        %v1413 = vrsqrt.pop %v1362
        %v1414 = vmul.f32 %v1362, %v1413
        %vm1415 = vcmp.eq.f32.partialorder %v1362, inf
        %v1416 = vsel %vm1415, %v1362, %v1414
        %vm1417 = vcmp.eq.f32.partialorder %v1362, 0.0
        %v1418 = vand.u32 %v1362, 2147483648
        %v1419 = vsel %vm1417, %v1418, %v1416
        %v1420 = vrsqrt.pop %v1368
        %v1421 = vmul.f32 %v1368, %v1420
        %vm1422 = vcmp.eq.f32.partialorder %v1368, inf
        %v1423 = vsel %vm1422, %v1368, %v1421
        %vm1424 = vcmp.eq.f32.partialorder %v1368, 0.0
        %v1425 = vand.u32 %v1368, 2147483648
        %v1426 = vsel %vm1424, %v1425, %v1423
        %v1427 = vrsqrt.pop %v1374
        %v1428 = vmul.f32 %v1374, %v1427
        %vm1429 = vcmp.eq.f32.partialorder %v1374, inf
        %v1430 = vsel %vm1429, %v1374, %v1428
        %vm1431 = vcmp.eq.f32.partialorder %v1374, 0.0
        %v1432 = vand.u32 %v1374, 2147483648
        %v1433 = vsel %vm1431, %v1432, %v1430
        %v1434 = vrsqrt.pop %v1380
        %v1435 = vmul.f32 %v1380, %v1434
        %vm1436 = vcmp.eq.f32.partialorder %v1380, inf
        %v1437 = vsel %vm1436, %v1380, %v1435
        %vm1438 = vcmp.eq.f32.partialorder %v1380, 0.0
        %v1439 = vand.u32 %v1380, 2147483648
        %v1440 = vsel %vm1438, %v1439, %v1437
        %v1441 = vrsqrt.pop %v1386
        %v1442 = vmul.f32 %v1386, %v1441
        %vm1443 = vcmp.eq.f32.partialorder %v1386, inf
        %v1444 = vsel %vm1443, %v1386, %v1442
        %vm1445 = vcmp.eq.f32.partialorder %v1386, 0.0
        %v1446 = vand.u32 %v1386, 2147483648
        %v1447 = vsel %vm1445, %v1446, %v1444
        %v1448 = vrsqrt.pop %v1392
        %v1449 = vmul.f32 %v1392, %v1448
        %vm1450 = vcmp.eq.f32.partialorder %v1392, inf
        %v1451 = vsel %vm1450, %v1392, %v1449
        %vm1452 = vcmp.eq.f32.partialorder %v1392, 0.0
        %v1453 = vand.u32 %v1392, 2147483648
        %v1454 = vsel %vm1452, %v1453, %v1451
        %v1455 = vrsqrt.pop %v1398
        %v1456 = vmul.f32 %v1398, %v1455
        %vm1457 = vcmp.eq.f32.partialorder %v1398, inf
        %v1458 = vsel %vm1457, %v1398, %v1456
        %vm1459 = vcmp.eq.f32.partialorder %v1398, 0.0
        %v1460 = vand.u32 %v1398, 2147483648
        %v1461 = vsel %vm1459, %v1460, %v1458
        %v1462 = vrsqrt.pop %v1404
        %v1463 = vmul.f32 %v1404, %v1462
        %vm1464 = vcmp.eq.f32.partialorder %v1404, inf
        %v1465 = vsel %vm1464, %v1404, %v1463
        %vm1466 = vcmp.eq.f32.partialorder %v1404, 0.0
        %v1467 = vand.u32 %v1404, 2147483648
        %v1468 = vsel %vm1466, %v1467, %v1465
        %v1469 = vadd.f32 %v1419, 1e-07
        %v1470 = vadd.f32 %v1426, 1e-07
        %v1471 = vadd.f32 %v1433, 1e-07
        %v1472 = vadd.f32 %v1440, 1e-07
        %v1473 = vadd.f32 %v1447, 1e-07
        %v1474 = vadd.f32 %v1454, 1e-07
        %v1475 = vadd.f32 %v1461, 1e-07
        %v1476 = vadd.f32 %v1468, 1e-07
        %v1477 = vmul.f32 %v1405, %v1469
        %v1478 = vmul.f32 %v1406, %v1470
        %v1479 = vmul.f32 %v1407, %v1471
        %v1480 = vmul.f32 %v1408, %v1472
        %v1481 = vmul.f32 %v1409, %v1473
        %v1482 = vmul.f32 %v1410, %v1474
        %v1483 = vmul.f32 %v1411, %v1475
        %v1484 = vmul.f32 %v1412, %v1476
        %v1485 = vrcp.pop %v1477
        %v1486 = vrcp.pop %v1478
        %v1487 = vrcp.pop %v1479
        %v1488 = vrcp.pop %v1480
        %v1489 = vrcp.pop %v1481
        %v1490 = vrcp.pop %v1482
        %v1491 = vrcp.pop %v1483
        %v1492 = vrcp.pop %v1484
        %v1493 = vmul.f32 %v1362, %v1485
        %v1494 = vmul.f32 %v1368, %v1486
        %v1495 = vmul.f32 %v1374, %v1487
        %v1496 = vmul.f32 %v1380, %v1488
        %v1497 = vmul.f32 %v1386, %v1489
        %v1498 = vmul.f32 %v1392, %v1490
        %v1499 = vmul.f32 %v1398, %v1491
        %v1500 = vmul.f32 %v1404, %v1492
        %v1501 = vlaneseq
        %v1502 = vshrl.u32 %v1501, 7
        %v1503 = vsub.s32 0, %v1502
        %v1504 = vrot.slane %v1493, %v1503
        %v1505 = vlaneseq
        %v1506 = vshrl.u32 %v1505, 7
        %v1507 = vsub.s32 0, %v1506
        %v1508 = vrot.slane %v1494, %v1507
        %v1509 = vlaneseq
        %v1510 = vshrl.u32 %v1509, 7
        %v1511 = vsub.s32 0, %v1510
        %v1512 = vrot.slane %v1495, %v1511
        %v1513 = vlaneseq
        %v1514 = vshrl.u32 %v1513, 7
        %v1515 = vsub.s32 0, %v1514
        %v1516 = vrot.slane %v1496, %v1515
        %v1517 = vlaneseq
        %v1518 = vshrl.u32 %v1517, 7
        %v1519 = vsub.s32 0, %v1518
        %v1520 = vrot.slane %v1497, %v1519
        %v1521 = vlaneseq
        %v1522 = vshrl.u32 %v1521, 7
        %v1523 = vsub.s32 0, %v1522
        %v1524 = vrot.slane %v1498, %v1523
        %v1525 = vlaneseq
        %v1526 = vshrl.u32 %v1525, 7
        %v1527 = vsub.s32 0, %v1526
        %v1528 = vrot.slane %v1499, %v1527
        %v1529 = vlaneseq
        %v1530 = vshrl.u32 %v1529, 7
        %v1531 = vsub.s32 0, %v1530
        %v1532 = vrot.slane %v1500, %v1531
        %v1533 = vmul.f32 %v1038, %v1504
        %v1534 = vmul.f32 %v1039, %v1508
        %v1535 = vmul.f32 %v1040, %v1504
        %v1536 = vmul.f32 %v1041, %v1508
        %v1537 = vmul.f32 %v1042, %v1504
        %v1538 = vmul.f32 %v1043, %v1508
        %v1539 = vmul.f32 %v1044, %v1504
        %v1540 = vmul.f32 %v1045, %v1508
        %v1541 = vmul.f32 %v1046, %v1504
        %v1542 = vmul.f32 %v1047, %v1508
        %v1543 = vmul.f32 %v1048, %v1504
        %v1544 = vmul.f32 %v1049, %v1508
        %v1545 = vmul.f32 %v1050, %v1504
        %v1546 = vmul.f32 %v1051, %v1508
        %v1547 = vmul.f32 %v1052, %v1504
        %v1548 = vmul.f32 %v1053, %v1508
        %v1549 = vmul.f32 %v1054, %v1512
        %v1550 = vmul.f32 %v1055, %v1516
        %v1551 = vmul.f32 %v1056, %v1512
        %v1552 = vmul.f32 %v1057, %v1516
        %v1553 = vmul.f32 %v1058, %v1512
        %v1554 = vmul.f32 %v1059, %v1516
        %v1555 = vmul.f32 %v1060, %v1512
        %v1556 = vmul.f32 %v1061, %v1516
        %v1557 = vmul.f32 %v1062, %v1512
        %v1558 = vmul.f32 %v1063, %v1516
        %v1559 = vmul.f32 %v1064, %v1512
        %v1560 = vmul.f32 %v1065, %v1516
        %v1561 = vmul.f32 %v1066, %v1512
        %v1562 = vmul.f32 %v1067, %v1516
        %v1563 = vmul.f32 %v1068, %v1512
        %v1564 = vmul.f32 %v1069, %v1516
        %v1565 = vmul.f32 %v1070, %v1520
        %v1566 = vmul.f32 %v1071, %v1524
        %v1567 = vmul.f32 %v1072, %v1520
        %v1568 = vmul.f32 %v1073, %v1524
        %v1569 = vmul.f32 %v1074, %v1520
        %v1570 = vmul.f32 %v1075, %v1524
        %v1571 = vmul.f32 %v1076, %v1520
        %v1572 = vmul.f32 %v1077, %v1524
        %v1573 = vmul.f32 %v1078, %v1520
        %v1574 = vmul.f32 %v1079, %v1524
        %v1575 = vmul.f32 %v1080, %v1520
        %v1576 = vmul.f32 %v1081, %v1524
        %v1577 = vmul.f32 %v1082, %v1520
        %v1578 = vmul.f32 %v1083, %v1524
        %v1579 = vmul.f32 %v1084, %v1520
        %v1580 = vmul.f32 %v1085, %v1524
        %v1581 = vmul.f32 %v1086, %v1528
        %v1582 = vmul.f32 %v1087, %v1532
        %v1583 = vmul.f32 %v1088, %v1528
        %v1584 = vmul.f32 %v1089, %v1532
        %v1585 = vmul.f32 %v1090, %v1528
        %v1586 = vmul.f32 %v1091, %v1532
        %v1587 = vmul.f32 %v1092, %v1528
        %v1588 = vmul.f32 %v1093, %v1532
        %v1589 = vmul.f32 %v1094, %v1528
        %v1590 = vmul.f32 %v1095, %v1532
        %v1591 = vmul.f32 %v1096, %v1528
        %v1592 = vmul.f32 %v1097, %v1532
        %v1593 = vmul.f32 %v1098, %v1528
        %v1594 = vmul.f32 %v1099, %v1532
        %v1595 = vmul.f32 %v1100, %v1528
        %v1596 = vmul.f32 %v1101, %v1532
        %v1661 = vrot.slane %v1535, 7
        %v1662 = vsel %vm1231, %v1661, %v1533
        %v1663 = vrot.slane %v1537, 6
        %v1664 = vsel %vm1234, %v1663, %v1662
        %v1665 = vrot.slane %v1539, 5
        %v1666 = vsel %vm1237, %v1665, %v1664
        %v1667 = vrot.slane %v1541, 4
        %v1668 = vsel %vm1240, %v1667, %v1666
        %v1669 = vrot.slane %v1543, 3
        %v1670 = vsel %vm1243, %v1669, %v1668
        %v1671 = vrot.slane %v1545, 2
        %v1672 = vsel %vm1246, %v1671, %v1670
        %v1673 = vrot.slane %v1547, 1
        %v1674 = vsel %vm1249, %v1673, %v1672
        %v1675 = vrot.slane %v1536, 7
        %v1676 = vsel %vm1231, %v1675, %v1534
        %v1677 = vrot.slane %v1538, 6
        %v1678 = vsel %vm1234, %v1677, %v1676
        %v1679 = vrot.slane %v1540, 5
        %v1680 = vsel %vm1237, %v1679, %v1678
        %v1681 = vrot.slane %v1542, 4
        %v1682 = vsel %vm1240, %v1681, %v1680
        %v1683 = vrot.slane %v1544, 3
        %v1684 = vsel %vm1243, %v1683, %v1682
        %v1685 = vrot.slane %v1546, 2
        %v1686 = vsel %vm1246, %v1685, %v1684
        %v1687 = vrot.slane %v1548, 1
        %v1688 = vsel %vm1249, %v1687, %v1686
        %v1689 = vrot.slane %v1551, 7
        %v1690 = vsel %vm1231, %v1689, %v1549
        %v1691 = vrot.slane %v1553, 6
        %v1692 = vsel %vm1234, %v1691, %v1690
        %v1693 = vrot.slane %v1555, 5
        %v1694 = vsel %vm1237, %v1693, %v1692
        %v1695 = vrot.slane %v1557, 4
        %v1696 = vsel %vm1240, %v1695, %v1694
        %v1697 = vrot.slane %v1559, 3
        %v1698 = vsel %vm1243, %v1697, %v1696
        %v1699 = vrot.slane %v1561, 2
        %v1700 = vsel %vm1246, %v1699, %v1698
        %v1701 = vrot.slane %v1563, 1
        %v1702 = vsel %vm1249, %v1701, %v1700
        %v1703 = vrot.slane %v1552, 7
        %v1704 = vsel %vm1231, %v1703, %v1550
        %v1705 = vrot.slane %v1554, 6
        %v1706 = vsel %vm1234, %v1705, %v1704
        %v1707 = vrot.slane %v1556, 5
        %v1708 = vsel %vm1237, %v1707, %v1706
        %v1709 = vrot.slane %v1558, 4
        %v1710 = vsel %vm1240, %v1709, %v1708
        %v1711 = vrot.slane %v1560, 3
        %v1712 = vsel %vm1243, %v1711, %v1710
        %v1713 = vrot.slane %v1562, 2
        %v1714 = vsel %vm1246, %v1713, %v1712
        %v1715 = vrot.slane %v1564, 1
        %v1716 = vsel %vm1249, %v1715, %v1714
        %v1717 = vrot.slane %v1567, 7
        %v1718 = vsel %vm1231, %v1717, %v1565
        %v1719 = vrot.slane %v1569, 6
        %v1720 = vsel %vm1234, %v1719, %v1718
        %v1721 = vrot.slane %v1571, 5
        %v1722 = vsel %vm1237, %v1721, %v1720
        %v1723 = vrot.slane %v1573, 4
        %v1724 = vsel %vm1240, %v1723, %v1722
        %v1725 = vrot.slane %v1575, 3
        %v1726 = vsel %vm1243, %v1725, %v1724
        %v1727 = vrot.slane %v1577, 2
        %v1728 = vsel %vm1246, %v1727, %v1726
        %v1729 = vrot.slane %v1579, 1
        %v1730 = vsel %vm1249, %v1729, %v1728
        %v1731 = vrot.slane %v1568, 7
        %v1732 = vsel %vm1231, %v1731, %v1566
        %v1733 = vrot.slane %v1570, 6
        %v1734 = vsel %vm1234, %v1733, %v1732
        %v1735 = vrot.slane %v1572, 5
        %v1736 = vsel %vm1237, %v1735, %v1734
        %v1737 = vrot.slane %v1574, 4
        %v1738 = vsel %vm1240, %v1737, %v1736
        %v1739 = vrot.slane %v1576, 3
        %v1740 = vsel %vm1243, %v1739, %v1738
        %v1741 = vrot.slane %v1578, 2
        %v1742 = vsel %vm1246, %v1741, %v1740
        %v1743 = vrot.slane %v1580, 1
        %v1744 = vsel %vm1249, %v1743, %v1742
        %v1745 = vrot.slane %v1583, 7
        %v1746 = vsel %vm1231, %v1745, %v1581
        %v1747 = vrot.slane %v1585, 6
        %v1748 = vsel %vm1234, %v1747, %v1746
        %v1749 = vrot.slane %v1587, 5
        %v1750 = vsel %vm1237, %v1749, %v1748
        %v1751 = vrot.slane %v1589, 4
        %v1752 = vsel %vm1240, %v1751, %v1750
        %v1753 = vrot.slane %v1591, 3
        %v1754 = vsel %vm1243, %v1753, %v1752
        %v1755 = vrot.slane %v1593, 2
        %v1756 = vsel %vm1246, %v1755, %v1754
        %v1757 = vrot.slane %v1595, 1
        %v1758 = vsel %vm1249, %v1757, %v1756
        %v1759 = vrot.slane %v1584, 7
        %v1760 = vsel %vm1231, %v1759, %v1582
        %v1761 = vrot.slane %v1586, 6
        %v1762 = vsel %vm1234, %v1761, %v1760
        %v1763 = vrot.slane %v1588, 5
        %v1764 = vsel %vm1237, %v1763, %v1762
        %v1765 = vrot.slane %v1590, 4
        %v1766 = vsel %vm1240, %v1765, %v1764
        %v1767 = vrot.slane %v1592, 3
        %v1768 = vsel %vm1243, %v1767, %v1766
        %v1769 = vrot.slane %v1594, 2
        %v1770 = vsel %vm1246, %v1769, %v1768
        %v1771 = vrot.slane %v1596, 1
        %v1772 = vsel %vm1249, %v1771, %v1770
        %1781 = vst [vmem:[%s314] sm:$0xff] %v1674
        %1782 = vst [vmem:[%s314 + $0x8] sm:$0xff] %v1688
        %1783 = vst [vmem:[%s314 + $0x10] sm:$0xff] %v1702
        %1784 = vst [vmem:[%s314 + $0x18] sm:$0xff] %v1716
        %1785 = vst [vmem:[%s314 + $0x20] sm:$0xff] %v1730
        %1786 = vst [vmem:[%s314 + $0x28] sm:$0xff] %v1744
        %1787 = vst [vmem:[%s314 + $0x30] sm:$0xff] %v1758
        %1788 = vst [vmem:[%s314 + $0x38] sm:$0xff] %v1772
        %s1789 = sand.u32 %s84, 1
        %s1790 = sand.u32 %s84, 1
        %s1791 = smul.addr %s1790, 64
        %s1792 = scalar_lea.vmem [#allocation3], %s1791
        // Predicated region
        $region67: #{encoder_caps_forward.7} parent=61 // pred_check
          %p1793 = pneg %p94
        $region68: #{encoder_caps_forward.7} parent=61 // pred_check_branch
          %1795 = sbr.rel (%p1793) target = $region70
        $region69: #{encoder_caps_forward.7} parent=61 // pred_region
          %s1796 = smul.u32 2, %s18
          %s1797 = smul.addr %s17, 16
          %s1798 = sadd.s32 %s1796, %s1797
          %s1799 = smul.addr %s1798, 8
          %s1800 = scalar_lea.vmem %s2, %s1799
          // Predicated region
          $region71: #{encoder_caps_forward.7} parent=69 // pred_check
            _
          $region72: #{encoder_caps_forward.7} parent=69 // pred_check_branch
            %1802 = sbr.rel (0) target = $region74
          $region73: #{encoder_caps_forward.7} parent=69 // pred_region
            // Predicated region
            $region75: #{encoder_caps_forward.7} parent=73 // pred_check
              _
            $region76: #{encoder_caps_forward.7} parent=73 // pred_check_branch
              %1804 = sbr.rel (0) target = $region78
            $region77: #{encoder_caps_forward.7} parent=73 // pred_region
              loop: start=0, step=1, limit=1
              $region79: #{encoder_caps_forward.7} parent=77 // loop_pre_header
                _
              $region80: #{encoder_caps_forward.7} parent=77 // loop_header
                %s1806 = sphi 0, %s1810
                %p1807 = scmp.ge.s32.totalorder %s1806, 1
                %s1811 = sphi %s1792, %s1792
                %s1812 = sphi %s1800, %s1800
              $region81: #{encoder_caps_forward.7} parent=77 // loop_header_branch
                %1809 = sbr.rel (%p1807) target = $region85
              $region82: #{encoder_caps_forward.7} parent=77 // loop_body
                %v1813 = vld [vmem:[%s1811] sm:$0xff]
                %1814 = vst [vmem:[%s1812] sm:$0xff] %v1813
                %v1815 = vld [vmem:[%s1811 + $0x8] sm:$0xff]
                %1816 = vst [vmem:[%s1812 + $0x8] sm:$0xff] %v1815
                %v1817 = vld [vmem:[%s1811 + $0x10] sm:$0xff]
                %1818 = vst [vmem:[%s1812 + $0x20] sm:$0xff] %v1817
                %v1819 = vld [vmem:[%s1811 + $0x18] sm:$0xff]
                %1820 = vst [vmem:[%s1812 + $0x28] sm:$0xff] %v1819
                %v1821 = vld [vmem:[%s1811 + $0x20] sm:$0xff]
                %1822 = vst [vmem:[%s1812 + $0x40] sm:$0xff] %v1821
                %v1823 = vld [vmem:[%s1811 + $0x28] sm:$0xff]
                %1824 = vst [vmem:[%s1812 + $0x48] sm:$0xff] %v1823
                %v1825 = vld [vmem:[%s1811 + $0x30] sm:$0xff]
                %1826 = vst [vmem:[%s1812 + $0x60] sm:$0xff] %v1825
                %v1827 = vld [vmem:[%s1811 + $0x38] sm:$0xff]
                %1828 = vst [vmem:[%s1812 + $0x68] sm:$0xff] %v1827
              $region83: #{encoder_caps_forward.7} parent=77 // loop_footer
                %s1810 = sadd.s32 1, %s1806
              $region84: #{encoder_caps_forward.7} parent=77 // loop_footer_branch
                %1805 = sbr.rel target = $region80
              $region85: #{encoder_caps_forward.7} parent=77 // loop_exit
                _
            $region78: #{encoder_caps_forward.7} parent=73 // pred_fallthru
              _
            // Predicated region
            $region86: #{encoder_caps_forward.7} parent=73 // pred_check
              _
            $region87: #{encoder_caps_forward.7} parent=73 // pred_check_branch
              %1830 = sbr.rel target = $region89
            $region88: #{encoder_caps_forward.7} parent=73 // pred_region
              _
            $region89: #{encoder_caps_forward.7} parent=73 // pred_fallthru
              _
          $region74: #{encoder_caps_forward.7} parent=69 // pred_fallthru
            _
          %1831 = vnop
        $region70: #{encoder_caps_forward.7} parent=61 // pred_fallthru
          _
      $region62: #{encoder_caps_forward.7} parent=5 // pred_fallthru
        _
      %p1832 = scmp.le.s32.totalorder 2, %s8
      // Predicated region
      $region90: #{encoder_caps_forward.7} parent=5 // pred_check
        %p1833 = pneg %p1832
      $region91: #{encoder_caps_forward.7} parent=5 // pred_check_branch
        %1835 = sbr.rel (%p1833) target = $region93
      $region92: #{encoder_caps_forward.7} parent=5 // pred_region
        %s1836 = ssub.s32 %s8, 2
        // Predicated region
        $region94: #{encoder_caps_forward.7} parent=92 // pred_check
          %p1837 = pneg %p100
        $region95: #{encoder_caps_forward.7} parent=92 // pred_check_branch
          %1839 = sbr.rel (%p1837) target = $region97
        $region96: #{encoder_caps_forward.7} parent=92 // pred_region
          %s1840 = sand.u32 %s85, 1
          %s1841 = sand.u32 %s85, 1
          %s1842 = smul.addr %s1841, 64
          %s1843 = scalar_lea.vmem [#allocation3], %s1842
        $region97: #{encoder_caps_forward.7} parent=92 // pred_fallthru
          _
      $region93: #{encoder_caps_forward.7} parent=5 // pred_fallthru
        _
    $region6: #{encoder_caps_forward.7} parent=1 // loop_footer
      %s12 = sadd.s32 1, %s8
    $region7: #{encoder_caps_forward.7} parent=1 // loop_footer_branch
      %7 = sbr.rel target = $region3
    $region8: #{encoder_caps_forward.7} parent=1 // loop_exit
      _

</llo_original>
